<compile_context>
chip_gen: v6e
topology: v6e:2x2x1
jax: 0.10.0
libtpu: 0.0.40
codegen_flags: <defaults>
</compile_context>

<pallas_src>
import numpy as np
import jax
import jax.numpy as jnp
from jax.experimental import pallas as pl
from jax.experimental.pallas import tpu as pltpu

# Fixed architecture constants (Linear(288, 10) = 32*3*3 => 12x12 spatial input).
H_IN = W_IN = 12
C_IN = 1
C1, C2 = 16, 32
KSIZE, PAD = 5, 2
FEAT = C2 * (H_IN // 4) * (W_IN // 4)        # 288
N_CLASSES = 10
LANE = 128
N_CLASSES_PAD = LANE                         # logits padded to one full lane group


def _round_up(v, m):
    return (v + m - 1) // m * m


def _detect_vmem_bytes():
    try:
        return int(pltpu.get_tpu_info().vmem_capacity_bytes)
    except Exception:
        return 64 * 1024 * 1024              # conservative fallback (v7x per-TC VMEM)


_VMEM_BYTES = _detect_vmem_bytes()
_BIG_VMEM = _VMEM_BYTES >= 128 * 1024 * 1024
MAX_BM = 1024 if _BIG_VMEM else 512          # batch rows per grid block
VMEM_LIMIT_BYTES = (96 if _BIG_VMEM else 48) * 1024 * 1024


# ---------------------------------------------------------------------------
# Pallas kernel: the whole forward pass for one block of batch rows
# ---------------------------------------------------------------------------
def _cnn_kernel(x_ref, w1_ref, b1_ref, w2_ref, b2_ref, wl_ref, bl_ref,
                probs_ref, feat_ref):
    """x:(BM,144)bf16  w1:(144,4*N1P)bf16  w2:(N1P,4*N2P)bf16  wl:(N2P,128)bf16.
    Biases are f32; GEMMs accumulate in f32; elementwise math is f32."""
    x = x_ref[...]

    # ---- conv1 + bias + ReLU + 2x2 maxpool: one stacked GEMM, three max's ----
    n1 = w1_ref.shape[1] // 4
    y1 = jnp.dot(x, w1_ref[...], preferred_element_type=jnp.float32) + b1_ref[...]
    y1 = jnp.maximum(y1, 0.0)                         # ReLU commutes with the pool max
    h1 = jnp.maximum(jnp.maximum(y1[:, 0 * n1:1 * n1], y1[:, 1 * n1:2 * n1]),
                     jnp.maximum(y1[:, 2 * n1:3 * n1], y1[:, 3 * n1:4 * n1]))

    # ---- conv2 + bias + ReLU + 2x2 maxpool (output already in PyTorch CHW order) ----
    n2 = w2_ref.shape[1] // 4
    y2 = jnp.dot(h1.astype(jnp.bfloat16), w2_ref[...],
                 preferred_element_type=jnp.float32) + b2_ref[...]
    y2 = jnp.maximum(y2, 0.0)
    h2 = jnp.maximum(jnp.maximum(y2[:, 0 * n2:1 * n2], y2[:, 1 * n2:2 * n2]),
                     jnp.maximum(y2[:, 2 * n2:3 * n2], y2[:, 3 * n2:4 * n2]))

    # Lane-dense feature store: full padded slab, no masked vst / in-kernel slice.
    feat_ref[...] = h2

    # ---- linear + softmax over a full 128-lane slab (pad logits have -1e30 bias) ----
    logits = jnp.dot(h2.astype(jnp.bfloat16), wl_ref[...],
                     preferred_element_type=jnp.float32) + bl_ref[...]
    m = jnp.max(logits, axis=-1, keepdims=True)
    e = jnp.exp(logits - m)
    s = jnp.sum(e, axis=-1, keepdims=True)
    probs_ref[...] = e * pl.reciprocal(s, approx=True)


# ---------------------------------------------------------------------------
# One-time weight repacking (host-side numpy; done once, outside jit)
# ---------------------------------------------------------------------------
def _conv_pool_branch_matrix(w, h_in, w_in, dy, dx, out_order):
    """Dense operator: 5x5 'same' conv, evaluated only at pool-branch (dy,dx) positions.

    Rows index the input flattened as (y, x, c_in) (c minor).  Columns index the output
    flattened as (oy, ox, c_out) for "hwc", or PyTorch's (c_out, oy, ox) for "chw".
    """
    c_out, c_in, k, _ = w.shape
    h_out, w_out = h_in // 2, w_in // 2
    mat = np.zeros((h_in * w_in * c_in, h_out * w_out * c_out), np.float32)
    ci = np.arange(c_in)
    co = np.arange(c_out)
    for oy in range(h_out):
        for ox in range(w_out):
            yy, xx = 2 * oy + dy, 2 * ox + dx
            for ky in range(k):
                y = yy + ky - PAD
                if not 0 <= y < h_in:
                    continue                           # zero-padding row
                for kx in range(k):
                    x = xx + kx - PAD
                    if not 0 <= x < w_in:
                        continue                       # zero-padding col
                    rows = (y * w_in + x) * c_in + ci
                    if out_order == "hwc":
                        cols = (oy * w_out + ox) * c_out + co
                    else:                              # "chw": PyTorch flatten order
                        cols = (co * h_out + oy) * w_out + ox
                    mat[np.ix_(rows, cols)] = w[:, :, ky, kx].T
    return mat


def _conv_pool_operator(w, b, h_in, w_in, out_order):
    """Stack the 4 pool-branch operators along N, each padded to a 128-lane multiple."""
    c_out = w.shape[0]
    h_out, w_out = h_in // 2, w_in // 2
    n = h_out * w_out * c_out
    n_pad = _round_up(n, LANE)
    bias = np.tile(b, h_out * w_out) if out_order == "hwc" else np.repeat(b, h_out * w_out)
    mats, biases = [], []
    for dy in (0, 1):
        for dx in (0, 1):
            m = _conv_pool_branch_matrix(w, h_in, w_in, dy, dx, out_order)
            mats.append(np.pad(m, ((0, 0), (0, n_pad - n))))
            biases.append(np.pad(bias, (0, n_pad - n)))
    return np.concatenate(mats, axis=1), np.concatenate(biases)[None, :], n_pad


def prepare_params(params):
    """Repack PyTorch-layout parameters into the fused-kernel operand matrices."""
    w1 = np.asarray(params["w1"], np.float32)
    b1 = np.asarray(params["b1"], np.float32)
    w2 = np.asarray(params["w2"], np.float32)
    b2 = np.asarray(params["b2"], np.float32)
    wl = np.asarray(params["wl"], np.float32)
    bl = np.asarray(params["bl"], np.float32)

    W1, B1, n1p = _conv_pool_operator(w1, b1, H_IN, W_IN, "hwc")              # (144, 4*640)
    W2, B2, n2p = _conv_pool_operator(w2, b2, H_IN // 2, W_IN // 2, "chw")    # (576, 4*384)
    # conv2 consumes h1 in its lane-padded (n1p) layout: add zero rows for the pad lanes.
    W2 = np.pad(W2, ((0, n1p - W2.shape[0]), (0, 0)))
    # Linear weight, transposed, row-padded to h2's lane-padded layout and column-padded
    # to a full 128-lane slab.  The feature permutation to PyTorch (C,H,W) flatten order
    # is baked into W2's "chw" output ordering, so no transpose is needed anywhere.
    WL = np.zeros((n2p, N_CLASSES_PAD), np.float32)
    WL[:FEAT, :N_CLASSES] = wl.T
    # Pad-class bias of -1e30 => exp underflows to 0 => softmax over the real 10 classes.
    BL = np.full((1, N_CLASSES_PAD), -1e30, np.float32)
    BL[0, :N_CLASSES] = bl

    # GEMM operands in bf16 (MXU-native); biases stay f32 for f32 epilogue math.
    return {
        "w1": jnp.asarray(W1, jnp.bfloat16), "b1": jnp.asarray(B1, jnp.float32),
        "w2": jnp.asarray(W2, jnp.bfloat16), "b2": jnp.asarray(B2, jnp.float32),
        "wl": jnp.asarray(WL, jnp.bfloat16), "bl": jnp.asarray(BL, jnp.float32),
    }


# ---------------------------------------------------------------------------
# Forward wrapper: single pallas_call, batch tiled on a "parallel" grid axis
# ---------------------------------------------------------------------------
@jax.jit
def cnn_forward(x_nchw, packed):
    """Pallas implementation of CNN.forward. Returns (softmax_probs, flat_features)."""
    b = x_nchw.shape[0]
    # C_IN == 1, so the NCHW flatten is already (y, x) row-major: pure reshape, no
    # transpose/copy feeding the kernel.  bf16 halves the input DMA.
    x2d = x_nchw.reshape(b, H_IN * W_IN * C_IN).astype(jnp.bfloat16)

    # >= 2 grid steps whenever the batch allows (both v7x TensorCores busy), capped by
    # MAX_BM so per-block VMEM stays inside this generation's budget.
    bm = min(MAX_BM, _round_up((b + 1) // 2, 8))
    bp = _round_up(b, bm)
    if bp != b:
        x2d = jnp.pad(x2d, ((0, bp - b), (0, 0)))
    grid = (bp // bm,)

    k1 = x2d.shape[1]
    n1c = packed["w1"].shape[1]
    n2c = packed["w2"].shape[1]
    n1p = packed["w2"].shape[0]
    n2p = packed["wl"].shape[0]

    probs, feat = pl.pallas_call(
        _cnn_kernel,
        out_shape=(jax.ShapeDtypeStruct((bp, N_CLASSES_PAD), jnp.float32),
                   jax.ShapeDtypeStruct((bp, n2p), jnp.float32)),
        grid=grid,
        in_specs=[
            pl.BlockSpec((bm, k1), lambda i: (i, 0)),          # x rows for this block
            # Grid-invariant operands (index_map always (0,0)): fetched once, reused.
            # NOTE: pipeline_mode=pl.Buffered(1) would reclaim their second VMEM
            # buffer; skipped here since bf16 weights (~3 MB doubled) fit easily.
            pl.BlockSpec((k1, n1c), lambda i: (0, 0)),         # conv1+pool operator
            pl.BlockSpec((1, n1c), lambda i: (0, 0)),
            pl.BlockSpec((n1p, n2c), lambda i: (0, 0)),        # conv2+pool operator
            pl.BlockSpec((1, n2c), lambda i: (0, 0)),
            pl.BlockSpec((n2p, N_CLASSES_PAD), lambda i: (0, 0)),  # linear (lane-padded)
            pl.BlockSpec((1, N_CLASSES_PAD), lambda i: (0, 0)),
        ],
        out_specs=(
            pl.BlockSpec((bm, N_CLASSES_PAD), lambda i: (i, 0)),
            pl.BlockSpec((bm, n2p), lambda i: (i, 0)),
        ),
        compiler_params=pltpu.CompilerParams(
            dimension_semantics=("parallel",),
            vmem_limit_bytes=VMEM_LIMIT_BYTES,
        ),
    )(x2d, packed["w1"], packed["b1"], packed["w2"], packed["b2"],
      packed["wl"], packed["bl"])

    # Strip batch padding and the lane padding of both outputs in the wrapper.
    return probs[:b, :N_CLASSES], feat[:b, :FEAT]


# ---------------------------------------------------------------------------
# Pure-JAX reference (correctness sanity check)
# ---------------------------------------------------------------------------
def cnn_reference(x_nchw, params):
    def conv_relu_pool(y, w, b):
        dn = jax.lax.conv_dimension_numbers(y.shape, w.shape, ("NCHW", "OIHW", "NCHW"))
        y = jax.lax.conv_general_dilated(y, w, (1, 1), ((PAD, PAD), (PAD, PAD)),
                                         dimension_numbers=dn)
        y = y + b[None, :, None, None]
        y = jnp.maximum(y, 0.0)
        return jax.lax.reduce_window(y, -jnp.inf, jax.lax.max,
                                     (1, 1, 2, 2), (1, 1, 2, 2), "VALID")

    y = conv_relu_pool(x_nchw, params["w1"], params["b1"])
    y = conv_relu_pool(y, params["w2"], params["b2"])
    feat = y.reshape(y.shape[0], -1)
    logits = feat @ params["wl"].T + params["bl"]
    return jax.nn.softmax(logits, axis=1), feat


def init_params(key):
    k1, k2, k3, k4, k5, k6 = jax.random.split(key, 6)

    def u(k, shape, fan_in):
        bound = 1.0 / jnp.sqrt(float(fan_in))
        return jax.random.uniform(k, shape, jnp.float32, -bound, bound)

    return {
        "w1": u(k1, (C1, C_IN, KSIZE, KSIZE), C_IN * KSIZE * KSIZE),
        "b1": u(k2, (C1,), C_IN * KSIZE * KSIZE),
        "w2": u(k3, (C2, C1, KSIZE, KSIZE), C1 * KSIZE * KSIZE),
        "b2": u(k4, (C2,), C1 * KSIZE * KSIZE),
        "wl": u(k5, (N_CLASSES, FEAT), FEAT),
        "bl": u(k6, (N_CLASSES,), FEAT),
    }


if __name__ == "__main__":
    key = jax.random.PRNGKey(0)
    pkey, xkey = jax.random.split(key)
    params = init_params(pkey)
    packed = prepare_params(params)

    # Linear(288, 10) = 32*3*3 -> spatial input must be 12x12.
    x = jax.random.normal(xkey, (2, C_IN, H_IN, W_IN), dtype=jnp.float32)

    probs, feat = cnn_forward(x, packed)
    probs, feat = jax.block_until_ready(probs), jax.block_until_ready(feat)

    assert probs.shape == (2, N_CLASSES) and feat.shape == (2, FEAT)
    assert jnp.allclose(jnp.sum(probs, axis=1), 1.0, atol=1e-2)

    ref_probs, ref_feat = cnn_reference(x, params)
    assert jnp.allclose(feat, ref_feat, atol=2e-2, rtol=2e-2)
    assert jnp.allclose(probs, ref_probs, atol=2e-2, rtol=2e-2)

    print("KERNEL_OK")
</pallas_src>

<mosaic_0001>
module attributes {stable_mosaic.version = 11 : i64} {
  func.func @_cnn_kernel(%arg0: i32, %arg1: memref<8x144xbf16, #tpu.memory_space<vmem>>, %arg2: memref<144x2560xbf16, #tpu.memory_space<vmem>>, %arg3: memref<1x2560xf32, #tpu.memory_space<vmem>>, %arg4: memref<640x1536xbf16, #tpu.memory_space<vmem>>, %arg5: memref<1x1536xf32, #tpu.memory_space<vmem>>, %arg6: memref<384x128xbf16, #tpu.memory_space<vmem>>, %arg7: memref<1x128xf32, #tpu.memory_space<vmem>>, %arg8: memref<8x128xf32, #tpu.memory_space<vmem>>, %arg9: memref<8x384xf32, #tpu.memory_space<vmem>>) attributes {dimension_semantics = [#tpu.dimension_semantics<parallel>], iteration_bounds = array<i64: 1>, scalar_prefetch = 0 : i64, scratch_operands = 0 : i64, tpu.core_type = #tpu.core_type<tc>, window_params = [{transform_indices = @transform_0, window_bounds = array<i64: 8, 144>}, {pipeline_mode = #tpu.pipeline_mode<synchronous>, transform_indices = @transform_1, window_bounds = array<i64: 144, 2560>}, {pipeline_mode = #tpu.pipeline_mode<synchronous>, transform_indices = @transform_2, window_bounds = array<i64: 1, 2560>}, {pipeline_mode = #tpu.pipeline_mode<synchronous>, transform_indices = @transform_3, window_bounds = array<i64: 640, 1536>}, {pipeline_mode = #tpu.pipeline_mode<synchronous>, transform_indices = @transform_4, window_bounds = array<i64: 1, 1536>}, {pipeline_mode = #tpu.pipeline_mode<synchronous>, transform_indices = @transform_5, window_bounds = array<i64: 384, 128>}, {pipeline_mode = #tpu.pipeline_mode<synchronous>, transform_indices = @transform_6, window_bounds = array<i64: 1, 128>}, {transform_indices = @transform_7, window_bounds = array<i64: 8, 128>}, {transform_indices = @transform_8, window_bounds = array<i64: 8, 384>}]} {
    %c0 = arith.constant 0 : index
    %c0_0 = arith.constant 0 : index
    %0 = vector.load %arg1[%c0, %c0_0] : memref<8x144xbf16, #tpu.memory_space<vmem>>, vector<8x144xbf16>
    %c0_1 = arith.constant 0 : index
    %c0_2 = arith.constant 0 : index
    %1 = vector.load %arg2[%c0_1, %c0_2] : memref<144x2560xbf16, #tpu.memory_space<vmem>>, vector<144x2560xbf16>
    %cst = arith.constant dense<0.000000e+00> : vector<8x2560xf32>
    %2 = tpu.matmul %0, %1, %cst {dimension_numbers = #tpu.dot_dimension_numbers<[1], [0], [0], [1], [0, 0, 1, 1], [], []>} : vector<8x144xbf16>, vector<144x2560xbf16>, vector<8x2560xf32> -> vector<8x2560xf32>
    %c0_3 = arith.constant 0 : index
    %c0_4 = arith.constant 0 : index
    %3 = vector.load %arg3[%c0_3, %c0_4] : memref<1x2560xf32, #tpu.memory_space<vmem>>, vector<1x2560xf32>
    %4 = vector.broadcast %3 : vector<1x2560xf32> to vector<8x2560xf32>
    %5 = arith.addf %2, %4 : vector<8x2560xf32>
    %cst_5 = arith.constant 0.000000e+00 : f32
    %6 = vector.broadcast %cst_5 : f32 to vector<8x2560xf32>
    %7 = arith.maximumf %5, %6 : vector<8x2560xf32>
    %8 = vector.extract_strided_slice %7 {offsets = [0, 0], sizes = [8, 640], strides = [1, 1]} : vector<8x2560xf32> to vector<8x640xf32>
    %9 = vector.extract_strided_slice %7 {offsets = [0, 640], sizes = [8, 640], strides = [1, 1]} : vector<8x2560xf32> to vector<8x640xf32>
    %10 = arith.maximumf %8, %9 : vector<8x640xf32>
    %11 = vector.extract_strided_slice %7 {offsets = [0, 1280], sizes = [8, 640], strides = [1, 1]} : vector<8x2560xf32> to vector<8x640xf32>
    %12 = vector.extract_strided_slice %7 {offsets = [0, 1920], sizes = [8, 640], strides = [1, 1]} : vector<8x2560xf32> to vector<8x640xf32>
    %13 = arith.maximumf %11, %12 : vector<8x640xf32>
    %14 = arith.maximumf %10, %13 : vector<8x640xf32>
    %15 = arith.truncf %14 : vector<8x640xf32> to vector<8x640xbf16>
    %c0_6 = arith.constant 0 : index
    %c0_7 = arith.constant 0 : index
    %16 = vector.load %arg4[%c0_6, %c0_7] : memref<640x1536xbf16, #tpu.memory_space<vmem>>, vector<640x1536xbf16>
    %cst_8 = arith.constant dense<0.000000e+00> : vector<8x1536xf32>
    %17 = tpu.matmul %15, %16, %cst_8 {dimension_numbers = #tpu.dot_dimension_numbers<[1], [0], [0], [1], [0, 0, 1, 1], [], []>} : vector<8x640xbf16>, vector<640x1536xbf16>, vector<8x1536xf32> -> vector<8x1536xf32>
    %c0_9 = arith.constant 0 : index
    %c0_10 = arith.constant 0 : index
    %18 = vector.load %arg5[%c0_9, %c0_10] : memref<1x1536xf32, #tpu.memory_space<vmem>>, vector<1x1536xf32>
    %19 = vector.broadcast %18 : vector<1x1536xf32> to vector<8x1536xf32>
    %20 = arith.addf %17, %19 : vector<8x1536xf32>
    %cst_11 = arith.constant 0.000000e+00 : f32
    %21 = vector.broadcast %cst_11 : f32 to vector<8x1536xf32>
    %22 = arith.maximumf %20, %21 : vector<8x1536xf32>
    %23 = vector.extract_strided_slice %22 {offsets = [0, 0], sizes = [8, 384], strides = [1, 1]} : vector<8x1536xf32> to vector<8x384xf32>
    %24 = vector.extract_strided_slice %22 {offsets = [0, 384], sizes = [8, 384], strides = [1, 1]} : vector<8x1536xf32> to vector<8x384xf32>
    %25 = arith.maximumf %23, %24 : vector<8x384xf32>
    %26 = vector.extract_strided_slice %22 {offsets = [0, 768], sizes = [8, 384], strides = [1, 1]} : vector<8x1536xf32> to vector<8x384xf32>
    %27 = vector.extract_strided_slice %22 {offsets = [0, 1152], sizes = [8, 384], strides = [1, 1]} : vector<8x1536xf32> to vector<8x384xf32>
    %28 = arith.maximumf %26, %27 : vector<8x384xf32>
    %29 = arith.maximumf %25, %28 : vector<8x384xf32>
    %c0_12 = arith.constant 0 : index
    %c0_13 = arith.constant 0 : index
    %30 = vector.load %arg9[%c0_12, %c0_13] : memref<8x384xf32, #tpu.memory_space<vmem>>, vector<8x384xf32>
    tpu.vector_store %arg9[%c0_12, %c0_13], %29 {strides = array<i32>} : memref<8x384xf32, #tpu.memory_space<vmem>>, vector<8x384xf32>,
    %31 = arith.truncf %29 : vector<8x384xf32> to vector<8x384xbf16>
    %c0_14 = arith.constant 0 : index
    %c0_15 = arith.constant 0 : index
    %32 = vector.load %arg6[%c0_14, %c0_15] : memref<384x128xbf16, #tpu.memory_space<vmem>>, vector<384x128xbf16>
    %cst_16 = arith.constant dense<0.000000e+00> : vector<8x128xf32>
    %33 = tpu.matmul %31, %32, %cst_16 {dimension_numbers = #tpu.dot_dimension_numbers<[1], [0], [0], [1], [0, 0, 1, 1], [], []>} : vector<8x384xbf16>, vector<384x128xbf16>, vector<8x128xf32> -> vector<8x128xf32>
    %c0_17 = arith.constant 0 : index
    %c0_18 = arith.constant 0 : index
    %34 = vector.load %arg7[%c0_17, %c0_18] : memref<1x128xf32, #tpu.memory_space<vmem>>, vector<1x128xf32>
    %35 = vector.broadcast %34 : vector<1x128xf32> to vector<8x128xf32>
    %36 = arith.addf %33, %35 : vector<8x128xf32>
    %cst_19 = arith.constant dense<0xFF800000> : vector<8xf32>
    %37 = vector.multi_reduction <maximumf>, %36, %cst_19 [1] : vector<8x128xf32> to vector<8xf32>
    %38 = vector.shape_cast %37 : vector<8xf32> to vector<8x1xf32>
    %39 = vector.broadcast %38 : vector<8x1xf32> to vector<8x128xf32>
    %40 = arith.subf %36, %39 : vector<8x128xf32>
    %41 = math.exp %40 : vector<8x128xf32>
    %cst_20 = arith.constant dense<0.000000e+00> : vector<8xf32>
    %42 = vector.multi_reduction <add>, %41, %cst_20 [1] : vector<8x128xf32> to vector<8xf32>
    %43 = vector.shape_cast %42 : vector<8xf32> to vector<8x1xf32>
    %44 = tpu.reciprocal %43 {approx = true} : vector<8x1xf32> -> vector<8x1xf32>
    %45 = vector.broadcast %44 : vector<8x1xf32> to vector<8x128xf32>
    %46 = arith.mulf %41, %45 : vector<8x128xf32>
    %c0_21 = arith.constant 0 : index
    %c0_22 = arith.constant 0 : index
    %47 = vector.load %arg8[%c0_21, %c0_22] : memref<8x128xf32, #tpu.memory_space<vmem>>, vector<8x128xf32>
    tpu.vector_store %arg8[%c0_21, %c0_22], %46 {strides = array<i32>} : memref<8x128xf32, #tpu.memory_space<vmem>>, vector<8x128xf32>,
    return
  }
  func.func @transform_0(%arg0: i32) -> (i32, i32) {
    %c0_i32 = arith.constant 0 : i32
    %c0_i32_0 = arith.constant 0 : i32
    return %arg0, %c0_i32 : i32, i32
  }
  func.func @transform_1(%arg0: i32) -> (i32, i32) {
    %c0_i32 = arith.constant 0 : i32
    %c0_i32_0 = arith.constant 0 : i32
    %c0_i32_1 = arith.constant 0 : i32
    return %c0_i32, %c0_i32_0 : i32, i32
  }
  func.func @transform_2(%arg0: i32) -> (i32, i32) {
    %c0_i32 = arith.constant 0 : i32
    %c0_i32_0 = arith.constant 0 : i32
    %c0_i32_1 = arith.constant 0 : i32
    return %c0_i32, %c0_i32_0 : i32, i32
  }
  func.func @transform_3(%arg0: i32) -> (i32, i32) {
    %c0_i32 = arith.constant 0 : i32
    %c0_i32_0 = arith.constant 0 : i32
    %c0_i32_1 = arith.constant 0 : i32
    return %c0_i32, %c0_i32_0 : i32, i32
  }
  func.func @transform_4(%arg0: i32) -> (i32, i32) {
    %c0_i32 = arith.constant 0 : i32
    %c0_i32_0 = arith.constant 0 : i32
    %c0_i32_1 = arith.constant 0 : i32
    return %c0_i32, %c0_i32_0 : i32, i32
  }
  func.func @transform_5(%arg0: i32) -> (i32, i32) {
    %c0_i32 = arith.constant 0 : i32
    %c0_i32_0 = arith.constant 0 : i32
    %c0_i32_1 = arith.constant 0 : i32
    return %c0_i32, %c0_i32_0 : i32, i32
  }
  func.func @transform_6(%arg0: i32) -> (i32, i32) {
    %c0_i32 = arith.constant 0 : i32
    %c0_i32_0 = arith.constant 0 : i32
    %c0_i32_1 = arith.constant 0 : i32
    return %c0_i32, %c0_i32_0 : i32, i32
  }
  func.func @transform_7(%arg0: i32) -> (i32, i32) {
    %c0_i32 = arith.constant 0 : i32
    %c0_i32_0 = arith.constant 0 : i32
    return %arg0, %c0_i32 : i32, i32
  }
  func.func @transform_8(%arg0: i32) -> (i32, i32) {
    %c0_i32 = arith.constant 0 : i32
    %c0_i32_0 = arith.constant 0 : i32
    return %arg0, %c0_i32 : i32, i32
  }
}

</mosaic_0001>

<llo_original>
// kernel: cnn_forward.1
$region0: #{cnn_forward.1}
  #allocation0 [shape = 'u32[]', space=smem, size = 0x4, offset = 0x4, fixed_abs, tag = 'smem constant byte address 0x4 - core index']
  #allocation1 [shape = 'u32[144,128]{1,0:T(1,128)}', space=vmem, size = 0x12000, scoped, tag = 'internal scratch']
  %s0 = inlined_call_operand.vmem [shape: bf16[8,144], index: 0, kind: input, shape index: {}]
  %s1 = inlined_call_operand.hbm [shape: bf16[144,2560], index: 1, kind: input, shape index: {}]
  %s2 = inlined_call_operand.hbm [shape: f32[1,2560], index: 2, kind: input, shape index: {}]
  %s3 = inlined_call_operand.hbm [shape: bf16[640,1536], index: 3, kind: input, shape index: {}]
  %s4 = inlined_call_operand.hbm [shape: f32[1,1536], index: 4, kind: input, shape index: {}]
  %s5 = inlined_call_operand.hbm [shape: bf16[384,128], index: 5, kind: input, shape index: {}]
  %s6 = inlined_call_operand.hbm [shape: f32[1,128], index: 6, kind: input, shape index: {}]
  %s7 = inlined_call_operand.vmem [shape: f32[8,128], index: 7, kind: output, shape index: {0}]
  %s8 = inlined_call_operand.vmem [shape: f32[8,384], index: 8, kind: output, shape index: {1}]
  %9 = xla_tuple %s7, %s8
  %s10 = sld [smem:[#allocation0]]
  $region70: #{cnn_forward.1} parent=0
    _
  %s12 = ssub.s32 1, %s10
  %s13 = scalar_select 0, %s12, %s10
  $region1: #{cnn_forward.1} parent=0
    #allocation2 [shape = 'u8[737280]{0}', space=vmem, size = 0xb4000, scoped, tag = 'input window, operand 1, single buffered']
    #allocation3 [shape = 's32[1]{0}', space=sflag, size = 0x4, scoped, tag = 'scoped memory for cnn_forward.1']
    #allocation4 [shape = 'u8[10240]{0}', space=vmem, size = 0x2800, scoped, tag = 'input window, operand 2, single buffered']
    #allocation5 [shape = 's32[1]{0}', space=sflag, size = 0x4, scoped, tag = 'scoped memory for cnn_forward.1']
    #allocation6 [shape = 'u8[1966080]{0}', space=vmem, size = 0x1e0000, scoped, tag = 'input window, operand 3, single buffered']
    #allocation7 [shape = 'u8[6144]{0}', space=vmem, size = 0x1800, scoped, tag = 'input window, operand 4, single buffered']
    #allocation8 [shape = 's32[1]{0}', space=sflag, size = 0x4, scoped, tag = 'scoped memory for cnn_forward.1']
    #allocation9 [shape = 'u8[98304]{0}', space=vmem, size = 0x18000, scoped, tag = 'input window, operand 5, single buffered']
    #allocation10 [shape = 'u8[512]{0}', space=vmem, size = 0x400, scoped, tag = 'input window, operand 6, single buffered']
    #allocation11 [shape = 's32[1]{0}', space=sflag, size = 0x4, scoped, tag = 'scoped memory for cnn_forward.1']
    %14 = vsyncpa [#allocation3], 0
    %15 = vsyncpa [#allocation5], 0
    %16 = vsyncpa [#allocation8], 0
    %17 = vsyncpa [#allocation11], 0
    // Predicated region
    $region2: #{cnn_forward.1} parent=1 // pred_check
      _
    $region3: #{cnn_forward.1} parent=1 // pred_check_branch
      %19 = sbr.rel (0) target = $region5
    $region4: #{cnn_forward.1} parent=1 // pred_region
      _
    $region5: #{cnn_forward.1} parent=1 // pred_fallthru
      _
    // Predicated region
    $region6: #{cnn_forward.1} parent=1 // pred_check
      _
    $region7: #{cnn_forward.1} parent=1 // pred_check_branch
      %21 = sbr.rel (0) target = $region9
    $region8: #{cnn_forward.1} parent=1 // pred_region
      %s23 = ssub.s32 23040, 23040
      %24 = vsyncadd [#allocation3], %s23
      %s25 = sshll.u32 [#allocation2], 4
      %s26 = int_to_ptr.vmem [resolvable:$true] %s25
      %31 = dma.hbm_to_vmem [thread:$0]  %s1, 23040, %s26, [#allocation3], 1280, 1280, 80
    $region9: #{cnn_forward.1} parent=1 // pred_fallthru
      _
    // Predicated region
    $region10: #{cnn_forward.1} parent=1 // pred_check
      _
    $region11: #{cnn_forward.1} parent=1 // pred_check_branch
      %33 = sbr.rel (0) target = $region13
    $region12: #{cnn_forward.1} parent=1 // pred_region
      %s35 = ssub.s32 320, 320
      %36 = vsyncadd [#allocation5], %s35
      %s38 = sshll.u32 [#allocation4], 4
      %s39 = int_to_ptr.vmem [resolvable:$true] %s38
      %41 = dma.hbm_to_vmem [thread:$0]  %s2, 320, %s39, [#allocation5]
    $region13: #{cnn_forward.1} parent=1 // pred_fallthru
      _
    // Predicated region
    $region14: #{cnn_forward.1} parent=1 // pred_check
      _
    $region15: #{cnn_forward.1} parent=1 // pred_check_branch
      %43 = sbr.rel (0) target = $region17
    $region16: #{cnn_forward.1} parent=1 // pred_region
      %s45 = ssub.s32 61440, 61440
      %46 = vsyncadd [#allocation5], %s45
      %s47 = sshll.u32 [#allocation6], 4
      %s48 = int_to_ptr.vmem [resolvable:$true] %s47
      %53 = dma.hbm_to_vmem [thread:$0]  %s3, 61440, %s48, [#allocation5], 768, 768, 48
    $region17: #{cnn_forward.1} parent=1 // pred_fallthru
      _
    // Predicated region
    $region18: #{cnn_forward.1} parent=1 // pred_check
      _
    $region19: #{cnn_forward.1} parent=1 // pred_check_branch
      %55 = sbr.rel (0) target = $region21
    $region20: #{cnn_forward.1} parent=1 // pred_region
      %s57 = ssub.s32 192, 192
      %58 = vsyncadd [#allocation8], %s57
      %s60 = sshll.u32 [#allocation7], 4
      %s61 = int_to_ptr.vmem [resolvable:$true] %s60
      %63 = dma.hbm_to_vmem [thread:$0]  %s4, 192, %s61, [#allocation8]
    $region21: #{cnn_forward.1} parent=1 // pred_fallthru
      _
    // Predicated region
    $region22: #{cnn_forward.1} parent=1 // pred_check
      _
    $region23: #{cnn_forward.1} parent=1 // pred_check_branch
      %65 = sbr.rel (0) target = $region25
    $region24: #{cnn_forward.1} parent=1 // pred_region
      %s67 = ssub.s32 3072, 3072
      %68 = vsyncadd [#allocation8], %s67
      %s69 = sshll.u32 [#allocation9], 4
      %s70 = int_to_ptr.vmem [resolvable:$true] %s69
      %75 = dma.hbm_to_vmem [thread:$0]  %s5, 3072, %s70, [#allocation8], 64, 64, 4
    $region25: #{cnn_forward.1} parent=1 // pred_fallthru
      _
    // Predicated region
    $region26: #{cnn_forward.1} parent=1 // pred_check
      _
    $region27: #{cnn_forward.1} parent=1 // pred_check_branch
      %77 = sbr.rel (0) target = $region29
    $region28: #{cnn_forward.1} parent=1 // pred_region
      %s79 = ssub.s32 16, 16
      %80 = vsyncadd [#allocation11], %s79
      %s82 = sshll.u32 [#allocation10], 4
      %s83 = int_to_ptr.vmem [resolvable:$true] %s82
      %85 = dma.hbm_to_vmem [thread:$0]  %s6, 16, %s83, [#allocation11]
    $region29: #{cnn_forward.1} parent=1 // pred_fallthru
      _
    // Predicated region
    $region30: #{cnn_forward.1} parent=1 // pred_check
      _
    $region31: #{cnn_forward.1} parent=1 // pred_check_branch
      %87 = sbr.rel (0) target = $region33
    $region32: #{cnn_forward.1} parent=1 // pred_region
      %88 = dma.done [#allocation3], 23040
    $region33: #{cnn_forward.1} parent=1 // pred_fallthru
      _
    // Predicated region
    $region34: #{cnn_forward.1} parent=1 // pred_check
      _
    $region35: #{cnn_forward.1} parent=1 // pred_check_branch
      %90 = sbr.rel (0) target = $region37
    $region36: #{cnn_forward.1} parent=1 // pred_region
      %91 = dma.done [#allocation5], 320
    $region37: #{cnn_forward.1} parent=1 // pred_fallthru
      _
    // Predicated region
    $region38: #{cnn_forward.1} parent=1 // pred_check
      _
    $region39: #{cnn_forward.1} parent=1 // pred_check_branch
      %93 = sbr.rel (0) target = $region41
    $region40: #{cnn_forward.1} parent=1 // pred_region
      %94 = dma.done [#allocation5], 61440
    $region41: #{cnn_forward.1} parent=1 // pred_fallthru
      _
    // Predicated region
    $region42: #{cnn_forward.1} parent=1 // pred_check
      _
    $region43: #{cnn_forward.1} parent=1 // pred_check_branch
      %96 = sbr.rel (0) target = $region45
    $region44: #{cnn_forward.1} parent=1 // pred_region
      %97 = dma.done [#allocation8], 192
    $region45: #{cnn_forward.1} parent=1 // pred_fallthru
      _
    // Predicated region
    $region46: #{cnn_forward.1} parent=1 // pred_check
      _
    $region47: #{cnn_forward.1} parent=1 // pred_check_branch
      %99 = sbr.rel (0) target = $region49
    $region48: #{cnn_forward.1} parent=1 // pred_region
      %100 = dma.done [#allocation8], 3072
    $region49: #{cnn_forward.1} parent=1 // pred_fallthru
      _
    // Predicated region
    $region50: #{cnn_forward.1} parent=1 // pred_check
      _
    $region51: #{cnn_forward.1} parent=1 // pred_check_branch
      %102 = sbr.rel (0) target = $region53
    $region52: #{cnn_forward.1} parent=1 // pred_region
      %103 = dma.done [#allocation11], 16
    $region53: #{cnn_forward.1} parent=1 // pred_fallthru
      _
    %v105 = vld [vmem:[%s0] sm:$0xff]
    %v106 = vld [vmem:[#allocation2] sm:$0xff]
    %v107 = vld [vmem:[#allocation2 + $0x8] sm:$0xff]
    %v108 = vld [vmem:[#allocation2 + $0x10] sm:$0xff]
    %v109 = vld [vmem:[#allocation2 + $0x18] sm:$0xff]
    %v110 = vld [vmem:[#allocation2 + $0x20] sm:$0xff]
    %v111 = vld [vmem:[#allocation2 + $0x28] sm:$0xff]
    %v112 = vld [vmem:[#allocation2 + $0x30] sm:$0xff]
    %v113 = vld [vmem:[#allocation2 + $0x38] sm:$0xff]
    %v114 = vld [vmem:[#allocation2 + $0x40] sm:$0xff]
    %v115 = vld [vmem:[#allocation2 + $0x48] sm:$0xff]
    %v116 = vld [vmem:[#allocation2 + $0x50] sm:$0xff]
    %v117 = vld [vmem:[#allocation2 + $0x58] sm:$0xff]
    %v118 = vld [vmem:[#allocation2 + $0x60] sm:$0xff]
    %v119 = vld [vmem:[#allocation2 + $0x68] sm:$0xff]
    %v120 = vld [vmem:[#allocation2 + $0x70] sm:$0xff]
    %v121 = vld [vmem:[#allocation2 + $0x78] sm:$0xff]
    %v122 = vld [vmem:[#allocation2 + $0x80] sm:$0xff]
    %v123 = vld [vmem:[#allocation2 + $0x88] sm:$0xff]
    %v124 = vld [vmem:[#allocation2 + $0x90] sm:$0xff]
    %v125 = vld [vmem:[#allocation2 + $0x98] sm:$0xff]
    %v126 = vld [vmem:[#allocation2 + $0xa0] sm:$0xff]
    %v127 = vld [vmem:[#allocation2 + $0xa8] sm:$0xff]
    %v128 = vld [vmem:[#allocation2 + $0xb0] sm:$0xff]
    %v129 = vld [vmem:[#allocation2 + $0xb8] sm:$0xff]
    %v130 = vld [vmem:[#allocation2 + $0xc0] sm:$0xff]
    %v131 = vld [vmem:[#allocation2 + $0xc8] sm:$0xff]
    %v132 = vld [vmem:[#allocation2 + $0xd0] sm:$0xff]
    %v133 = vld [vmem:[#allocation2 + $0xd8] sm:$0xff]
    %v134 = vld [vmem:[#allocation2 + $0xe0] sm:$0xff]
    %v135 = vld [vmem:[#allocation2 + $0xe8] sm:$0xff]
    %v136 = vld [vmem:[#allocation2 + $0xf0] sm:$0xff]
    %v137 = vld [vmem:[#allocation2 + $0xf8] sm:$0xff]
    %v138 = vld [vmem:[#allocation2 + $0x100] sm:$0xff]
    %v139 = vld [vmem:[#allocation2 + $0x108] sm:$0xff]
    %v140 = vld [vmem:[#allocation2 + $0x110] sm:$0xff]
    %v141 = vld [vmem:[#allocation2 + $0x118] sm:$0xff]
    %v142 = vld [vmem:[#allocation2 + $0x120] sm:$0xff]
    %v143 = vld [vmem:[#allocation2 + $0x128] sm:$0xff]
    %v144 = vld [vmem:[#allocation2 + $0x130] sm:$0xff]
    %v145 = vld [vmem:[#allocation2 + $0x138] sm:$0xff]
    %v146 = vld [vmem:[#allocation2 + $0x140] sm:$0xff]
    %v147 = vld [vmem:[#allocation2 + $0x148] sm:$0xff]
    %v148 = vld [vmem:[#allocation2 + $0x150] sm:$0xff]
    %v149 = vld [vmem:[#allocation2 + $0x158] sm:$0xff]
    %v150 = vld [vmem:[#allocation2 + $0x160] sm:$0xff]
    %v151 = vld [vmem:[#allocation2 + $0x168] sm:$0xff]
    %v152 = vld [vmem:[#allocation2 + $0x170] sm:$0xff]
    %v153 = vld [vmem:[#allocation2 + $0x178] sm:$0xff]
    %v154 = vld [vmem:[#allocation2 + $0x180] sm:$0xff]
    %v155 = vld [vmem:[#allocation2 + $0x188] sm:$0xff]
    %v156 = vld [vmem:[#allocation2 + $0x190] sm:$0xff]
    %v157 = vld [vmem:[#allocation2 + $0x198] sm:$0xff]
    %v158 = vld [vmem:[#allocation2 + $0x1a0] sm:$0xff]
    %v159 = vld [vmem:[#allocation2 + $0x1a8] sm:$0xff]
    %v160 = vld [vmem:[#allocation2 + $0x1b0] sm:$0xff]
    %v161 = vld [vmem:[#allocation2 + $0x1b8] sm:$0xff]
    %v162 = vld [vmem:[#allocation2 + $0x1c0] sm:$0xff]
    %v163 = vld [vmem:[#allocation2 + $0x1c8] sm:$0xff]
    %v164 = vld [vmem:[#allocation2 + $0x1d0] sm:$0xff]
    %v165 = vld [vmem:[#allocation2 + $0x1d8] sm:$0xff]
    %v166 = vld [vmem:[#allocation2 + $0x1e0] sm:$0xff]
    %v167 = vld [vmem:[#allocation2 + $0x1e8] sm:$0xff]
    %v168 = vld [vmem:[#allocation2 + $0x1f0] sm:$0xff]
    %v169 = vld [vmem:[#allocation2 + $0x1f8] sm:$0xff]
    %v170 = vld [vmem:[#allocation2 + $0x200] sm:$0xff]
    %v171 = vld [vmem:[#allocation2 + $0x208] sm:$0xff]
    %v172 = vld [vmem:[#allocation2 + $0x210] sm:$0xff]
    %v173 = vld [vmem:[#allocation2 + $0x218] sm:$0xff]
    %v174 = vld [vmem:[#allocation2 + $0x220] sm:$0xff]
    %v175 = vld [vmem:[#allocation2 + $0x228] sm:$0xff]
    %v176 = vld [vmem:[#allocation2 + $0x230] sm:$0xff]
    %v177 = vld [vmem:[#allocation2 + $0x238] sm:$0xff]
    %v178 = vld [vmem:[#allocation2 + $0x240] sm:$0xff]
    %v179 = vld [vmem:[#allocation2 + $0x248] sm:$0xff]
    %v180 = vld [vmem:[#allocation2 + $0x250] sm:$0xff]
    %v181 = vld [vmem:[#allocation2 + $0x258] sm:$0xff]
    %v182 = vld [vmem:[#allocation2 + $0x260] sm:$0xff]
    %v183 = vld [vmem:[#allocation2 + $0x268] sm:$0xff]
    %v184 = vld [vmem:[#allocation2 + $0x270] sm:$0xff]
    %v185 = vld [vmem:[#allocation2 + $0x278] sm:$0xff]
    %v186 = vld [vmem:[#allocation2 + $0x280] sm:$0xff]
    %v187 = vld [vmem:[#allocation2 + $0x288] sm:$0xff]
    %v188 = vld [vmem:[#allocation2 + $0x290] sm:$0xff]
    %v189 = vld [vmem:[#allocation2 + $0x298] sm:$0xff]
    %v190 = vld [vmem:[#allocation2 + $0x2a0] sm:$0xff]
    %v191 = vld [vmem:[#allocation2 + $0x2a8] sm:$0xff]
    %v192 = vld [vmem:[#allocation2 + $0x2b0] sm:$0xff]
    %v193 = vld [vmem:[#allocation2 + $0x2b8] sm:$0xff]
    %v194 = vld [vmem:[#allocation2 + $0x2c0] sm:$0xff]
    %v195 = vld [vmem:[#allocation2 + $0x2c8] sm:$0xff]
    %v196 = vld [vmem:[#allocation2 + $0x2d0] sm:$0xff]
    %v197 = vld [vmem:[#allocation2 + $0x2d8] sm:$0xff]
    %v198 = vld [vmem:[#allocation2 + $0x2e0] sm:$0xff]
    %v199 = vld [vmem:[#allocation2 + $0x2e8] sm:$0xff]
    %v200 = vld [vmem:[#allocation2 + $0x2f0] sm:$0xff]
    %v201 = vld [vmem:[#allocation2 + $0x2f8] sm:$0xff]
    %v202 = vld [vmem:[#allocation2 + $0x300] sm:$0xff]
    %v203 = vld [vmem:[#allocation2 + $0x308] sm:$0xff]
    %v204 = vld [vmem:[#allocation2 + $0x310] sm:$0xff]
    %v205 = vld [vmem:[#allocation2 + $0x318] sm:$0xff]
    %v206 = vld [vmem:[#allocation2 + $0x320] sm:$0xff]
    %v207 = vld [vmem:[#allocation2 + $0x328] sm:$0xff]
    %v208 = vld [vmem:[#allocation2 + $0x330] sm:$0xff]
    %v209 = vld [vmem:[#allocation2 + $0x338] sm:$0xff]
    %v210 = vld [vmem:[#allocation2 + $0x340] sm:$0xff]
    %v211 = vld [vmem:[#allocation2 + $0x348] sm:$0xff]
    %v212 = vld [vmem:[#allocation2 + $0x350] sm:$0xff]
    %v213 = vld [vmem:[#allocation2 + $0x358] sm:$0xff]
    %v214 = vld [vmem:[#allocation2 + $0x360] sm:$0xff]
    %v215 = vld [vmem:[#allocation2 + $0x368] sm:$0xff]
    %v216 = vld [vmem:[#allocation2 + $0x370] sm:$0xff]
    %v217 = vld [vmem:[#allocation2 + $0x378] sm:$0xff]
    %v218 = vld [vmem:[#allocation2 + $0x380] sm:$0xff]
    %v219 = vld [vmem:[#allocation2 + $0x388] sm:$0xff]
    %v220 = vld [vmem:[#allocation2 + $0x390] sm:$0xff]
    %v221 = vld [vmem:[#allocation2 + $0x398] sm:$0xff]
    %v222 = vld [vmem:[#allocation2 + $0x3a0] sm:$0xff]
    %v223 = vld [vmem:[#allocation2 + $0x3a8] sm:$0xff]
    %v224 = vld [vmem:[#allocation2 + $0x3b0] sm:$0xff]
    %v225 = vld [vmem:[#allocation2 + $0x3b8] sm:$0xff]
    %v226 = vld [vmem:[#allocation2 + $0x3c0] sm:$0xff]
    %v227 = vld [vmem:[#allocation2 + $0x3c8] sm:$0xff]
    %v228 = vld [vmem:[#allocation2 + $0x3d0] sm:$0xff]
    %v229 = vld [vmem:[#allocation2 + $0x3d8] sm:$0xff]
    %v230 = vld [vmem:[#allocation2 + $0x3e0] sm:$0xff]
    %v231 = vld [vmem:[#allocation2 + $0x3e8] sm:$0xff]
    %v232 = vld [vmem:[#allocation2 + $0x3f0] sm:$0xff]
    %v233 = vld [vmem:[#allocation2 + $0x3f8] sm:$0xff]
    %v234 = vld [vmem:[#allocation2 + $0x400] sm:$0xff]
    %v235 = vld [vmem:[#allocation2 + $0x408] sm:$0xff]
    %v236 = vld [vmem:[#allocation2 + $0x410] sm:$0xff]
    %v237 = vld [vmem:[#allocation2 + $0x418] sm:$0xff]
    %v238 = vld [vmem:[#allocation2 + $0x420] sm:$0xff]
    %v239 = vld [vmem:[#allocation2 + $0x428] sm:$0xff]
    %v240 = vld [vmem:[#allocation2 + $0x430] sm:$0xff]
    %v241 = vld [vmem:[#allocation2 + $0x438] sm:$0xff]
    %v242 = vld [vmem:[#allocation2 + $0x440] sm:$0xff]
    %v243 = vld [vmem:[#allocation2 + $0x448] sm:$0xff]
    %v244 = vld [vmem:[#allocation2 + $0x450] sm:$0xff]
    %v245 = vld [vmem:[#allocation2 + $0x458] sm:$0xff]
    %v246 = vld [vmem:[#allocation2 + $0x460] sm:$0xff]
    %v247 = vld [vmem:[#allocation2 + $0x468] sm:$0xff]
    %v248 = vld [vmem:[#allocation2 + $0x470] sm:$0xff]
    %v249 = vld [vmem:[#allocation2 + $0x478] sm:$0xff]
    %v250 = vld [vmem:[#allocation2 + $0x480] sm:$0xff]
    %v251 = vld [vmem:[#allocation2 + $0x488] sm:$0xff]
    %v252 = vld [vmem:[#allocation2 + $0x490] sm:$0xff]
    %v253 = vld [vmem:[#allocation2 + $0x498] sm:$0xff]
    %v254 = vld [vmem:[#allocation2 + $0x4a0] sm:$0xff]
    %v255 = vld [vmem:[#allocation2 + $0x4a8] sm:$0xff]
    %v256 = vld [vmem:[#allocation2 + $0x4b0] sm:$0xff]
    %v257 = vld [vmem:[#allocation2 + $0x4b8] sm:$0xff]
    %v258 = vld [vmem:[#allocation2 + $0x4c0] sm:$0xff]
    %v259 = vld [vmem:[#allocation2 + $0x4c8] sm:$0xff]
    %v260 = vld [vmem:[#allocation2 + $0x4d0] sm:$0xff]
    %v261 = vld [vmem:[#allocation2 + $0x4d8] sm:$0xff]
    %v262 = vld [vmem:[#allocation2 + $0x4e0] sm:$0xff]
    %v263 = vld [vmem:[#allocation2 + $0x4e8] sm:$0xff]
    %v264 = vld [vmem:[#allocation2 + $0x4f0] sm:$0xff]
    %v265 = vld [vmem:[#allocation2 + $0x4f8] sm:$0xff]
    %v266 = vld [vmem:[#allocation2 + $0x500] sm:$0xff]
    %v267 = vld [vmem:[#allocation2 + $0x508] sm:$0xff]
    %v268 = vld [vmem:[#allocation2 + $0x510] sm:$0xff]
    %v269 = vld [vmem:[#allocation2 + $0x518] sm:$0xff]
    %v270 = vld [vmem:[#allocation2 + $0x520] sm:$0xff]
    %v271 = vld [vmem:[#allocation2 + $0x528] sm:$0xff]
    %v272 = vld [vmem:[#allocation2 + $0x530] sm:$0xff]
    %v273 = vld [vmem:[#allocation2 + $0x538] sm:$0xff]
    %v274 = vld [vmem:[#allocation2 + $0x540] sm:$0xff]
    %v275 = vld [vmem:[#allocation2 + $0x548] sm:$0xff]
    %v276 = vld [vmem:[#allocation2 + $0x550] sm:$0xff]
    %v277 = vld [vmem:[#allocation2 + $0x558] sm:$0xff]
    %v278 = vld [vmem:[#allocation2 + $0x560] sm:$0xff]
    %v279 = vld [vmem:[#allocation2 + $0x568] sm:$0xff]
    %v280 = vld [vmem:[#allocation2 + $0x570] sm:$0xff]
    %v281 = vld [vmem:[#allocation2 + $0x578] sm:$0xff]
    %v282 = vld [vmem:[#allocation2 + $0x580] sm:$0xff]
    %v283 = vld [vmem:[#allocation2 + $0x588] sm:$0xff]
    %v284 = vld [vmem:[#allocation2 + $0x590] sm:$0xff]
    %v285 = vld [vmem:[#allocation2 + $0x598] sm:$0xff]
    %v286 = vld [vmem:[#allocation4] sm:$0xff]
    %v287 = vld [vmem:[#allocation4 + $0x8] sm:$0xff]
    %v288 = vld [vmem:[#allocation4 + $0x10] sm:$0xf]
    %v292 = vlaneseq
    %v293 = vshrl.u32 %v292, 7
    %v294 = vsub.s32 0, %v293
    %v295 = vrot.slane %v286, %v294
    %v296 = vlaneseq
    %v297 = vshrl.u32 %v296, 7
    %v298 = vsub.s32 1, %v297
    %v299 = vrot.slane %v286, %v298
    %v300 = vlaneseq
    %v301 = vshrl.u32 %v300, 7
    %v302 = vsub.s32 2, %v301
    %v303 = vrot.slane %v286, %v302
    %v304 = vlaneseq
    %v305 = vshrl.u32 %v304, 7
    %v306 = vsub.s32 3, %v305
    %v307 = vrot.slane %v286, %v306
    %v308 = vlaneseq
    %v309 = vshrl.u32 %v308, 7
    %v310 = vsub.s32 4, %v309
    %v311 = vrot.slane %v286, %v310
    %v312 = vlaneseq
    %v313 = vshrl.u32 %v312, 7
    %v314 = vsub.s32 5, %v313
    %v315 = vrot.slane %v286, %v314
    %v316 = vlaneseq
    %v317 = vshrl.u32 %v316, 7
    %v318 = vsub.s32 6, %v317
    %v319 = vrot.slane %v286, %v318
    %v320 = vlaneseq
    %v321 = vshrl.u32 %v320, 7
    %v322 = vsub.s32 7, %v321
    %v323 = vrot.slane %v286, %v322
    %v324 = vlaneseq
    %v325 = vshrl.u32 %v324, 7
    %v326 = vsub.s32 0, %v325
    %v327 = vrot.slane %v287, %v326
    %v328 = vlaneseq
    %v329 = vshrl.u32 %v328, 7
    %v330 = vsub.s32 1, %v329
    %v331 = vrot.slane %v287, %v330
    %v332 = vlaneseq
    %v333 = vshrl.u32 %v332, 7
    %v334 = vsub.s32 2, %v333
    %v335 = vrot.slane %v287, %v334
    %v336 = vlaneseq
    %v337 = vshrl.u32 %v336, 7
    %v338 = vsub.s32 3, %v337
    %v339 = vrot.slane %v287, %v338
    %v340 = vlaneseq
    %v341 = vshrl.u32 %v340, 7
    %v342 = vsub.s32 4, %v341
    %v343 = vrot.slane %v287, %v342
    %v344 = vlaneseq
    %v345 = vshrl.u32 %v344, 7
    %v346 = vsub.s32 5, %v345
    %v347 = vrot.slane %v287, %v346
    %v348 = vlaneseq
    %v349 = vshrl.u32 %v348, 7
    %v350 = vsub.s32 6, %v349
    %v351 = vrot.slane %v287, %v350
    %v352 = vlaneseq
    %v353 = vshrl.u32 %v352, 7
    %v354 = vsub.s32 7, %v353
    %v355 = vrot.slane %v287, %v354
    %v356 = vlaneseq
    %v357 = vshrl.u32 %v356, 7
    %v358 = vsub.s32 0, %v357
    %v359 = vrot.slane %v288, %v358
    %v360 = vlaneseq
    %v361 = vshrl.u32 %v360, 7
    %v362 = vsub.s32 1, %v361
    %v363 = vrot.slane %v288, %v362
    %v364 = vlaneseq
    %v365 = vshrl.u32 %v364, 7
    %v366 = vsub.s32 2, %v365
    %v367 = vrot.slane %v288, %v366
    %v368 = vlaneseq
    %v369 = vshrl.u32 %v368, 7
    %v370 = vsub.s32 3, %v369
    %v371 = vrot.slane %v288, %v370
    %v393 = vunpack.c.l.b16 %v105
    %v394 = vunpack.c.h.b16 %v105
    %v395 = vpack.c.b16 %v393, %v393
    %v396 = vpack.c.b16 %v394, %v394
    %v578 = vunpack.c.l.b16 %v106
    %v579 = vunpack.c.h.b16 %v106
    %v580 = vunpack.c.l.b16 %v107
    %v581 = vunpack.c.h.b16 %v107
    %v582 = vunpack.c.l.b16 %v108
    %v583 = vunpack.c.h.b16 %v108
    %v584 = vunpack.c.l.b16 %v109
    %v585 = vunpack.c.h.b16 %v109
    %v586 = vunpack.c.l.b16 %v110
    %v587 = vunpack.c.h.b16 %v110
    %v588 = vunpack.c.l.b16 %v111
    %v589 = vunpack.c.h.b16 %v111
    %v590 = vunpack.c.l.b16 %v112
    %v591 = vunpack.c.h.b16 %v112
    %v592 = vunpack.c.l.b16 %v113
    %v593 = vunpack.c.h.b16 %v113
    %v594 = vunpack.c.l.b16 %v114
    %v595 = vunpack.c.h.b16 %v114
    %v596 = vunpack.c.l.b16 %v115
    %v597 = vunpack.c.h.b16 %v115
    %v598 = vunpack.c.l.b16 %v116
    %v599 = vunpack.c.h.b16 %v116
    %v600 = vunpack.c.l.b16 %v117
    %v601 = vunpack.c.h.b16 %v117
    %v602 = vunpack.c.l.b16 %v118
    %v603 = vunpack.c.h.b16 %v118
    %v604 = vunpack.c.l.b16 %v119
    %v605 = vunpack.c.h.b16 %v119
    %v606 = vunpack.c.l.b16 %v120
    %v607 = vunpack.c.h.b16 %v120
    %v608 = vunpack.c.l.b16 %v121
    %v609 = vunpack.c.h.b16 %v121
    %v610 = vunpack.c.l.b16 %v122
    %v611 = vunpack.c.h.b16 %v122
    %v612 = vunpack.c.l.b16 %v123
    %v613 = vunpack.c.h.b16 %v123
    %v614 = vunpack.c.l.b16 %v124
    %v615 = vunpack.c.h.b16 %v124
    %v616 = vunpack.c.l.b16 %v125
    %v617 = vunpack.c.h.b16 %v125
    %v618 = vunpack.c.l.b16 %v126
    %v619 = vunpack.c.h.b16 %v126
    %v620 = vunpack.c.l.b16 %v127
    %v621 = vunpack.c.h.b16 %v127
    %v622 = vunpack.c.l.b16 %v128
    %v623 = vunpack.c.h.b16 %v128
    %v624 = vunpack.c.l.b16 %v129
    %v625 = vunpack.c.h.b16 %v129
    %v626 = vunpack.c.l.b16 %v130
    %v627 = vunpack.c.h.b16 %v130
    %v628 = vunpack.c.l.b16 %v131
    %v629 = vunpack.c.h.b16 %v131
    %v630 = vunpack.c.l.b16 %v132
    %v631 = vunpack.c.h.b16 %v132
    %v632 = vunpack.c.l.b16 %v133
    %v633 = vunpack.c.h.b16 %v133
    %v634 = vunpack.c.l.b16 %v134
    %v635 = vunpack.c.h.b16 %v134
    %v636 = vunpack.c.l.b16 %v135
    %v637 = vunpack.c.h.b16 %v135
    %v638 = vunpack.c.l.b16 %v136
    %v639 = vunpack.c.h.b16 %v136
    %v640 = vunpack.c.l.b16 %v137
    %v641 = vunpack.c.h.b16 %v137
    %v642 = vunpack.c.l.b16 %v138
    %v643 = vunpack.c.h.b16 %v138
    %v644 = vunpack.c.l.b16 %v139
    %v645 = vunpack.c.h.b16 %v139
    %v646 = vunpack.c.l.b16 %v140
    %v647 = vunpack.c.h.b16 %v140
    %v648 = vunpack.c.l.b16 %v141
    %v649 = vunpack.c.h.b16 %v141
    %v650 = vunpack.c.l.b16 %v142
    %v651 = vunpack.c.h.b16 %v142
    %v652 = vunpack.c.l.b16 %v143
    %v653 = vunpack.c.h.b16 %v143
    %v654 = vunpack.c.l.b16 %v144
    %v655 = vunpack.c.h.b16 %v144
    %v656 = vunpack.c.l.b16 %v145
    %v657 = vunpack.c.h.b16 %v145
    %v658 = vunpack.c.l.b16 %v146
    %v659 = vunpack.c.h.b16 %v146
    %v660 = vunpack.c.l.b16 %v147
    %v661 = vunpack.c.h.b16 %v147
    %v662 = vunpack.c.l.b16 %v148
    %v663 = vunpack.c.h.b16 %v148
    %v664 = vunpack.c.l.b16 %v149
    %v665 = vunpack.c.h.b16 %v149
    %v666 = vunpack.c.l.b16 %v150
    %v667 = vunpack.c.h.b16 %v150
    %v668 = vunpack.c.l.b16 %v151
    %v669 = vunpack.c.h.b16 %v151
    %v670 = vunpack.c.l.b16 %v152
    %v671 = vunpack.c.h.b16 %v152
    %v672 = vunpack.c.l.b16 %v153
    %v673 = vunpack.c.h.b16 %v153
    %v674 = vunpack.c.l.b16 %v154
    %v675 = vunpack.c.h.b16 %v154
    %v676 = vunpack.c.l.b16 %v155
    %v677 = vunpack.c.h.b16 %v155
    %v678 = vunpack.c.l.b16 %v156
    %v679 = vunpack.c.h.b16 %v156
    %v680 = vunpack.c.l.b16 %v157
    %v681 = vunpack.c.h.b16 %v157
    %v682 = vunpack.c.l.b16 %v158
    %v683 = vunpack.c.h.b16 %v158
    %v684 = vunpack.c.l.b16 %v159
    %v685 = vunpack.c.h.b16 %v159
    %v686 = vunpack.c.l.b16 %v160
    %v687 = vunpack.c.h.b16 %v160
    %v688 = vunpack.c.l.b16 %v161
    %v689 = vunpack.c.h.b16 %v161
    %v690 = vunpack.c.l.b16 %v162
    %v691 = vunpack.c.h.b16 %v162
    %v692 = vunpack.c.l.b16 %v163
    %v693 = vunpack.c.h.b16 %v163
    %v694 = vunpack.c.l.b16 %v164
    %v695 = vunpack.c.h.b16 %v164
    %v696 = vunpack.c.l.b16 %v165
    %v697 = vunpack.c.h.b16 %v165
    %v698 = vunpack.c.l.b16 %v166
    %v699 = vunpack.c.h.b16 %v166
    %v700 = vunpack.c.l.b16 %v167
    %v701 = vunpack.c.h.b16 %v167
    %v702 = vunpack.c.l.b16 %v168
    %v703 = vunpack.c.h.b16 %v168
    %v704 = vunpack.c.l.b16 %v169
    %v705 = vunpack.c.h.b16 %v169
    %v706 = vunpack.c.l.b16 %v170
    %v707 = vunpack.c.h.b16 %v170
    %v708 = vunpack.c.l.b16 %v171
    %v709 = vunpack.c.h.b16 %v171
    %v710 = vunpack.c.l.b16 %v172
    %v711 = vunpack.c.h.b16 %v172
    %v712 = vunpack.c.l.b16 %v173
    %v713 = vunpack.c.h.b16 %v173
    %v714 = vunpack.c.l.b16 %v174
    %v715 = vunpack.c.h.b16 %v174
    %v716 = vunpack.c.l.b16 %v175
    %v717 = vunpack.c.h.b16 %v175
    %v718 = vunpack.c.l.b16 %v176
    %v719 = vunpack.c.h.b16 %v176
    %v720 = vunpack.c.l.b16 %v177
    %v721 = vunpack.c.h.b16 %v177
    %v722 = vunpack.c.l.b16 %v178
    %v723 = vunpack.c.h.b16 %v178
    %v724 = vunpack.c.l.b16 %v179
    %v725 = vunpack.c.h.b16 %v179
    %v726 = vunpack.c.l.b16 %v180
    %v727 = vunpack.c.h.b16 %v180
    %v728 = vunpack.c.l.b16 %v181
    %v729 = vunpack.c.h.b16 %v181
    %v730 = vunpack.c.l.b16 %v182
    %v731 = vunpack.c.h.b16 %v182
    %v732 = vunpack.c.l.b16 %v183
    %v733 = vunpack.c.h.b16 %v183
    %v734 = vunpack.c.l.b16 %v184
    %v735 = vunpack.c.h.b16 %v184
    %v736 = vunpack.c.l.b16 %v185
    %v737 = vunpack.c.h.b16 %v185
    %v738 = vunpack.c.l.b16 %v186
    %v739 = vunpack.c.h.b16 %v186
    %v740 = vunpack.c.l.b16 %v187
    %v741 = vunpack.c.h.b16 %v187
    %v742 = vunpack.c.l.b16 %v188
    %v743 = vunpack.c.h.b16 %v188
    %v744 = vunpack.c.l.b16 %v189
    %v745 = vunpack.c.h.b16 %v189
    %v746 = vunpack.c.l.b16 %v190
    %v747 = vunpack.c.h.b16 %v190
    %v748 = vunpack.c.l.b16 %v191
    %v749 = vunpack.c.h.b16 %v191
    %v750 = vunpack.c.l.b16 %v192
    %v751 = vunpack.c.h.b16 %v192
    %v752 = vunpack.c.l.b16 %v193
    %v753 = vunpack.c.h.b16 %v193
    %v754 = vunpack.c.l.b16 %v194
    %v755 = vunpack.c.h.b16 %v194
    %v756 = vunpack.c.l.b16 %v195
    %v757 = vunpack.c.h.b16 %v195
    %v758 = vunpack.c.l.b16 %v196
    %v759 = vunpack.c.h.b16 %v196
    %v760 = vunpack.c.l.b16 %v197
    %v761 = vunpack.c.h.b16 %v197
    %v762 = vunpack.c.l.b16 %v198
    %v763 = vunpack.c.h.b16 %v198
    %v764 = vunpack.c.l.b16 %v199
    %v765 = vunpack.c.h.b16 %v199
    %v766 = vunpack.c.l.b16 %v200
    %v767 = vunpack.c.h.b16 %v200
    %v768 = vunpack.c.l.b16 %v201
    %v769 = vunpack.c.h.b16 %v201
    %v770 = vunpack.c.l.b16 %v202
    %v771 = vunpack.c.h.b16 %v202
    %v772 = vunpack.c.l.b16 %v203
    %v773 = vunpack.c.h.b16 %v203
    %v774 = vunpack.c.l.b16 %v204
    %v775 = vunpack.c.h.b16 %v204
    %v776 = vunpack.c.l.b16 %v205
    %v777 = vunpack.c.h.b16 %v205
    %v778 = vunpack.c.l.b16 %v206
    %v779 = vunpack.c.h.b16 %v206
    %v780 = vunpack.c.l.b16 %v207
    %v781 = vunpack.c.h.b16 %v207
    %v782 = vunpack.c.l.b16 %v208
    %v783 = vunpack.c.h.b16 %v208
    %v784 = vunpack.c.l.b16 %v209
    %v785 = vunpack.c.h.b16 %v209
    %v786 = vunpack.c.l.b16 %v210
    %v787 = vunpack.c.h.b16 %v210
    %v788 = vunpack.c.l.b16 %v211
    %v789 = vunpack.c.h.b16 %v211
    %v790 = vunpack.c.l.b16 %v212
    %v791 = vunpack.c.h.b16 %v212
    %v792 = vunpack.c.l.b16 %v213
    %v793 = vunpack.c.h.b16 %v213
    %v794 = vunpack.c.l.b16 %v214
    %v795 = vunpack.c.h.b16 %v214
    %v796 = vunpack.c.l.b16 %v215
    %v797 = vunpack.c.h.b16 %v215
    %v798 = vunpack.c.l.b16 %v216
    %v799 = vunpack.c.h.b16 %v216
    %v800 = vunpack.c.l.b16 %v217
    %v801 = vunpack.c.h.b16 %v217
    %v802 = vunpack.c.l.b16 %v218
    %v803 = vunpack.c.h.b16 %v218
    %v804 = vunpack.c.l.b16 %v219
    %v805 = vunpack.c.h.b16 %v219
    %v806 = vunpack.c.l.b16 %v220
    %v807 = vunpack.c.h.b16 %v220
    %v808 = vunpack.c.l.b16 %v221
    %v809 = vunpack.c.h.b16 %v221
    %v810 = vunpack.c.l.b16 %v222
    %v811 = vunpack.c.h.b16 %v222
    %v812 = vunpack.c.l.b16 %v223
    %v813 = vunpack.c.h.b16 %v223
    %v814 = vunpack.c.l.b16 %v224
    %v815 = vunpack.c.h.b16 %v224
    %v816 = vunpack.c.l.b16 %v225
    %v817 = vunpack.c.h.b16 %v225
    %v818 = vunpack.c.l.b16 %v226
    %v819 = vunpack.c.h.b16 %v226
    %v820 = vunpack.c.l.b16 %v227
    %v821 = vunpack.c.h.b16 %v227
    %v822 = vunpack.c.l.b16 %v228
    %v823 = vunpack.c.h.b16 %v228
    %v824 = vunpack.c.l.b16 %v229
    %v825 = vunpack.c.h.b16 %v229
    %v826 = vunpack.c.l.b16 %v230
    %v827 = vunpack.c.h.b16 %v230
    %v828 = vunpack.c.l.b16 %v231
    %v829 = vunpack.c.h.b16 %v231
    %v830 = vunpack.c.l.b16 %v232
    %v831 = vunpack.c.h.b16 %v232
    %v832 = vunpack.c.l.b16 %v233
    %v833 = vunpack.c.h.b16 %v233
    %v834 = vunpack.c.l.b16 %v234
    %v835 = vunpack.c.h.b16 %v234
    %v836 = vunpack.c.l.b16 %v235
    %v837 = vunpack.c.h.b16 %v235
    %v838 = vunpack.c.l.b16 %v236
    %v839 = vunpack.c.h.b16 %v236
    %v840 = vunpack.c.l.b16 %v237
    %v841 = vunpack.c.h.b16 %v237
    %v842 = vunpack.c.l.b16 %v238
    %v843 = vunpack.c.h.b16 %v238
    %v844 = vunpack.c.l.b16 %v239
    %v845 = vunpack.c.h.b16 %v239
    %v846 = vunpack.c.l.b16 %v240
    %v847 = vunpack.c.h.b16 %v240
    %v848 = vunpack.c.l.b16 %v241
    %v849 = vunpack.c.h.b16 %v241
    %v850 = vunpack.c.l.b16 %v242
    %v851 = vunpack.c.h.b16 %v242
    %v852 = vunpack.c.l.b16 %v243
    %v853 = vunpack.c.h.b16 %v243
    %v854 = vunpack.c.l.b16 %v244
    %v855 = vunpack.c.h.b16 %v244
    %v856 = vunpack.c.l.b16 %v245
    %v857 = vunpack.c.h.b16 %v245
    %v858 = vunpack.c.l.b16 %v246
    %v859 = vunpack.c.h.b16 %v246
    %v860 = vunpack.c.l.b16 %v247
    %v861 = vunpack.c.h.b16 %v247
    %v862 = vunpack.c.l.b16 %v248
    %v863 = vunpack.c.h.b16 %v248
    %v864 = vunpack.c.l.b16 %v249
    %v865 = vunpack.c.h.b16 %v249
    %v866 = vunpack.c.l.b16 %v250
    %v867 = vunpack.c.h.b16 %v250
    %v868 = vunpack.c.l.b16 %v251
    %v869 = vunpack.c.h.b16 %v251
    %v870 = vunpack.c.l.b16 %v252
    %v871 = vunpack.c.h.b16 %v252
    %v872 = vunpack.c.l.b16 %v253
    %v873 = vunpack.c.h.b16 %v253
    %v874 = vunpack.c.l.b16 %v254
    %v875 = vunpack.c.h.b16 %v254
    %v876 = vunpack.c.l.b16 %v255
    %v877 = vunpack.c.h.b16 %v255
    %v878 = vunpack.c.l.b16 %v256
    %v879 = vunpack.c.h.b16 %v256
    %v880 = vunpack.c.l.b16 %v257
    %v881 = vunpack.c.h.b16 %v257
    %v882 = vunpack.c.l.b16 %v258
    %v883 = vunpack.c.h.b16 %v258
    %v884 = vunpack.c.l.b16 %v259
    %v885 = vunpack.c.h.b16 %v259
    %v886 = vunpack.c.l.b16 %v260
    %v887 = vunpack.c.h.b16 %v260
    %v888 = vunpack.c.l.b16 %v261
    %v889 = vunpack.c.h.b16 %v261
    %v890 = vunpack.c.l.b16 %v262
    %v891 = vunpack.c.h.b16 %v262
    %v892 = vunpack.c.l.b16 %v263
    %v893 = vunpack.c.h.b16 %v263
    %v894 = vunpack.c.l.b16 %v264
    %v895 = vunpack.c.h.b16 %v264
    %v896 = vunpack.c.l.b16 %v265
    %v897 = vunpack.c.h.b16 %v265
    %v898 = vunpack.c.l.b16 %v266
    %v899 = vunpack.c.h.b16 %v266
    %v900 = vunpack.c.l.b16 %v267
    %v901 = vunpack.c.h.b16 %v267
    %v902 = vunpack.c.l.b16 %v268
    %v903 = vunpack.c.h.b16 %v268
    %v904 = vunpack.c.l.b16 %v269
    %v905 = vunpack.c.h.b16 %v269
    %v906 = vunpack.c.l.b16 %v270
    %v907 = vunpack.c.h.b16 %v270
    %v908 = vunpack.c.l.b16 %v271
    %v909 = vunpack.c.h.b16 %v271
    %v910 = vunpack.c.l.b16 %v272
    %v911 = vunpack.c.h.b16 %v272
    %v912 = vunpack.c.l.b16 %v273
    %v913 = vunpack.c.h.b16 %v273
    %v914 = vunpack.c.l.b16 %v274
    %v915 = vunpack.c.h.b16 %v274
    %v916 = vunpack.c.l.b16 %v275
    %v917 = vunpack.c.h.b16 %v275
    %v918 = vunpack.c.l.b16 %v276
    %v919 = vunpack.c.h.b16 %v276
    %v920 = vunpack.c.l.b16 %v277
    %v921 = vunpack.c.h.b16 %v277
    %v922 = vunpack.c.l.b16 %v278
    %v923 = vunpack.c.h.b16 %v278
    %v924 = vunpack.c.l.b16 %v279
    %v925 = vunpack.c.h.b16 %v279
    %v926 = vunpack.c.l.b16 %v280
    %v927 = vunpack.c.h.b16 %v280
    %v928 = vunpack.c.l.b16 %v281
    %v929 = vunpack.c.h.b16 %v281
    %v930 = vunpack.c.l.b16 %v282
    %v931 = vunpack.c.h.b16 %v282
    %v932 = vunpack.c.l.b16 %v283
    %v933 = vunpack.c.h.b16 %v283
    %v934 = vunpack.c.l.b16 %v284
    %v935 = vunpack.c.h.b16 %v284
    %v936 = vunpack.c.l.b16 %v285
    %v937 = vunpack.c.h.b16 %v285
    %v938 = vpack.c.b16 %v598, %v578
    %v939 = vpack.c.b16 %v599, %v579
    %v940 = vpack.c.b16 %v600, %v580
    %v941 = vpack.c.b16 %v601, %v581
    %v942 = vpack.c.b16 %v602, %v582
    %v943 = vpack.c.b16 %v603, %v583
    %v944 = vpack.c.b16 %v604, %v584
    %v945 = vpack.c.b16 %v605, %v585
    %v946 = vpack.c.b16 %v606, %v586
    %v947 = vpack.c.b16 %v607, %v587
    %v948 = vpack.c.b16 %v608, %v588
    %v949 = vpack.c.b16 %v609, %v589
    %v950 = vpack.c.b16 %v610, %v590
    %v951 = vpack.c.b16 %v611, %v591
    %v952 = vpack.c.b16 %v612, %v592
    %v953 = vpack.c.b16 %v613, %v593
    %v954 = vpack.c.b16 %v614, %v594
    %v955 = vpack.c.b16 %v615, %v595
    %v956 = vpack.c.b16 %v616, %v596
    %v957 = vpack.c.b16 %v617, %v597
    %v958 = vpack.c.b16 %v638, %v618
    %v959 = vpack.c.b16 %v639, %v619
    %v960 = vpack.c.b16 %v640, %v620
    %v961 = vpack.c.b16 %v641, %v621
    %v962 = vpack.c.b16 %v642, %v622
    %v963 = vpack.c.b16 %v643, %v623
    %v964 = vpack.c.b16 %v644, %v624
    %v965 = vpack.c.b16 %v645, %v625
    %v966 = vpack.c.b16 %v646, %v626
    %v967 = vpack.c.b16 %v647, %v627
    %v968 = vpack.c.b16 %v648, %v628
    %v969 = vpack.c.b16 %v649, %v629
    %v970 = vpack.c.b16 %v650, %v630
    %v971 = vpack.c.b16 %v651, %v631
    %v972 = vpack.c.b16 %v652, %v632
    %v973 = vpack.c.b16 %v653, %v633
    %v974 = vpack.c.b16 %v654, %v634
    %v975 = vpack.c.b16 %v655, %v635
    %v976 = vpack.c.b16 %v656, %v636
    %v977 = vpack.c.b16 %v657, %v637
    %v978 = vpack.c.b16 %v678, %v658
    %v979 = vpack.c.b16 %v679, %v659
    %v980 = vpack.c.b16 %v680, %v660
    %v981 = vpack.c.b16 %v681, %v661
    %v982 = vpack.c.b16 %v682, %v662
    %v983 = vpack.c.b16 %v683, %v663
    %v984 = vpack.c.b16 %v684, %v664
    %v985 = vpack.c.b16 %v685, %v665
    %v986 = vpack.c.b16 %v686, %v666
    %v987 = vpack.c.b16 %v687, %v667
    %v988 = vpack.c.b16 %v688, %v668
    %v989 = vpack.c.b16 %v689, %v669
    %v990 = vpack.c.b16 %v690, %v670
    %v991 = vpack.c.b16 %v691, %v671
    %v992 = vpack.c.b16 %v692, %v672
    %v993 = vpack.c.b16 %v693, %v673
    %v994 = vpack.c.b16 %v694, %v674
    %v995 = vpack.c.b16 %v695, %v675
    %v996 = vpack.c.b16 %v696, %v676
    %v997 = vpack.c.b16 %v697, %v677
    %v998 = vpack.c.b16 %v718, %v698
    %v999 = vpack.c.b16 %v719, %v699
    %v1000 = vpack.c.b16 %v720, %v700
    %v1001 = vpack.c.b16 %v721, %v701
    %v1002 = vpack.c.b16 %v722, %v702
    %v1003 = vpack.c.b16 %v723, %v703
    %v1004 = vpack.c.b16 %v724, %v704
    %v1005 = vpack.c.b16 %v725, %v705
    %v1006 = vpack.c.b16 %v726, %v706
    %v1007 = vpack.c.b16 %v727, %v707
    %v1008 = vpack.c.b16 %v728, %v708
    %v1009 = vpack.c.b16 %v729, %v709
    %v1010 = vpack.c.b16 %v730, %v710
    %v1011 = vpack.c.b16 %v731, %v711
    %v1012 = vpack.c.b16 %v732, %v712
    %v1013 = vpack.c.b16 %v733, %v713
    %v1014 = vpack.c.b16 %v734, %v714
    %v1015 = vpack.c.b16 %v735, %v715
    %v1016 = vpack.c.b16 %v736, %v716
    %v1017 = vpack.c.b16 %v737, %v717
    %v1018 = vpack.c.b16 %v758, %v738
    %v1019 = vpack.c.b16 %v759, %v739
    %v1020 = vpack.c.b16 %v760, %v740
    %v1021 = vpack.c.b16 %v761, %v741
    %v1022 = vpack.c.b16 %v762, %v742
    %v1023 = vpack.c.b16 %v763, %v743
    %v1024 = vpack.c.b16 %v764, %v744
    %v1025 = vpack.c.b16 %v765, %v745
    %v1026 = vpack.c.b16 %v766, %v746
    %v1027 = vpack.c.b16 %v767, %v747
    %v1028 = vpack.c.b16 %v768, %v748
    %v1029 = vpack.c.b16 %v769, %v749
    %v1030 = vpack.c.b16 %v770, %v750
    %v1031 = vpack.c.b16 %v771, %v751
    %v1032 = vpack.c.b16 %v772, %v752
    %v1033 = vpack.c.b16 %v773, %v753
    %v1034 = vpack.c.b16 %v774, %v754
    %v1035 = vpack.c.b16 %v775, %v755
    %v1036 = vpack.c.b16 %v776, %v756
    %v1037 = vpack.c.b16 %v777, %v757
    %v1038 = vpack.c.b16 %v798, %v778
    %v1039 = vpack.c.b16 %v799, %v779
    %v1040 = vpack.c.b16 %v800, %v780
    %v1041 = vpack.c.b16 %v801, %v781
    %v1042 = vpack.c.b16 %v802, %v782
    %v1043 = vpack.c.b16 %v803, %v783
    %v1044 = vpack.c.b16 %v804, %v784
    %v1045 = vpack.c.b16 %v805, %v785
    %v1046 = vpack.c.b16 %v806, %v786
    %v1047 = vpack.c.b16 %v807, %v787
    %v1048 = vpack.c.b16 %v808, %v788
    %v1049 = vpack.c.b16 %v809, %v789
    %v1050 = vpack.c.b16 %v810, %v790
    %v1051 = vpack.c.b16 %v811, %v791
    %v1052 = vpack.c.b16 %v812, %v792
    %v1053 = vpack.c.b16 %v813, %v793
    %v1054 = vpack.c.b16 %v814, %v794
    %v1055 = vpack.c.b16 %v815, %v795
    %v1056 = vpack.c.b16 %v816, %v796
    %v1057 = vpack.c.b16 %v817, %v797
    %v1058 = vpack.c.b16 %v838, %v818
    %v1059 = vpack.c.b16 %v839, %v819
    %v1060 = vpack.c.b16 %v840, %v820
    %v1061 = vpack.c.b16 %v841, %v821
    %v1062 = vpack.c.b16 %v842, %v822
    %v1063 = vpack.c.b16 %v843, %v823
    %v1064 = vpack.c.b16 %v844, %v824
    %v1065 = vpack.c.b16 %v845, %v825
    %v1066 = vpack.c.b16 %v846, %v826
    %v1067 = vpack.c.b16 %v847, %v827
    %v1068 = vpack.c.b16 %v848, %v828
    %v1069 = vpack.c.b16 %v849, %v829
    %v1070 = vpack.c.b16 %v850, %v830
    %v1071 = vpack.c.b16 %v851, %v831
    %v1072 = vpack.c.b16 %v852, %v832
    %v1073 = vpack.c.b16 %v853, %v833
    %v1074 = vpack.c.b16 %v854, %v834
    %v1075 = vpack.c.b16 %v855, %v835
    %v1076 = vpack.c.b16 %v856, %v836
    %v1077 = vpack.c.b16 %v857, %v837
    %v1078 = vpack.c.b16 %v878, %v858
    %v1079 = vpack.c.b16 %v879, %v859
    %v1080 = vpack.c.b16 %v880, %v860
    %v1081 = vpack.c.b16 %v881, %v861
    %v1082 = vpack.c.b16 %v882, %v862
    %v1083 = vpack.c.b16 %v883, %v863
    %v1084 = vpack.c.b16 %v884, %v864
    %v1085 = vpack.c.b16 %v885, %v865
    %v1086 = vpack.c.b16 %v886, %v866
    %v1087 = vpack.c.b16 %v887, %v867
    %v1088 = vpack.c.b16 %v888, %v868
    %v1089 = vpack.c.b16 %v889, %v869
    %v1090 = vpack.c.b16 %v890, %v870
    %v1091 = vpack.c.b16 %v891, %v871
    %v1092 = vpack.c.b16 %v892, %v872
    %v1093 = vpack.c.b16 %v893, %v873
    %v1094 = vpack.c.b16 %v894, %v874
    %v1095 = vpack.c.b16 %v895, %v875
    %v1096 = vpack.c.b16 %v896, %v876
    %v1097 = vpack.c.b16 %v897, %v877
    %v1098 = vpack.c.b16 %v918, %v898
    %v1099 = vpack.c.b16 %v919, %v899
    %v1100 = vpack.c.b16 %v920, %v900
    %v1101 = vpack.c.b16 %v921, %v901
    %v1102 = vpack.c.b16 %v922, %v902
    %v1103 = vpack.c.b16 %v923, %v903
    %v1104 = vpack.c.b16 %v924, %v904
    %v1105 = vpack.c.b16 %v925, %v905
    %v1106 = vpack.c.b16 %v926, %v906
    %v1107 = vpack.c.b16 %v927, %v907
    %v1108 = vpack.c.b16 %v928, %v908
    %v1109 = vpack.c.b16 %v929, %v909
    %v1110 = vpack.c.b16 %v930, %v910
    %v1111 = vpack.c.b16 %v931, %v911
    %v1112 = vpack.c.b16 %v932, %v912
    %v1113 = vpack.c.b16 %v933, %v913
    %v1114 = vpack.c.b16 %v934, %v914
    %v1115 = vpack.c.b16 %v935, %v915
    %v1116 = vpack.c.b16 %v936, %v916
    %v1117 = vpack.c.b16 %v937, %v917
    %vm1298 = vcmask 130048
    %v1300 = vsel %vm1298, %v396, 0
    %1302 = vmatprep.subr.bf16.mxu0 %v1079
    %1303 = vmatpush1.bf16.msra.mxu0 %v1078
    %1304 = vmatprep.subr.bf16.mxu0 %v1059
    %1305 = vmatpush1.bf16.msra.mxu0 %v1058
    %1306 = vmatprep.subr.bf16.mxu0 %v1039
    %1307 = vmatpush1.bf16.msra.mxu0 %v1038
    %1308 = vmatprep.subr.bf16.mxu0 %v1019
    %1309 = vmatpush1.bf16.msra.mxu0 %v1018
    %1310 = vmatprep.subr.bf16.mxu0 %v999
    %1311 = vmatpush1.bf16.msra.mxu0 %v998
    %1312 = vmatprep.subr.bf16.mxu0 %v979
    %1313 = vmatpush1.bf16.msra.mxu0 %v978
    %1314 = vmatprep.subr.bf16.mxu0 %v959
    %1315 = vmatpush1.bf16.msra.mxu0 %v958
    %1316 = vmatprep.subr.bf16.mxu0 %v939
    %1317 = vmatpush1.bf16.msra.mxu0 %v938
    %1318 = vmatprep.subr.bf16.mxu0 0
    %1319 = vmatpush2.bf16.msra.mxu0 0
    %1320 = vmatprep.subr.bf16.mxu0 0
    %1321 = vmatpush2.bf16.msra.mxu0 0
    %1322 = vmatprep.subr.bf16.mxu0 0
    %1323 = vmatpush2.bf16.msra.mxu0 0
    %1324 = vmatprep.subr.bf16.mxu0 0
    %1325 = vmatpush2.bf16.msra.mxu0 0
    %1326 = vmatprep.subr.bf16.mxu0 0
    %1327 = vmatpush2.bf16.msra.mxu0 0
    %1328 = vmatprep.subr.bf16.mxu0 0
    %1329 = vmatpush2.bf16.msra.mxu0 0
    %1330 = vmatprep.subr.bf16.mxu0 0
    %1331 = vmatpush2.bf16.msra.mxu0 0
    %1332 = vmatprep.subr.bf16.mxu0 %v1099
    %1333 = vmatpush2.bf16.msra.mxu0 %v1098
    %1334 = vmatprep.mubr.bf16.mxu0 %v1300
    %1335 = vmatmul.mubr.bf16.gmra.mxu0 %v395
    %v1336 = vpop.f32.mrf.mxu0
    %v1337 = vadd.f32 %v295, %v1336
    %v1338 = vpop.f32.mrf.mxu0
    %v1339 = vadd.f32 %v299, %v1338
    %v1340 = vpop.f32.mrf.mxu0
    %v1341 = vpop.f32.mrf.mxu0
    %1342 = vdwg.mxu0
    %1343 = vmatprep.subr.bf16.mxu0 %v1081
    %1344 = vmatpush1.bf16.msra.mxu0 %v1080
    %1345 = vmatprep.subr.bf16.mxu0 %v1061
    %1346 = vmatpush1.bf16.msra.mxu0 %v1060
    %1347 = vmatprep.subr.bf16.mxu0 %v1041
    %1348 = vmatpush1.bf16.msra.mxu0 %v1040
    %1349 = vmatprep.subr.bf16.mxu0 %v1021
    %1350 = vmatpush1.bf16.msra.mxu0 %v1020
    %1351 = vmatprep.subr.bf16.mxu0 %v1001
    %1352 = vmatpush1.bf16.msra.mxu0 %v1000
    %1353 = vmatprep.subr.bf16.mxu0 %v981
    %1354 = vmatpush1.bf16.msra.mxu0 %v980
    %1355 = vmatprep.subr.bf16.mxu0 %v961
    %1356 = vmatpush1.bf16.msra.mxu0 %v960
    %1357 = vmatprep.subr.bf16.mxu0 %v941
    %1358 = vmatpush1.bf16.msra.mxu0 %v940
    %1359 = vmatprep.subr.bf16.mxu0 0
    %1360 = vmatpush2.bf16.msra.mxu0 0
    %1361 = vmatprep.subr.bf16.mxu0 0
    %1362 = vmatpush2.bf16.msra.mxu0 0
    %1363 = vmatprep.subr.bf16.mxu0 0
    %1364 = vmatpush2.bf16.msra.mxu0 0
    %1365 = vmatprep.subr.bf16.mxu0 0
    %1366 = vmatpush2.bf16.msra.mxu0 0
    %1367 = vmatprep.subr.bf16.mxu0 0
    %1368 = vmatpush2.bf16.msra.mxu0 0
    %1369 = vmatprep.subr.bf16.mxu0 0
    %1370 = vmatpush2.bf16.msra.mxu0 0
    %1371 = vmatprep.subr.bf16.mxu0 0
    %1372 = vmatpush2.bf16.msra.mxu0 0
    %1373 = vmatprep.subr.bf16.mxu0 %v1101
    %1374 = vmatpush2.bf16.msra.mxu0 %v1100
    %1375 = vmatprep.mubr.bf16.mxu0 %v1300
    %1376 = vmatmul.mubr.bf16.gmra.mxu0 %v395
    %v1377 = vpop.f32.mrf.mxu0
    %v1378 = vadd.f32 %v303, %v1377
    %v1379 = vpop.f32.mrf.mxu0
    %v1380 = vadd.f32 %v307, %v1379
    %v1381 = vpop.f32.mrf.mxu0
    %v1382 = vpop.f32.mrf.mxu0
    %1383 = vdwg.mxu0
    %1384 = vmatprep.subr.bf16.mxu0 %v1083
    %1385 = vmatpush1.bf16.msra.mxu0 %v1082
    %1386 = vmatprep.subr.bf16.mxu0 %v1063
    %1387 = vmatpush1.bf16.msra.mxu0 %v1062
    %1388 = vmatprep.subr.bf16.mxu0 %v1043
    %1389 = vmatpush1.bf16.msra.mxu0 %v1042
    %1390 = vmatprep.subr.bf16.mxu0 %v1023
    %1391 = vmatpush1.bf16.msra.mxu0 %v1022
    %1392 = vmatprep.subr.bf16.mxu0 %v1003
    %1393 = vmatpush1.bf16.msra.mxu0 %v1002
    %1394 = vmatprep.subr.bf16.mxu0 %v983
    %1395 = vmatpush1.bf16.msra.mxu0 %v982
    %1396 = vmatprep.subr.bf16.mxu0 %v963
    %1397 = vmatpush1.bf16.msra.mxu0 %v962
    %1398 = vmatprep.subr.bf16.mxu0 %v943
    %1399 = vmatpush1.bf16.msra.mxu0 %v942
    %1400 = vmatprep.subr.bf16.mxu0 0
    %1401 = vmatpush2.bf16.msra.mxu0 0
    %1402 = vmatprep.subr.bf16.mxu0 0
    %1403 = vmatpush2.bf16.msra.mxu0 0
    %1404 = vmatprep.subr.bf16.mxu0 0
    %1405 = vmatpush2.bf16.msra.mxu0 0
    %1406 = vmatprep.subr.bf16.mxu0 0
    %1407 = vmatpush2.bf16.msra.mxu0 0
    %1408 = vmatprep.subr.bf16.mxu0 0
    %1409 = vmatpush2.bf16.msra.mxu0 0
    %1410 = vmatprep.subr.bf16.mxu0 0
    %1411 = vmatpush2.bf16.msra.mxu0 0
    %1412 = vmatprep.subr.bf16.mxu0 0
    %1413 = vmatpush2.bf16.msra.mxu0 0
    %1414 = vmatprep.subr.bf16.mxu0 %v1103
    %1415 = vmatpush2.bf16.msra.mxu0 %v1102
    %1416 = vmatprep.mubr.bf16.mxu0 %v1300
    %1417 = vmatmul.mubr.bf16.gmra.mxu0 %v395
    %v1418 = vpop.f32.mrf.mxu0
    %v1419 = vadd.f32 %v311, %v1418
    %v1420 = vpop.f32.mrf.mxu0
    %v1421 = vadd.f32 %v315, %v1420
    %v1422 = vpop.f32.mrf.mxu0
    %v1423 = vpop.f32.mrf.mxu0
    %1424 = vdwg.mxu0
    %1425 = vmatprep.subr.bf16.mxu0 %v1085
    %1426 = vmatpush1.bf16.msra.mxu0 %v1084
    %1427 = vmatprep.subr.bf16.mxu0 %v1065
    %1428 = vmatpush1.bf16.msra.mxu0 %v1064
    %1429 = vmatprep.subr.bf16.mxu0 %v1045
    %1430 = vmatpush1.bf16.msra.mxu0 %v1044
    %1431 = vmatprep.subr.bf16.mxu0 %v1025
    %1432 = vmatpush1.bf16.msra.mxu0 %v1024
    %1433 = vmatprep.subr.bf16.mxu0 %v1005
    %1434 = vmatpush1.bf16.msra.mxu0 %v1004
    %1435 = vmatprep.subr.bf16.mxu0 %v985
    %1436 = vmatpush1.bf16.msra.mxu0 %v984
    %1437 = vmatprep.subr.bf16.mxu0 %v965
    %1438 = vmatpush1.bf16.msra.mxu0 %v964
    %1439 = vmatprep.subr.bf16.mxu0 %v945
    %1440 = vmatpush1.bf16.msra.mxu0 %v944
    %1441 = vmatprep.subr.bf16.mxu0 0
    %1442 = vmatpush2.bf16.msra.mxu0 0
    %1443 = vmatprep.subr.bf16.mxu0 0
    %1444 = vmatpush2.bf16.msra.mxu0 0
    %1445 = vmatprep.subr.bf16.mxu0 0
    %1446 = vmatpush2.bf16.msra.mxu0 0
    %1447 = vmatprep.subr.bf16.mxu0 0
    %1448 = vmatpush2.bf16.msra.mxu0 0
    %1449 = vmatprep.subr.bf16.mxu0 0
    %1450 = vmatpush2.bf16.msra.mxu0 0
    %1451 = vmatprep.subr.bf16.mxu0 0
    %1452 = vmatpush2.bf16.msra.mxu0 0
    %1453 = vmatprep.subr.bf16.mxu0 0
    %1454 = vmatpush2.bf16.msra.mxu0 0
    %1455 = vmatprep.subr.bf16.mxu0 %v1105
    %1456 = vmatpush2.bf16.msra.mxu0 %v1104
    %1457 = vmatprep.mubr.bf16.mxu0 %v1300
    %1458 = vmatmul.mubr.bf16.gmra.mxu0 %v395
    %v1459 = vpop.f32.mrf.mxu0
    %v1460 = vadd.f32 %v319, %v1459
    %v1461 = vpop.f32.mrf.mxu0
    %v1462 = vadd.f32 %v323, %v1461
    %v1463 = vpop.f32.mrf.mxu0
    %v1464 = vpop.f32.mrf.mxu0
    %1465 = vdwg.mxu0
    %1466 = vmatprep.subr.bf16.mxu0 %v1087
    %1467 = vmatpush1.bf16.msra.mxu0 %v1086
    %1468 = vmatprep.subr.bf16.mxu0 %v1067
    %1469 = vmatpush1.bf16.msra.mxu0 %v1066
    %1470 = vmatprep.subr.bf16.mxu0 %v1047
    %1471 = vmatpush1.bf16.msra.mxu0 %v1046
    %1472 = vmatprep.subr.bf16.mxu0 %v1027
    %1473 = vmatpush1.bf16.msra.mxu0 %v1026
    %1474 = vmatprep.subr.bf16.mxu0 %v1007
    %1475 = vmatpush1.bf16.msra.mxu0 %v1006
    %1476 = vmatprep.subr.bf16.mxu0 %v987
    %1477 = vmatpush1.bf16.msra.mxu0 %v986
    %1478 = vmatprep.subr.bf16.mxu0 %v967
    %1479 = vmatpush1.bf16.msra.mxu0 %v966
    %1480 = vmatprep.subr.bf16.mxu0 %v947
    %1481 = vmatpush1.bf16.msra.mxu0 %v946
    %1482 = vmatprep.subr.bf16.mxu0 0
    %1483 = vmatpush2.bf16.msra.mxu0 0
    %1484 = vmatprep.subr.bf16.mxu0 0
    %1485 = vmatpush2.bf16.msra.mxu0 0
    %1486 = vmatprep.subr.bf16.mxu0 0
    %1487 = vmatpush2.bf16.msra.mxu0 0
    %1488 = vmatprep.subr.bf16.mxu0 0
    %1489 = vmatpush2.bf16.msra.mxu0 0
    %1490 = vmatprep.subr.bf16.mxu0 0
    %1491 = vmatpush2.bf16.msra.mxu0 0
    %1492 = vmatprep.subr.bf16.mxu0 0
    %1493 = vmatpush2.bf16.msra.mxu0 0
    %1494 = vmatprep.subr.bf16.mxu0 0
    %1495 = vmatpush2.bf16.msra.mxu0 0
    %1496 = vmatprep.subr.bf16.mxu0 %v1107
    %1497 = vmatpush2.bf16.msra.mxu0 %v1106
    %1498 = vmatprep.mubr.bf16.mxu0 %v1300
    %1499 = vmatmul.mubr.bf16.gmra.mxu0 %v395
    %v1500 = vpop.f32.mrf.mxu0
    %v1501 = vadd.f32 %v327, %v1500
    %v1502 = vpop.f32.mrf.mxu0
    %v1503 = vadd.f32 %v331, %v1502
    %v1504 = vpop.f32.mrf.mxu0
    %v1505 = vpop.f32.mrf.mxu0
    %1506 = vdwg.mxu0
    %1507 = vmatprep.subr.bf16.mxu0 %v1089
    %1508 = vmatpush1.bf16.msra.mxu0 %v1088
    %1509 = vmatprep.subr.bf16.mxu0 %v1069
    %1510 = vmatpush1.bf16.msra.mxu0 %v1068
    %1511 = vmatprep.subr.bf16.mxu0 %v1049
    %1512 = vmatpush1.bf16.msra.mxu0 %v1048
    %1513 = vmatprep.subr.bf16.mxu0 %v1029
    %1514 = vmatpush1.bf16.msra.mxu0 %v1028
    %1515 = vmatprep.subr.bf16.mxu0 %v1009
    %1516 = vmatpush1.bf16.msra.mxu0 %v1008
    %1517 = vmatprep.subr.bf16.mxu0 %v989
    %1518 = vmatpush1.bf16.msra.mxu0 %v988
    %1519 = vmatprep.subr.bf16.mxu0 %v969
    %1520 = vmatpush1.bf16.msra.mxu0 %v968
    %1521 = vmatprep.subr.bf16.mxu0 %v949
    %1522 = vmatpush1.bf16.msra.mxu0 %v948
    %1523 = vmatprep.subr.bf16.mxu0 0
    %1524 = vmatpush2.bf16.msra.mxu0 0
    %1525 = vmatprep.subr.bf16.mxu0 0
    %1526 = vmatpush2.bf16.msra.mxu0 0
    %1527 = vmatprep.subr.bf16.mxu0 0
    %1528 = vmatpush2.bf16.msra.mxu0 0
    %1529 = vmatprep.subr.bf16.mxu0 0
    %1530 = vmatpush2.bf16.msra.mxu0 0
    %1531 = vmatprep.subr.bf16.mxu0 0
    %1532 = vmatpush2.bf16.msra.mxu0 0
    %1533 = vmatprep.subr.bf16.mxu0 0
    %1534 = vmatpush2.bf16.msra.mxu0 0
    %1535 = vmatprep.subr.bf16.mxu0 0
    %1536 = vmatpush2.bf16.msra.mxu0 0
    %1537 = vmatprep.subr.bf16.mxu0 %v1109
    %1538 = vmatpush2.bf16.msra.mxu0 %v1108
    %1539 = vmatprep.mubr.bf16.mxu0 %v1300
    %1540 = vmatmul.mubr.bf16.gmra.mxu0 %v395
    %v1541 = vpop.f32.mrf.mxu0
    %v1542 = vadd.f32 %v335, %v1541
    %v1543 = vpop.f32.mrf.mxu0
    %v1544 = vadd.f32 %v339, %v1543
    %v1545 = vpop.f32.mrf.mxu0
    %v1546 = vpop.f32.mrf.mxu0
    %1547 = vdwg.mxu0
    %1548 = vmatprep.subr.bf16.mxu0 %v1091
    %1549 = vmatpush1.bf16.msra.mxu0 %v1090
    %1550 = vmatprep.subr.bf16.mxu0 %v1071
    %1551 = vmatpush1.bf16.msra.mxu0 %v1070
    %1552 = vmatprep.subr.bf16.mxu0 %v1051
    %1553 = vmatpush1.bf16.msra.mxu0 %v1050
    %1554 = vmatprep.subr.bf16.mxu0 %v1031
    %1555 = vmatpush1.bf16.msra.mxu0 %v1030
    %1556 = vmatprep.subr.bf16.mxu0 %v1011
    %1557 = vmatpush1.bf16.msra.mxu0 %v1010
    %1558 = vmatprep.subr.bf16.mxu0 %v991
    %1559 = vmatpush1.bf16.msra.mxu0 %v990
    %1560 = vmatprep.subr.bf16.mxu0 %v971
    %1561 = vmatpush1.bf16.msra.mxu0 %v970
    %1562 = vmatprep.subr.bf16.mxu0 %v951
    %1563 = vmatpush1.bf16.msra.mxu0 %v950
    %1564 = vmatprep.subr.bf16.mxu0 0
    %1565 = vmatpush2.bf16.msra.mxu0 0
    %1566 = vmatprep.subr.bf16.mxu0 0
    %1567 = vmatpush2.bf16.msra.mxu0 0
    %1568 = vmatprep.subr.bf16.mxu0 0
    %1569 = vmatpush2.bf16.msra.mxu0 0
    %1570 = vmatprep.subr.bf16.mxu0 0
    %1571 = vmatpush2.bf16.msra.mxu0 0
    %1572 = vmatprep.subr.bf16.mxu0 0
    %1573 = vmatpush2.bf16.msra.mxu0 0
    %1574 = vmatprep.subr.bf16.mxu0 0
    %1575 = vmatpush2.bf16.msra.mxu0 0
    %1576 = vmatprep.subr.bf16.mxu0 0
    %1577 = vmatpush2.bf16.msra.mxu0 0
    %1578 = vmatprep.subr.bf16.mxu0 %v1111
    %1579 = vmatpush2.bf16.msra.mxu0 %v1110
    %1580 = vmatprep.mubr.bf16.mxu0 %v1300
    %1581 = vmatmul.mubr.bf16.gmra.mxu0 %v395
    %v1582 = vpop.f32.mrf.mxu0
    %v1583 = vadd.f32 %v343, %v1582
    %v1584 = vpop.f32.mrf.mxu0
    %v1585 = vadd.f32 %v347, %v1584
    %v1586 = vpop.f32.mrf.mxu0
    %v1587 = vpop.f32.mrf.mxu0
    %1588 = vdwg.mxu0
    %1589 = vmatprep.subr.bf16.mxu0 %v1093
    %1590 = vmatpush1.bf16.msra.mxu0 %v1092
    %1591 = vmatprep.subr.bf16.mxu0 %v1073
    %1592 = vmatpush1.bf16.msra.mxu0 %v1072
    %1593 = vmatprep.subr.bf16.mxu0 %v1053
    %1594 = vmatpush1.bf16.msra.mxu0 %v1052
    %1595 = vmatprep.subr.bf16.mxu0 %v1033
    %1596 = vmatpush1.bf16.msra.mxu0 %v1032
    %1597 = vmatprep.subr.bf16.mxu0 %v1013
    %1598 = vmatpush1.bf16.msra.mxu0 %v1012
    %1599 = vmatprep.subr.bf16.mxu0 %v993
    %1600 = vmatpush1.bf16.msra.mxu0 %v992
    %1601 = vmatprep.subr.bf16.mxu0 %v973
    %1602 = vmatpush1.bf16.msra.mxu0 %v972
    %1603 = vmatprep.subr.bf16.mxu0 %v953
    %1604 = vmatpush1.bf16.msra.mxu0 %v952
    %1605 = vmatprep.subr.bf16.mxu0 0
    %1606 = vmatpush2.bf16.msra.mxu0 0
    %1607 = vmatprep.subr.bf16.mxu0 0
    %1608 = vmatpush2.bf16.msra.mxu0 0
    %1609 = vmatprep.subr.bf16.mxu0 0
    %1610 = vmatpush2.bf16.msra.mxu0 0
    %1611 = vmatprep.subr.bf16.mxu0 0
    %1612 = vmatpush2.bf16.msra.mxu0 0
    %1613 = vmatprep.subr.bf16.mxu0 0
    %1614 = vmatpush2.bf16.msra.mxu0 0
    %1615 = vmatprep.subr.bf16.mxu0 0
    %1616 = vmatpush2.bf16.msra.mxu0 0
    %1617 = vmatprep.subr.bf16.mxu0 0
    %1618 = vmatpush2.bf16.msra.mxu0 0
    %1619 = vmatprep.subr.bf16.mxu0 %v1113
    %1620 = vmatpush2.bf16.msra.mxu0 %v1112
    %1621 = vmatprep.mubr.bf16.mxu0 %v1300
    %1622 = vmatmul.mubr.bf16.gmra.mxu0 %v395
    %v1623 = vpop.f32.mrf.mxu0
    %v1624 = vadd.f32 %v351, %v1623
    %v1625 = vpop.f32.mrf.mxu0
    %v1626 = vadd.f32 %v355, %v1625
    %v1627 = vpop.f32.mrf.mxu0
    %v1628 = vpop.f32.mrf.mxu0
    %1629 = vdwg.mxu0
    %1630 = vmatprep.subr.bf16.mxu0 %v1095
    %1631 = vmatpush1.bf16.msra.mxu0 %v1094
    %1632 = vmatprep.subr.bf16.mxu0 %v1075
    %1633 = vmatpush1.bf16.msra.mxu0 %v1074
    %1634 = vmatprep.subr.bf16.mxu0 %v1055
    %1635 = vmatpush1.bf16.msra.mxu0 %v1054
    %1636 = vmatprep.subr.bf16.mxu0 %v1035
    %1637 = vmatpush1.bf16.msra.mxu0 %v1034
    %1638 = vmatprep.subr.bf16.mxu0 %v1015
    %1639 = vmatpush1.bf16.msra.mxu0 %v1014
    %1640 = vmatprep.subr.bf16.mxu0 %v995
    %1641 = vmatpush1.bf16.msra.mxu0 %v994
    %1642 = vmatprep.subr.bf16.mxu0 %v975
    %1643 = vmatpush1.bf16.msra.mxu0 %v974
    %1644 = vmatprep.subr.bf16.mxu0 %v955
    %1645 = vmatpush1.bf16.msra.mxu0 %v954
    %1646 = vmatprep.subr.bf16.mxu0 0
    %1647 = vmatpush2.bf16.msra.mxu0 0
    %1648 = vmatprep.subr.bf16.mxu0 0
    %1649 = vmatpush2.bf16.msra.mxu0 0
    %1650 = vmatprep.subr.bf16.mxu0 0
    %1651 = vmatpush2.bf16.msra.mxu0 0
    %1652 = vmatprep.subr.bf16.mxu0 0
    %1653 = vmatpush2.bf16.msra.mxu0 0
    %1654 = vmatprep.subr.bf16.mxu0 0
    %1655 = vmatpush2.bf16.msra.mxu0 0
    %1656 = vmatprep.subr.bf16.mxu0 0
    %1657 = vmatpush2.bf16.msra.mxu0 0
    %1658 = vmatprep.subr.bf16.mxu0 0
    %1659 = vmatpush2.bf16.msra.mxu0 0
    %1660 = vmatprep.subr.bf16.mxu0 %v1115
    %1661 = vmatpush2.bf16.msra.mxu0 %v1114
    %1662 = vmatprep.mubr.bf16.mxu0 %v1300
    %1663 = vmatmul.mubr.bf16.gmra.mxu0 %v395
    %v1664 = vpop.f32.mrf.mxu0
    %v1665 = vadd.f32 %v359, %v1664
    %v1666 = vpop.f32.mrf.mxu0
    %v1667 = vadd.f32 %v363, %v1666
    %v1668 = vpop.f32.mrf.mxu0
    %v1669 = vpop.f32.mrf.mxu0
    %1670 = vdwg.mxu0
    %1671 = vmatprep.subr.bf16.mxu0 %v1097
    %1672 = vmatpush1.bf16.msra.mxu0 %v1096
    %1673 = vmatprep.subr.bf16.mxu0 %v1077
    %1674 = vmatpush1.bf16.msra.mxu0 %v1076
    %1675 = vmatprep.subr.bf16.mxu0 %v1057
    %1676 = vmatpush1.bf16.msra.mxu0 %v1056
    %1677 = vmatprep.subr.bf16.mxu0 %v1037
    %1678 = vmatpush1.bf16.msra.mxu0 %v1036
    %1679 = vmatprep.subr.bf16.mxu0 %v1017
    %1680 = vmatpush1.bf16.msra.mxu0 %v1016
    %1681 = vmatprep.subr.bf16.mxu0 %v997
    %1682 = vmatpush1.bf16.msra.mxu0 %v996
    %1683 = vmatprep.subr.bf16.mxu0 %v977
    %1684 = vmatpush1.bf16.msra.mxu0 %v976
    %1685 = vmatprep.subr.bf16.mxu0 %v957
    %1686 = vmatpush1.bf16.msra.mxu0 %v956
    %1687 = vmatprep.subr.bf16.mxu0 0
    %1688 = vmatpush2.bf16.msra.mxu0 0
    %1689 = vmatprep.subr.bf16.mxu0 0
    %1690 = vmatpush2.bf16.msra.mxu0 0
    %1691 = vmatprep.subr.bf16.mxu0 0
    %1692 = vmatpush2.bf16.msra.mxu0 0
    %1693 = vmatprep.subr.bf16.mxu0 0
    %1694 = vmatpush2.bf16.msra.mxu0 0
    %1695 = vmatprep.subr.bf16.mxu0 0
    %1696 = vmatpush2.bf16.msra.mxu0 0
    %1697 = vmatprep.subr.bf16.mxu0 0
    %1698 = vmatpush2.bf16.msra.mxu0 0
    %1699 = vmatprep.subr.bf16.mxu0 0
    %1700 = vmatpush2.bf16.msra.mxu0 0
    %1701 = vmatprep.subr.bf16.mxu0 %v1117
    %1702 = vmatpush2.bf16.msra.mxu0 %v1116
    %1703 = vmatprep.mubr.bf16.mxu0 %v1300
    %1704 = vmatmul.mubr.bf16.gmra.mxu0 %v395
    %v1705 = vpop.f32.mrf.mxu0
    %v1706 = vadd.f32 %v367, %v1705
    %v1707 = vpop.f32.mrf.mxu0
    %v1708 = vadd.f32 %v371, %v1707
    %v1709 = vpop.f32.mrf.mxu0
    %v1710 = vpop.f32.mrf.mxu0
    %1711 = vdwg.mxu0
    %v1712 = vmax.f32 %v1337, 0.0
    %v1713 = vmax.f32 %v1339, 0.0
    %v1714 = vmax.f32 %v1378, 0.0
    %v1715 = vmax.f32 %v1380, 0.0
    %v1716 = vmax.f32 %v1419, 0.0
    %v1717 = vmax.f32 %v1421, 0.0
    %v1718 = vmax.f32 %v1460, 0.0
    %v1719 = vmax.f32 %v1462, 0.0
    %v1720 = vmax.f32 %v1501, 0.0
    %v1721 = vmax.f32 %v1503, 0.0
    %v1722 = vmax.f32 %v1542, 0.0
    %v1723 = vmax.f32 %v1544, 0.0
    %v1724 = vmax.f32 %v1583, 0.0
    %v1725 = vmax.f32 %v1585, 0.0
    %v1726 = vmax.f32 %v1624, 0.0
    %v1727 = vmax.f32 %v1626, 0.0
    %v1728 = vmax.f32 %v1665, 0.0
    %v1729 = vmax.f32 %v1667, 0.0
    %v1730 = vmax.f32 %v1706, 0.0
    %v1731 = vmax.f32 %v1708, 0.0
    %v1732 = vmax.f32 %v1712, %v1717
    %v1733 = vmax.f32 %v1713, %v1718
    %v1734 = vmax.f32 %v1714, %v1719
    %v1735 = vmax.f32 %v1715, %v1720
    %v1736 = vmax.f32 %v1716, %v1721
    %v1737 = vmax.f32 %v1722, %v1727
    %v1738 = vmax.f32 %v1723, %v1728
    %v1739 = vmax.f32 %v1724, %v1729
    %v1740 = vmax.f32 %v1725, %v1730
    %v1741 = vmax.f32 %v1726, %v1731
    %v1742 = vmax.f32 %v1732, %v1737
    %v1743 = vmax.f32 %v1733, %v1738
    %v1744 = vmax.f32 %v1734, %v1739
    %v1745 = vmax.f32 %v1735, %v1740
    %v1746 = vmax.f32 %v1736, %v1741
    %v1747 = vpack.c.bf16 %v1742, %v1742
    %v1748 = vpack.c.bf16 %v1743, %v1743
    %v1749 = vpack.c.bf16 %v1744, %v1744
    %v1750 = vpack.c.bf16 %v1745, %v1745
    %v1751 = vpack.c.bf16 %v1746, %v1746
    %v1752 = vld [vmem:[#allocation6] sm:$0xff]
    %v1753 = vld [vmem:[#allocation6 + $0x8] sm:$0xff]
    %v1754 = vld [vmem:[#allocation6 + $0x10] sm:$0xff]
    %v1755 = vld [vmem:[#allocation6 + $0x18] sm:$0xff]
    %v1756 = vld [vmem:[#allocation6 + $0x20] sm:$0xff]
    %v1757 = vld [vmem:[#allocation6 + $0x28] sm:$0xff]
    %v1758 = vld [vmem:[#allocation6 + $0x30] sm:$0xff]
    %v1759 = vld [vmem:[#allocation6 + $0x38] sm:$0xff]
    %v1760 = vld [vmem:[#allocation6 + $0x40] sm:$0xff]
    %v1761 = vld [vmem:[#allocation6 + $0x48] sm:$0xff]
    %v1762 = vld [vmem:[#allocation6 + $0x50] sm:$0xff]
    %v1763 = vld [vmem:[#allocation6 + $0x58] sm:$0xff]
    %v1764 = vld [vmem:[#allocation6 + $0x60] sm:$0xff]
    %v1765 = vld [vmem:[#allocation6 + $0x68] sm:$0xff]
    %v1766 = vld [vmem:[#allocation6 + $0x70] sm:$0xff]
    %v1767 = vld [vmem:[#allocation6 + $0x78] sm:$0xff]
    %v1768 = vld [vmem:[#allocation6 + $0x80] sm:$0xff]
    %v1769 = vld [vmem:[#allocation6 + $0x88] sm:$0xff]
    %v1770 = vld [vmem:[#allocation6 + $0x90] sm:$0xff]
    %v1771 = vld [vmem:[#allocation6 + $0x98] sm:$0xff]
    %v1772 = vld [vmem:[#allocation6 + $0xa0] sm:$0xff]
    %v1773 = vld [vmem:[#allocation6 + $0xa8] sm:$0xff]
    %v1774 = vld [vmem:[#allocation6 + $0xb0] sm:$0xff]
    %v1775 = vld [vmem:[#allocation6 + $0xb8] sm:$0xff]
    %v1776 = vld [vmem:[#allocation6 + $0xc0] sm:$0xff]
    %v1777 = vld [vmem:[#allocation6 + $0xc8] sm:$0xff]
    %v1778 = vld [vmem:[#allocation6 + $0xd0] sm:$0xff]
    %v1779 = vld [vmem:[#allocation6 + $0xd8] sm:$0xff]
    %v1780 = vld [vmem:[#allocation6 + $0xe0] sm:$0xff]
    %v1781 = vld [vmem:[#allocation6 + $0xe8] sm:$0xff]
    %v1782 = vld [vmem:[#allocation6 + $0xf0] sm:$0xff]
    %v1783 = vld [vmem:[#allocation6 + $0xf8] sm:$0xff]
    %v1784 = vld [vmem:[#allocation6 + $0x100] sm:$0xff]
    %v1785 = vld [vmem:[#allocation6 + $0x108] sm:$0xff]
    %v1786 = vld [vmem:[#allocation6 + $0x110] sm:$0xff]
    %v1787 = vld [vmem:[#allocation6 + $0x118] sm:$0xff]
    %v1788 = vld [vmem:[#allocation6 + $0x120] sm:$0xff]
    %v1789 = vld [vmem:[#allocation6 + $0x128] sm:$0xff]
    %v1790 = vld [vmem:[#allocation6 + $0x130] sm:$0xff]
    %v1791 = vld [vmem:[#allocation6 + $0x138] sm:$0xff]
    %v1792 = vld [vmem:[#allocation6 + $0x140] sm:$0xff]
    %v1793 = vld [vmem:[#allocation6 + $0x148] sm:$0xff]
    %v1794 = vld [vmem:[#allocation6 + $0x150] sm:$0xff]
    %v1795 = vld [vmem:[#allocation6 + $0x158] sm:$0xff]
    %v1796 = vld [vmem:[#allocation6 + $0x160] sm:$0xff]
    %v1797 = vld [vmem:[#allocation6 + $0x168] sm:$0xff]
    %v1798 = vld [vmem:[#allocation6 + $0x170] sm:$0xff]
    %v1799 = vld [vmem:[#allocation6 + $0x178] sm:$0xff]
    %v1800 = vld [vmem:[#allocation6 + $0x180] sm:$0xff]
    %v1801 = vld [vmem:[#allocation6 + $0x188] sm:$0xff]
    %v1802 = vld [vmem:[#allocation6 + $0x190] sm:$0xff]
    %v1803 = vld [vmem:[#allocation6 + $0x198] sm:$0xff]
    %v1804 = vld [vmem:[#allocation6 + $0x1a0] sm:$0xff]
    %v1805 = vld [vmem:[#allocation6 + $0x1a8] sm:$0xff]
    %v1806 = vld [vmem:[#allocation6 + $0x1b0] sm:$0xff]
    %v1807 = vld [vmem:[#allocation6 + $0x1b8] sm:$0xff]
    %v1808 = vld [vmem:[#allocation6 + $0x1c0] sm:$0xff]
    %v1809 = vld [vmem:[#allocation6 + $0x1c8] sm:$0xff]
    %v1810 = vld [vmem:[#allocation6 + $0x1d0] sm:$0xff]
    %v1811 = vld [vmem:[#allocation6 + $0x1d8] sm:$0xff]
    %v1812 = vld [vmem:[#allocation6 + $0x1e0] sm:$0xff]
    %v1813 = vld [vmem:[#allocation6 + $0x1e8] sm:$0xff]
    %v1814 = vld [vmem:[#allocation6 + $0x1f0] sm:$0xff]
    %v1815 = vld [vmem:[#allocation6 + $0x1f8] sm:$0xff]
    %v1816 = vld [vmem:[#allocation6 + $0x200] sm:$0xff]
    %v1817 = vld [vmem:[#allocation6 + $0x208] sm:$0xff]
    %v1818 = vld [vmem:[#allocation6 + $0x210] sm:$0xff]
    %v1819 = vld [vmem:[#allocation6 + $0x218] sm:$0xff]
    %v1820 = vld [vmem:[#allocation6 + $0x220] sm:$0xff]
    %v1821 = vld [vmem:[#allocation6 + $0x228] sm:$0xff]
    %v1822 = vld [vmem:[#allocation6 + $0x230] sm:$0xff]
    %v1823 = vld [vmem:[#allocation6 + $0x238] sm:$0xff]
    %v1824 = vld [vmem:[#allocation6 + $0x240] sm:$0xff]
    %v1825 = vld [vmem:[#allocation6 + $0x248] sm:$0xff]
    %v1826 = vld [vmem:[#allocation6 + $0x250] sm:$0xff]
    %v1827 = vld [vmem:[#allocation6 + $0x258] sm:$0xff]
    %v1828 = vld [vmem:[#allocation6 + $0x260] sm:$0xff]
    %v1829 = vld [vmem:[#allocation6 + $0x268] sm:$0xff]
    %v1830 = vld [vmem:[#allocation6 + $0x270] sm:$0xff]
    %v1831 = vld [vmem:[#allocation6 + $0x278] sm:$0xff]
    %v1832 = vld [vmem:[#allocation6 + $0x280] sm:$0xff]
    %v1833 = vld [vmem:[#allocation6 + $0x288] sm:$0xff]
    %v1834 = vld [vmem:[#allocation6 + $0x290] sm:$0xff]
    %v1835 = vld [vmem:[#allocation6 + $0x298] sm:$0xff]
    %v1836 = vld [vmem:[#allocation6 + $0x2a0] sm:$0xff]
    %v1837 = vld [vmem:[#allocation6 + $0x2a8] sm:$0xff]
    %v1838 = vld [vmem:[#allocation6 + $0x2b0] sm:$0xff]
    %v1839 = vld [vmem:[#allocation6 + $0x2b8] sm:$0xff]
    %v1840 = vld [vmem:[#allocation6 + $0x2c0] sm:$0xff]
    %v1841 = vld [vmem:[#allocation6 + $0x2c8] sm:$0xff]
    %v1842 = vld [vmem:[#allocation6 + $0x2d0] sm:$0xff]
    %v1843 = vld [vmem:[#allocation6 + $0x2d8] sm:$0xff]
    %v1844 = vld [vmem:[#allocation6 + $0x2e0] sm:$0xff]
    %v1845 = vld [vmem:[#allocation6 + $0x2e8] sm:$0xff]
    %v1846 = vld [vmem:[#allocation6 + $0x2f0] sm:$0xff]
    %v1847 = vld [vmem:[#allocation6 + $0x2f8] sm:$0xff]
    %v1848 = vld [vmem:[#allocation6 + $0x300] sm:$0xff]
    %v1849 = vld [vmem:[#allocation6 + $0x308] sm:$0xff]
    %v1850 = vld [vmem:[#allocation6 + $0x310] sm:$0xff]
    %v1851 = vld [vmem:[#allocation6 + $0x318] sm:$0xff]
    %v1852 = vld [vmem:[#allocation6 + $0x320] sm:$0xff]
    %v1853 = vld [vmem:[#allocation6 + $0x328] sm:$0xff]
    %v1854 = vld [vmem:[#allocation6 + $0x330] sm:$0xff]
    %v1855 = vld [vmem:[#allocation6 + $0x338] sm:$0xff]
    %v1856 = vld [vmem:[#allocation6 + $0x340] sm:$0xff]
    %v1857 = vld [vmem:[#allocation6 + $0x348] sm:$0xff]
    %v1858 = vld [vmem:[#allocation6 + $0x350] sm:$0xff]
    %v1859 = vld [vmem:[#allocation6 + $0x358] sm:$0xff]
    %v1860 = vld [vmem:[#allocation6 + $0x360] sm:$0xff]
    %v1861 = vld [vmem:[#allocation6 + $0x368] sm:$0xff]
    %v1862 = vld [vmem:[#allocation6 + $0x370] sm:$0xff]
    %v1863 = vld [vmem:[#allocation6 + $0x378] sm:$0xff]
    %v1864 = vld [vmem:[#allocation6 + $0x380] sm:$0xff]
    %v1865 = vld [vmem:[#allocation6 + $0x388] sm:$0xff]
    %v1866 = vld [vmem:[#allocation6 + $0x390] sm:$0xff]
    %v1867 = vld [vmem:[#allocation6 + $0x398] sm:$0xff]
    %v1868 = vld [vmem:[#allocation6 + $0x3a0] sm:$0xff]
    %v1869 = vld [vmem:[#allocation6 + $0x3a8] sm:$0xff]
    %v1870 = vld [vmem:[#allocation6 + $0x3b0] sm:$0xff]
    %v1871 = vld [vmem:[#allocation6 + $0x3b8] sm:$0xff]
    %v1872 = vld [vmem:[#allocation6 + $0x3c0] sm:$0xff]
    %v1873 = vld [vmem:[#allocation6 + $0x3c8] sm:$0xff]
    %v1874 = vld [vmem:[#allocation6 + $0x3d0] sm:$0xff]
    %v1875 = vld [vmem:[#allocation6 + $0x3d8] sm:$0xff]
    %v1876 = vld [vmem:[#allocation6 + $0x3e0] sm:$0xff]
    %v1877 = vld [vmem:[#allocation6 + $0x3e8] sm:$0xff]
    %v1878 = vld [vmem:[#allocation6 + $0x3f0] sm:$0xff]
    %v1879 = vld [vmem:[#allocation6 + $0x3f8] sm:$0xff]
    %v1880 = vld [vmem:[#allocation6 + $0x400] sm:$0xff]
    %v1881 = vld [vmem:[#allocation6 + $0x408] sm:$0xff]
    %v1882 = vld [vmem:[#allocation6 + $0x410] sm:$0xff]
    %v1883 = vld [vmem:[#allocation6 + $0x418] sm:$0xff]
    %v1884 = vld [vmem:[#allocation6 + $0x420] sm:$0xff]
    %v1885 = vld [vmem:[#allocation6 + $0x428] sm:$0xff]
    %v1886 = vld [vmem:[#allocation6 + $0x430] sm:$0xff]
    %v1887 = vld [vmem:[#allocation6 + $0x438] sm:$0xff]
    %v1888 = vld [vmem:[#allocation6 + $0x440] sm:$0xff]
    %v1889 = vld [vmem:[#allocation6 + $0x448] sm:$0xff]
    %v1890 = vld [vmem:[#allocation6 + $0x450] sm:$0xff]
    %v1891 = vld [vmem:[#allocation6 + $0x458] sm:$0xff]
    %v1892 = vld [vmem:[#allocation6 + $0x460] sm:$0xff]
    %v1893 = vld [vmem:[#allocation6 + $0x468] sm:$0xff]
    %v1894 = vld [vmem:[#allocation6 + $0x470] sm:$0xff]
    %v1895 = vld [vmem:[#allocation6 + $0x478] sm:$0xff]
    %v1896 = vld [vmem:[#allocation6 + $0x480] sm:$0xff]
    %v1897 = vld [vmem:[#allocation6 + $0x488] sm:$0xff]
    %v1898 = vld [vmem:[#allocation6 + $0x490] sm:$0xff]
    %v1899 = vld [vmem:[#allocation6 + $0x498] sm:$0xff]
    %v1900 = vld [vmem:[#allocation6 + $0x4a0] sm:$0xff]
    %v1901 = vld [vmem:[#allocation6 + $0x4a8] sm:$0xff]
    %v1902 = vld [vmem:[#allocation6 + $0x4b0] sm:$0xff]
    %v1903 = vld [vmem:[#allocation6 + $0x4b8] sm:$0xff]
    %v1904 = vld [vmem:[#allocation6 + $0x4c0] sm:$0xff]
    %v1905 = vld [vmem:[#allocation6 + $0x4c8] sm:$0xff]
    %v1906 = vld [vmem:[#allocation6 + $0x4d0] sm:$0xff]
    %v1907 = vld [vmem:[#allocation6 + $0x4d8] sm:$0xff]
    %v1908 = vld [vmem:[#allocation6 + $0x4e0] sm:$0xff]
    %v1909 = vld [vmem:[#allocation6 + $0x4e8] sm:$0xff]
    %v1910 = vld [vmem:[#allocation6 + $0x4f0] sm:$0xff]
    %v1911 = vld [vmem:[#allocation6 + $0x4f8] sm:$0xff]
    %v1912 = vld [vmem:[#allocation6 + $0x500] sm:$0xff]
    %v1913 = vld [vmem:[#allocation6 + $0x508] sm:$0xff]
    %v1914 = vld [vmem:[#allocation6 + $0x510] sm:$0xff]
    %v1915 = vld [vmem:[#allocation6 + $0x518] sm:$0xff]
    %v1916 = vld [vmem:[#allocation6 + $0x520] sm:$0xff]
    %v1917 = vld [vmem:[#allocation6 + $0x528] sm:$0xff]
    %v1918 = vld [vmem:[#allocation6 + $0x530] sm:$0xff]
    %v1919 = vld [vmem:[#allocation6 + $0x538] sm:$0xff]
    %v1920 = vld [vmem:[#allocation6 + $0x540] sm:$0xff]
    %v1921 = vld [vmem:[#allocation6 + $0x548] sm:$0xff]
    %v1922 = vld [vmem:[#allocation6 + $0x550] sm:$0xff]
    %v1923 = vld [vmem:[#allocation6 + $0x558] sm:$0xff]
    %v1924 = vld [vmem:[#allocation6 + $0x560] sm:$0xff]
    %v1925 = vld [vmem:[#allocation6 + $0x568] sm:$0xff]
    %v1926 = vld [vmem:[#allocation6 + $0x570] sm:$0xff]
    %v1927 = vld [vmem:[#allocation6 + $0x578] sm:$0xff]
    %v1928 = vld [vmem:[#allocation6 + $0x580] sm:$0xff]
    %v1929 = vld [vmem:[#allocation6 + $0x588] sm:$0xff]
    %v1930 = vld [vmem:[#allocation6 + $0x590] sm:$0xff]
    %v1931 = vld [vmem:[#allocation6 + $0x598] sm:$0xff]
    %v1932 = vld [vmem:[#allocation6 + $0x5a0] sm:$0xff]
    %v1933 = vld [vmem:[#allocation6 + $0x5a8] sm:$0xff]
    %v1934 = vld [vmem:[#allocation6 + $0x5b0] sm:$0xff]
    %v1935 = vld [vmem:[#allocation6 + $0x5b8] sm:$0xff]
    %v1936 = vld [vmem:[#allocation6 + $0x5c0] sm:$0xff]
    %v1937 = vld [vmem:[#allocation6 + $0x5c8] sm:$0xff]
    %v1938 = vld [vmem:[#allocation6 + $0x5d0] sm:$0xff]
    %v1939 = vld [vmem:[#allocation6 + $0x5d8] sm:$0xff]
    %v1940 = vld [vmem:[#allocation6 + $0x5e0] sm:$0xff]
    %v1941 = vld [vmem:[#allocation6 + $0x5e8] sm:$0xff]
    %v1942 = vld [vmem:[#allocation6 + $0x5f0] sm:$0xff]
    %v1943 = vld [vmem:[#allocation6 + $0x5f8] sm:$0xff]
    %v1944 = vld [vmem:[#allocation6 + $0x600] sm:$0xff]
    %v1945 = vld [vmem:[#allocation6 + $0x608] sm:$0xff]
    %v1946 = vld [vmem:[#allocation6 + $0x610] sm:$0xff]
    %v1947 = vld [vmem:[#allocation6 + $0x618] sm:$0xff]
    %v1948 = vld [vmem:[#allocation6 + $0x620] sm:$0xff]
    %v1949 = vld [vmem:[#allocation6 + $0x628] sm:$0xff]
    %v1950 = vld [vmem:[#allocation6 + $0x630] sm:$0xff]
    %v1951 = vld [vmem:[#allocation6 + $0x638] sm:$0xff]
    %v1952 = vld [vmem:[#allocation6 + $0x640] sm:$0xff]
    %v1953 = vld [vmem:[#allocation6 + $0x648] sm:$0xff]
    %v1954 = vld [vmem:[#allocation6 + $0x650] sm:$0xff]
    %v1955 = vld [vmem:[#allocation6 + $0x658] sm:$0xff]
    %v1956 = vld [vmem:[#allocation6 + $0x660] sm:$0xff]
    %v1957 = vld [vmem:[#allocation6 + $0x668] sm:$0xff]
    %v1958 = vld [vmem:[#allocation6 + $0x670] sm:$0xff]
    %v1959 = vld [vmem:[#allocation6 + $0x678] sm:$0xff]
    %v1960 = vld [vmem:[#allocation6 + $0x680] sm:$0xff]
    %v1961 = vld [vmem:[#allocation6 + $0x688] sm:$0xff]
    %v1962 = vld [vmem:[#allocation6 + $0x690] sm:$0xff]
    %v1963 = vld [vmem:[#allocation6 + $0x698] sm:$0xff]
    %v1964 = vld [vmem:[#allocation6 + $0x6a0] sm:$0xff]
    %v1965 = vld [vmem:[#allocation6 + $0x6a8] sm:$0xff]
    %v1966 = vld [vmem:[#allocation6 + $0x6b0] sm:$0xff]
    %v1967 = vld [vmem:[#allocation6 + $0x6b8] sm:$0xff]
    %v1968 = vld [vmem:[#allocation6 + $0x6c0] sm:$0xff]
    %v1969 = vld [vmem:[#allocation6 + $0x6c8] sm:$0xff]
    %v1970 = vld [vmem:[#allocation6 + $0x6d0] sm:$0xff]
    %v1971 = vld [vmem:[#allocation6 + $0x6d8] sm:$0xff]
    %v1972 = vld [vmem:[#allocation6 + $0x6e0] sm:$0xff]
    %v1973 = vld [vmem:[#allocation6 + $0x6e8] sm:$0xff]
    %v1974 = vld [vmem:[#allocation6 + $0x6f0] sm:$0xff]
    %v1975 = vld [vmem:[#allocation6 + $0x6f8] sm:$0xff]
    %v1976 = vld [vmem:[#allocation6 + $0x700] sm:$0xff]
    %v1977 = vld [vmem:[#allocation6 + $0x708] sm:$0xff]
    %v1978 = vld [vmem:[#allocation6 + $0x710] sm:$0xff]
    %v1979 = vld [vmem:[#allocation6 + $0x718] sm:$0xff]
    %v1980 = vld [vmem:[#allocation6 + $0x720] sm:$0xff]
    %v1981 = vld [vmem:[#allocation6 + $0x728] sm:$0xff]
    %v1982 = vld [vmem:[#allocation6 + $0x730] sm:$0xff]
    %v1983 = vld [vmem:[#allocation6 + $0x738] sm:$0xff]
    %v1984 = vld [vmem:[#allocation6 + $0x740] sm:$0xff]
    %v1985 = vld [vmem:[#allocation6 + $0x748] sm:$0xff]
    %v1986 = vld [vmem:[#allocation6 + $0x750] sm:$0xff]
    %v1987 = vld [vmem:[#allocation6 + $0x758] sm:$0xff]
    %v1988 = vld [vmem:[#allocation6 + $0x760] sm:$0xff]
    %v1989 = vld [vmem:[#allocation6 + $0x768] sm:$0xff]
    %v1990 = vld [vmem:[#allocation6 + $0x770] sm:$0xff]
    %v1991 = vld [vmem:[#allocation6 + $0x778] sm:$0xff]
    %v1992 = vld [vmem:[#allocation6 + $0x780] sm:$0xff]
    %v1993 = vld [vmem:[#allocation6 + $0x788] sm:$0xff]
    %v1994 = vld [vmem:[#allocation6 + $0x790] sm:$0xff]
    %v1995 = vld [vmem:[#allocation6 + $0x798] sm:$0xff]
    %v1996 = vld [vmem:[#allocation6 + $0x7a0] sm:$0xff]
    %v1997 = vld [vmem:[#allocation6 + $0x7a8] sm:$0xff]
    %v1998 = vld [vmem:[#allocation6 + $0x7b0] sm:$0xff]
    %v1999 = vld [vmem:[#allocation6 + $0x7b8] sm:$0xff]
    %v2000 = vld [vmem:[#allocation6 + $0x7c0] sm:$0xff]
    %v2001 = vld [vmem:[#allocation6 + $0x7c8] sm:$0xff]
    %v2002 = vld [vmem:[#allocation6 + $0x7d0] sm:$0xff]
    %v2003 = vld [vmem:[#allocation6 + $0x7d8] sm:$0xff]
    %v2004 = vld [vmem:[#allocation6 + $0x7e0] sm:$0xff]
    %v2005 = vld [vmem:[#allocation6 + $0x7e8] sm:$0xff]
    %v2006 = vld [vmem:[#allocation6 + $0x7f0] sm:$0xff]
    %v2007 = vld [vmem:[#allocation6 + $0x7f8] sm:$0xff]
    %v2008 = vld [vmem:[#allocation6 + $0x800] sm:$0xff]
    %v2009 = vld [vmem:[#allocation6 + $0x808] sm:$0xff]
    %v2010 = vld [vmem:[#allocation6 + $0x810] sm:$0xff]
    %v2011 = vld [vmem:[#allocation6 + $0x818] sm:$0xff]
    %v2012 = vld [vmem:[#allocation6 + $0x820] sm:$0xff]
    %v2013 = vld [vmem:[#allocation6 + $0x828] sm:$0xff]
    %v2014 = vld [vmem:[#allocation6 + $0x830] sm:$0xff]
    %v2015 = vld [vmem:[#allocation6 + $0x838] sm:$0xff]
    %v2016 = vld [vmem:[#allocation6 + $0x840] sm:$0xff]
    %v2017 = vld [vmem:[#allocation6 + $0x848] sm:$0xff]
    %v2018 = vld [vmem:[#allocation6 + $0x850] sm:$0xff]
    %v2019 = vld [vmem:[#allocation6 + $0x858] sm:$0xff]
    %v2020 = vld [vmem:[#allocation6 + $0x860] sm:$0xff]
    %v2021 = vld [vmem:[#allocation6 + $0x868] sm:$0xff]
    %v2022 = vld [vmem:[#allocation6 + $0x870] sm:$0xff]
    %v2023 = vld [vmem:[#allocation6 + $0x878] sm:$0xff]
    %v2024 = vld [vmem:[#allocation6 + $0x880] sm:$0xff]
    %v2025 = vld [vmem:[#allocation6 + $0x888] sm:$0xff]
    %v2026 = vld [vmem:[#allocation6 + $0x890] sm:$0xff]
    %v2027 = vld [vmem:[#allocation6 + $0x898] sm:$0xff]
    %v2028 = vld [vmem:[#allocation6 + $0x8a0] sm:$0xff]
    %v2029 = vld [vmem:[#allocation6 + $0x8a8] sm:$0xff]
    %v2030 = vld [vmem:[#allocation6 + $0x8b0] sm:$0xff]
    %v2031 = vld [vmem:[#allocation6 + $0x8b8] sm:$0xff]
    %v2032 = vld [vmem:[#allocation6 + $0x8c0] sm:$0xff]
    %v2033 = vld [vmem:[#allocation6 + $0x8c8] sm:$0xff]
    %v2034 = vld [vmem:[#allocation6 + $0x8d0] sm:$0xff]
    %v2035 = vld [vmem:[#allocation6 + $0x8d8] sm:$0xff]
    %v2036 = vld [vmem:[#allocation6 + $0x8e0] sm:$0xff]
    %v2037 = vld [vmem:[#allocation6 + $0x8e8] sm:$0xff]
    %v2038 = vld [vmem:[#allocation6 + $0x8f0] sm:$0xff]
    %v2039 = vld [vmem:[#allocation6 + $0x8f8] sm:$0xff]
    %v2040 = vld [vmem:[#allocation6 + $0x900] sm:$0xff]
    %v2041 = vld [vmem:[#allocation6 + $0x908] sm:$0xff]
    %v2042 = vld [vmem:[#allocation6 + $0x910] sm:$0xff]
    %v2043 = vld [vmem:[#allocation6 + $0x918] sm:$0xff]
    %v2044 = vld [vmem:[#allocation6 + $0x920] sm:$0xff]
    %v2045 = vld [vmem:[#allocation6 + $0x928] sm:$0xff]
    %v2046 = vld [vmem:[#allocation6 + $0x930] sm:$0xff]
    %v2047 = vld [vmem:[#allocation6 + $0x938] sm:$0xff]
    %v2048 = vld [vmem:[#allocation6 + $0x940] sm:$0xff]
    %v2049 = vld [vmem:[#allocation6 + $0x948] sm:$0xff]
    %v2050 = vld [vmem:[#allocation6 + $0x950] sm:$0xff]
    %v2051 = vld [vmem:[#allocation6 + $0x958] sm:$0xff]
    %v2052 = vld [vmem:[#allocation6 + $0x960] sm:$0xff]
    %v2053 = vld [vmem:[#allocation6 + $0x968] sm:$0xff]
    %v2054 = vld [vmem:[#allocation6 + $0x970] sm:$0xff]
    %v2055 = vld [vmem:[#allocation6 + $0x978] sm:$0xff]
    %v2056 = vld [vmem:[#allocation6 + $0x980] sm:$0xff]
    %v2057 = vld [vmem:[#allocation6 + $0x988] sm:$0xff]
    %v2058 = vld [vmem:[#allocation6 + $0x990] sm:$0xff]
    %v2059 = vld [vmem:[#allocation6 + $0x998] sm:$0xff]
    %v2060 = vld [vmem:[#allocation6 + $0x9a0] sm:$0xff]
    %v2061 = vld [vmem:[#allocation6 + $0x9a8] sm:$0xff]
    %v2062 = vld [vmem:[#allocation6 + $0x9b0] sm:$0xff]
    %v2063 = vld [vmem:[#allocation6 + $0x9b8] sm:$0xff]
    %v2064 = vld [vmem:[#allocation6 + $0x9c0] sm:$0xff]
    %v2065 = vld [vmem:[#allocation6 + $0x9c8] sm:$0xff]
    %v2066 = vld [vmem:[#allocation6 + $0x9d0] sm:$0xff]
    %v2067 = vld [vmem:[#allocation6 + $0x9d8] sm:$0xff]
    %v2068 = vld [vmem:[#allocation6 + $0x9e0] sm:$0xff]
    %v2069 = vld [vmem:[#allocation6 + $0x9e8] sm:$0xff]
    %v2070 = vld [vmem:[#allocation6 + $0x9f0] sm:$0xff]
    %v2071 = vld [vmem:[#allocation6 + $0x9f8] sm:$0xff]
    %v2072 = vld [vmem:[#allocation6 + $0xa00] sm:$0xff]
    %v2073 = vld [vmem:[#allocation6 + $0xa08] sm:$0xff]
    %v2074 = vld [vmem:[#allocation6 + $0xa10] sm:$0xff]
    %v2075 = vld [vmem:[#allocation6 + $0xa18] sm:$0xff]
    %v2076 = vld [vmem:[#allocation6 + $0xa20] sm:$0xff]
    %v2077 = vld [vmem:[#allocation6 + $0xa28] sm:$0xff]
    %v2078 = vld [vmem:[#allocation6 + $0xa30] sm:$0xff]
    %v2079 = vld [vmem:[#allocation6 + $0xa38] sm:$0xff]
    %v2080 = vld [vmem:[#allocation6 + $0xa40] sm:$0xff]
    %v2081 = vld [vmem:[#allocation6 + $0xa48] sm:$0xff]
    %v2082 = vld [vmem:[#allocation6 + $0xa50] sm:$0xff]
    %v2083 = vld [vmem:[#allocation6 + $0xa58] sm:$0xff]
    %v2084 = vld [vmem:[#allocation6 + $0xa60] sm:$0xff]
    %v2085 = vld [vmem:[#allocation6 + $0xa68] sm:$0xff]
    %v2086 = vld [vmem:[#allocation6 + $0xa70] sm:$0xff]
    %v2087 = vld [vmem:[#allocation6 + $0xa78] sm:$0xff]
    %v2088 = vld [vmem:[#allocation6 + $0xa80] sm:$0xff]
    %v2089 = vld [vmem:[#allocation6 + $0xa88] sm:$0xff]
    %v2090 = vld [vmem:[#allocation6 + $0xa90] sm:$0xff]
    %v2091 = vld [vmem:[#allocation6 + $0xa98] sm:$0xff]
    %v2092 = vld [vmem:[#allocation6 + $0xaa0] sm:$0xff]
    %v2093 = vld [vmem:[#allocation6 + $0xaa8] sm:$0xff]
    %v2094 = vld [vmem:[#allocation6 + $0xab0] sm:$0xff]
    %v2095 = vld [vmem:[#allocation6 + $0xab8] sm:$0xff]
    %v2096 = vld [vmem:[#allocation6 + $0xac0] sm:$0xff]
    %v2097 = vld [vmem:[#allocation6 + $0xac8] sm:$0xff]
    %v2098 = vld [vmem:[#allocation6 + $0xad0] sm:$0xff]
    %v2099 = vld [vmem:[#allocation6 + $0xad8] sm:$0xff]
    %v2100 = vld [vmem:[#allocation6 + $0xae0] sm:$0xff]
    %v2101 = vld [vmem:[#allocation6 + $0xae8] sm:$0xff]
    %v2102 = vld [vmem:[#allocation6 + $0xaf0] sm:$0xff]
    %v2103 = vld [vmem:[#allocation6 + $0xaf8] sm:$0xff]
    %v2104 = vld [vmem:[#allocation6 + $0xb00] sm:$0xff]
    %v2105 = vld [vmem:[#allocation6 + $0xb08] sm:$0xff]
    %v2106 = vld [vmem:[#allocation6 + $0xb10] sm:$0xff]
    %v2107 = vld [vmem:[#allocation6 + $0xb18] sm:$0xff]
    %v2108 = vld [vmem:[#allocation6 + $0xb20] sm:$0xff]
    %v2109 = vld [vmem:[#allocation6 + $0xb28] sm:$0xff]
    %v2110 = vld [vmem:[#allocation6 + $0xb30] sm:$0xff]
    %v2111 = vld [vmem:[#allocation6 + $0xb38] sm:$0xff]
    %v2112 = vld [vmem:[#allocation6 + $0xb40] sm:$0xff]
    %v2113 = vld [vmem:[#allocation6 + $0xb48] sm:$0xff]
    %v2114 = vld [vmem:[#allocation6 + $0xb50] sm:$0xff]
    %v2115 = vld [vmem:[#allocation6 + $0xb58] sm:$0xff]
    %v2116 = vld [vmem:[#allocation6 + $0xb60] sm:$0xff]
    %v2117 = vld [vmem:[#allocation6 + $0xb68] sm:$0xff]
    %v2118 = vld [vmem:[#allocation6 + $0xb70] sm:$0xff]
    %v2119 = vld [vmem:[#allocation6 + $0xb78] sm:$0xff]
    %v2120 = vld [vmem:[#allocation6 + $0xb80] sm:$0xff]
    %v2121 = vld [vmem:[#allocation6 + $0xb88] sm:$0xff]
    %v2122 = vld [vmem:[#allocation6 + $0xb90] sm:$0xff]
    %v2123 = vld [vmem:[#allocation6 + $0xb98] sm:$0xff]
    %v2124 = vld [vmem:[#allocation6 + $0xba0] sm:$0xff]
    %v2125 = vld [vmem:[#allocation6 + $0xba8] sm:$0xff]
    %v2126 = vld [vmem:[#allocation6 + $0xbb0] sm:$0xff]
    %v2127 = vld [vmem:[#allocation6 + $0xbb8] sm:$0xff]
    %v2128 = vld [vmem:[#allocation6 + $0xbc0] sm:$0xff]
    %v2129 = vld [vmem:[#allocation6 + $0xbc8] sm:$0xff]
    %v2130 = vld [vmem:[#allocation6 + $0xbd0] sm:$0xff]
    %v2131 = vld [vmem:[#allocation6 + $0xbd8] sm:$0xff]
    %v2132 = vld [vmem:[#allocation6 + $0xbe0] sm:$0xff]
    %v2133 = vld [vmem:[#allocation6 + $0xbe8] sm:$0xff]
    %v2134 = vld [vmem:[#allocation6 + $0xbf0] sm:$0xff]
    %v2135 = vld [vmem:[#allocation6 + $0xbf8] sm:$0xff]
    %v2136 = vld [vmem:[#allocation6 + $0xc00] sm:$0xff]
    %v2137 = vld [vmem:[#allocation6 + $0xc08] sm:$0xff]
    %v2138 = vld [vmem:[#allocation6 + $0xc10] sm:$0xff]
    %v2139 = vld [vmem:[#allocation6 + $0xc18] sm:$0xff]
    %v2140 = vld [vmem:[#allocation6 + $0xc20] sm:$0xff]
    %v2141 = vld [vmem:[#allocation6 + $0xc28] sm:$0xff]
    %v2142 = vld [vmem:[#allocation6 + $0xc30] sm:$0xff]
    %v2143 = vld [vmem:[#allocation6 + $0xc38] sm:$0xff]
    %v2144 = vld [vmem:[#allocation6 + $0xc40] sm:$0xff]
    %v2145 = vld [vmem:[#allocation6 + $0xc48] sm:$0xff]
    %v2146 = vld [vmem:[#allocation6 + $0xc50] sm:$0xff]
    %v2147 = vld [vmem:[#allocation6 + $0xc58] sm:$0xff]
    %v2148 = vld [vmem:[#allocation6 + $0xc60] sm:$0xff]
    %v2149 = vld [vmem:[#allocation6 + $0xc68] sm:$0xff]
    %v2150 = vld [vmem:[#allocation6 + $0xc70] sm:$0xff]
    %v2151 = vld [vmem:[#allocation6 + $0xc78] sm:$0xff]
    %v2152 = vld [vmem:[#allocation6 + $0xc80] sm:$0xff]
    %v2153 = vld [vmem:[#allocation6 + $0xc88] sm:$0xff]
    %v2154 = vld [vmem:[#allocation6 + $0xc90] sm:$0xff]
    %v2155 = vld [vmem:[#allocation6 + $0xc98] sm:$0xff]
    %v2156 = vld [vmem:[#allocation6 + $0xca0] sm:$0xff]
    %v2157 = vld [vmem:[#allocation6 + $0xca8] sm:$0xff]
    %v2158 = vld [vmem:[#allocation6 + $0xcb0] sm:$0xff]
    %v2159 = vld [vmem:[#allocation6 + $0xcb8] sm:$0xff]
    %v2160 = vld [vmem:[#allocation6 + $0xcc0] sm:$0xff]
    %v2161 = vld [vmem:[#allocation6 + $0xcc8] sm:$0xff]
    %v2162 = vld [vmem:[#allocation6 + $0xcd0] sm:$0xff]
    %v2163 = vld [vmem:[#allocation6 + $0xcd8] sm:$0xff]
    %v2164 = vld [vmem:[#allocation6 + $0xce0] sm:$0xff]
    %v2165 = vld [vmem:[#allocation6 + $0xce8] sm:$0xff]
    %v2166 = vld [vmem:[#allocation6 + $0xcf0] sm:$0xff]
    %v2167 = vld [vmem:[#allocation6 + $0xcf8] sm:$0xff]
    %v2168 = vld [vmem:[#allocation6 + $0xd00] sm:$0xff]
    %v2169 = vld [vmem:[#allocation6 + $0xd08] sm:$0xff]
    %v2170 = vld [vmem:[#allocation6 + $0xd10] sm:$0xff]
    %v2171 = vld [vmem:[#allocation6 + $0xd18] sm:$0xff]
    %v2172 = vld [vmem:[#allocation6 + $0xd20] sm:$0xff]
    %v2173 = vld [vmem:[#allocation6 + $0xd28] sm:$0xff]
    %v2174 = vld [vmem:[#allocation6 + $0xd30] sm:$0xff]
    %v2175 = vld [vmem:[#allocation6 + $0xd38] sm:$0xff]
    %v2176 = vld [vmem:[#allocation6 + $0xd40] sm:$0xff]
    %v2177 = vld [vmem:[#allocation6 + $0xd48] sm:$0xff]
    %v2178 = vld [vmem:[#allocation6 + $0xd50] sm:$0xff]
    %v2179 = vld [vmem:[#allocation6 + $0xd58] sm:$0xff]
    %v2180 = vld [vmem:[#allocation6 + $0xd60] sm:$0xff]
    %v2181 = vld [vmem:[#allocation6 + $0xd68] sm:$0xff]
    %v2182 = vld [vmem:[#allocation6 + $0xd70] sm:$0xff]
    %v2183 = vld [vmem:[#allocation6 + $0xd78] sm:$0xff]
    %v2184 = vld [vmem:[#allocation6 + $0xd80] sm:$0xff]
    %v2185 = vld [vmem:[#allocation6 + $0xd88] sm:$0xff]
    %v2186 = vld [vmem:[#allocation6 + $0xd90] sm:$0xff]
    %v2187 = vld [vmem:[#allocation6 + $0xd98] sm:$0xff]
    %v2188 = vld [vmem:[#allocation6 + $0xda0] sm:$0xff]
    %v2189 = vld [vmem:[#allocation6 + $0xda8] sm:$0xff]
    %v2190 = vld [vmem:[#allocation6 + $0xdb0] sm:$0xff]
    %v2191 = vld [vmem:[#allocation6 + $0xdb8] sm:$0xff]
    %v2192 = vld [vmem:[#allocation6 + $0xdc0] sm:$0xff]
    %v2193 = vld [vmem:[#allocation6 + $0xdc8] sm:$0xff]
    %v2194 = vld [vmem:[#allocation6 + $0xdd0] sm:$0xff]
    %v2195 = vld [vmem:[#allocation6 + $0xdd8] sm:$0xff]
    %v2196 = vld [vmem:[#allocation6 + $0xde0] sm:$0xff]
    %v2197 = vld [vmem:[#allocation6 + $0xde8] sm:$0xff]
    %v2198 = vld [vmem:[#allocation6 + $0xdf0] sm:$0xff]
    %v2199 = vld [vmem:[#allocation6 + $0xdf8] sm:$0xff]
    %v2200 = vld [vmem:[#allocation6 + $0xe00] sm:$0xff]
    %v2201 = vld [vmem:[#allocation6 + $0xe08] sm:$0xff]
    %v2202 = vld [vmem:[#allocation6 + $0xe10] sm:$0xff]
    %v2203 = vld [vmem:[#allocation6 + $0xe18] sm:$0xff]
    %v2204 = vld [vmem:[#allocation6 + $0xe20] sm:$0xff]
    %v2205 = vld [vmem:[#allocation6 + $0xe28] sm:$0xff]
    %v2206 = vld [vmem:[#allocation6 + $0xe30] sm:$0xff]
    %v2207 = vld [vmem:[#allocation6 + $0xe38] sm:$0xff]
    %v2208 = vld [vmem:[#allocation6 + $0xe40] sm:$0xff]
    %v2209 = vld [vmem:[#allocation6 + $0xe48] sm:$0xff]
    %v2210 = vld [vmem:[#allocation6 + $0xe50] sm:$0xff]
    %v2211 = vld [vmem:[#allocation6 + $0xe58] sm:$0xff]
    %v2212 = vld [vmem:[#allocation6 + $0xe60] sm:$0xff]
    %v2213 = vld [vmem:[#allocation6 + $0xe68] sm:$0xff]
    %v2214 = vld [vmem:[#allocation6 + $0xe70] sm:$0xff]
    %v2215 = vld [vmem:[#allocation6 + $0xe78] sm:$0xff]
    %v2216 = vld [vmem:[#allocation6 + $0xe80] sm:$0xff]
    %v2217 = vld [vmem:[#allocation6 + $0xe88] sm:$0xff]
    %v2218 = vld [vmem:[#allocation6 + $0xe90] sm:$0xff]
    %v2219 = vld [vmem:[#allocation6 + $0xe98] sm:$0xff]
    %v2220 = vld [vmem:[#allocation6 + $0xea0] sm:$0xff]
    %v2221 = vld [vmem:[#allocation6 + $0xea8] sm:$0xff]
    %v2222 = vld [vmem:[#allocation6 + $0xeb0] sm:$0xff]
    %v2223 = vld [vmem:[#allocation6 + $0xeb8] sm:$0xff]
    %v2224 = vld [vmem:[#allocation6 + $0xec0] sm:$0xff]
    %v2225 = vld [vmem:[#allocation6 + $0xec8] sm:$0xff]
    %v2226 = vld [vmem:[#allocation6 + $0xed0] sm:$0xff]
    %v2227 = vld [vmem:[#allocation6 + $0xed8] sm:$0xff]
    %v2228 = vld [vmem:[#allocation6 + $0xee0] sm:$0xff]
    %v2229 = vld [vmem:[#allocation6 + $0xee8] sm:$0xff]
    %v2230 = vld [vmem:[#allocation6 + $0xef0] sm:$0xff]
    %v2231 = vld [vmem:[#allocation6 + $0xef8] sm:$0xff]
    %v2232 = vld [vmem:[#allocation7] sm:$0xff]
    %v2233 = vld [vmem:[#allocation7 + $0x8] sm:$0xf]
    %v2236 = vlaneseq
    %v2237 = vshrl.u32 %v2236, 7
    %v2238 = vsub.s32 0, %v2237
    %v2239 = vrot.slane %v2232, %v2238
    %v2240 = vlaneseq
    %v2241 = vshrl.u32 %v2240, 7
    %v2242 = vsub.s32 1, %v2241
    %v2243 = vrot.slane %v2232, %v2242
    %v2244 = vlaneseq
    %v2245 = vshrl.u32 %v2244, 7
    %v2246 = vsub.s32 2, %v2245
    %v2247 = vrot.slane %v2232, %v2246
    %v2248 = vlaneseq
    %v2249 = vshrl.u32 %v2248, 7
    %v2250 = vsub.s32 3, %v2249
    %v2251 = vrot.slane %v2232, %v2250
    %v2252 = vlaneseq
    %v2253 = vshrl.u32 %v2252, 7
    %v2254 = vsub.s32 4, %v2253
    %v2255 = vrot.slane %v2232, %v2254
    %v2256 = vlaneseq
    %v2257 = vshrl.u32 %v2256, 7
    %v2258 = vsub.s32 5, %v2257
    %v2259 = vrot.slane %v2232, %v2258
    %v2260 = vlaneseq
    %v2261 = vshrl.u32 %v2260, 7
    %v2262 = vsub.s32 6, %v2261
    %v2263 = vrot.slane %v2232, %v2262
    %v2264 = vlaneseq
    %v2265 = vshrl.u32 %v2264, 7
    %v2266 = vsub.s32 7, %v2265
    %v2267 = vrot.slane %v2232, %v2266
    %v2268 = vlaneseq
    %v2269 = vshrl.u32 %v2268, 7
    %v2270 = vsub.s32 0, %v2269
    %v2271 = vrot.slane %v2233, %v2270
    %v2272 = vlaneseq
    %v2273 = vshrl.u32 %v2272, 7
    %v2274 = vsub.s32 1, %v2273
    %v2275 = vrot.slane %v2233, %v2274
    %v2276 = vlaneseq
    %v2277 = vshrl.u32 %v2276, 7
    %v2278 = vsub.s32 2, %v2277
    %v2279 = vrot.slane %v2233, %v2278
    %v2280 = vlaneseq
    %v2281 = vshrl.u32 %v2280, 7
    %v2282 = vsub.s32 3, %v2281
    %v2283 = vrot.slane %v2233, %v2282
    %v2776 = vunpack.c.l.b16 %v1752
    %v2777 = vunpack.c.h.b16 %v1752
    %v2778 = vunpack.c.l.b16 %v1753
    %v2779 = vunpack.c.h.b16 %v1753
    %v2780 = vunpack.c.l.b16 %v1754
    %v2781 = vunpack.c.h.b16 %v1754
    %v2782 = vunpack.c.l.b16 %v1755
    %v2783 = vunpack.c.h.b16 %v1755
    %v2784 = vunpack.c.l.b16 %v1756
    %v2785 = vunpack.c.h.b16 %v1756
    %v2786 = vunpack.c.l.b16 %v1757
    %v2787 = vunpack.c.h.b16 %v1757
    %v2788 = vunpack.c.l.b16 %v1758
    %v2789 = vunpack.c.h.b16 %v1758
    %v2790 = vunpack.c.l.b16 %v1759
    %v2791 = vunpack.c.h.b16 %v1759
    %v2792 = vunpack.c.l.b16 %v1760
    %v2793 = vunpack.c.h.b16 %v1760
    %v2794 = vunpack.c.l.b16 %v1761
    %v2795 = vunpack.c.h.b16 %v1761
    %v2796 = vunpack.c.l.b16 %v1762
    %v2797 = vunpack.c.h.b16 %v1762
    %v2798 = vunpack.c.l.b16 %v1763
    %v2799 = vunpack.c.h.b16 %v1763
    %v2800 = vunpack.c.l.b16 %v1764
    %v2801 = vunpack.c.h.b16 %v1764
    %v2802 = vunpack.c.l.b16 %v1765
    %v2803 = vunpack.c.h.b16 %v1765
    %v2804 = vunpack.c.l.b16 %v1766
    %v2805 = vunpack.c.h.b16 %v1766
    %v2806 = vunpack.c.l.b16 %v1767
    %v2807 = vunpack.c.h.b16 %v1767
    %v2808 = vunpack.c.l.b16 %v1768
    %v2809 = vunpack.c.h.b16 %v1768
    %v2810 = vunpack.c.l.b16 %v1769
    %v2811 = vunpack.c.h.b16 %v1769
    %v2812 = vunpack.c.l.b16 %v1770
    %v2813 = vunpack.c.h.b16 %v1770
    %v2814 = vunpack.c.l.b16 %v1771
    %v2815 = vunpack.c.h.b16 %v1771
    %v2816 = vunpack.c.l.b16 %v1772
    %v2817 = vunpack.c.h.b16 %v1772
    %v2818 = vunpack.c.l.b16 %v1773
    %v2819 = vunpack.c.h.b16 %v1773
    %v2820 = vunpack.c.l.b16 %v1774
    %v2821 = vunpack.c.h.b16 %v1774
    %v2822 = vunpack.c.l.b16 %v1775
    %v2823 = vunpack.c.h.b16 %v1775
    %v2824 = vunpack.c.l.b16 %v1776
    %v2825 = vunpack.c.h.b16 %v1776
    %v2826 = vunpack.c.l.b16 %v1777
    %v2827 = vunpack.c.h.b16 %v1777
    %v2828 = vunpack.c.l.b16 %v1778
    %v2829 = vunpack.c.h.b16 %v1778
    %v2830 = vunpack.c.l.b16 %v1779
    %v2831 = vunpack.c.h.b16 %v1779
    %v2832 = vunpack.c.l.b16 %v1780
    %v2833 = vunpack.c.h.b16 %v1780
    %v2834 = vunpack.c.l.b16 %v1781
    %v2835 = vunpack.c.h.b16 %v1781
    %v2836 = vunpack.c.l.b16 %v1782
    %v2837 = vunpack.c.h.b16 %v1782
    %v2838 = vunpack.c.l.b16 %v1783
    %v2839 = vunpack.c.h.b16 %v1783
    %v2840 = vunpack.c.l.b16 %v1784
    %v2841 = vunpack.c.h.b16 %v1784
    %v2842 = vunpack.c.l.b16 %v1785
    %v2843 = vunpack.c.h.b16 %v1785
    %v2844 = vunpack.c.l.b16 %v1786
    %v2845 = vunpack.c.h.b16 %v1786
    %v2846 = vunpack.c.l.b16 %v1787
    %v2847 = vunpack.c.h.b16 %v1787
    %v2848 = vunpack.c.l.b16 %v1788
    %v2849 = vunpack.c.h.b16 %v1788
    %v2850 = vunpack.c.l.b16 %v1789
    %v2851 = vunpack.c.h.b16 %v1789
    %v2852 = vunpack.c.l.b16 %v1790
    %v2853 = vunpack.c.h.b16 %v1790
    %v2854 = vunpack.c.l.b16 %v1791
    %v2855 = vunpack.c.h.b16 %v1791
    %v2856 = vunpack.c.l.b16 %v1792
    %v2857 = vunpack.c.h.b16 %v1792
    %v2858 = vunpack.c.l.b16 %v1793
    %v2859 = vunpack.c.h.b16 %v1793
    %v2860 = vunpack.c.l.b16 %v1794
    %v2861 = vunpack.c.h.b16 %v1794
    %v2862 = vunpack.c.l.b16 %v1795
    %v2863 = vunpack.c.h.b16 %v1795
    %v2864 = vunpack.c.l.b16 %v1796
    %v2865 = vunpack.c.h.b16 %v1796
    %v2866 = vunpack.c.l.b16 %v1797
    %v2867 = vunpack.c.h.b16 %v1797
    %v2868 = vunpack.c.l.b16 %v1798
    %v2869 = vunpack.c.h.b16 %v1798
    %v2870 = vunpack.c.l.b16 %v1799
    %v2871 = vunpack.c.h.b16 %v1799
    %v2872 = vunpack.c.l.b16 %v1800
    %v2873 = vunpack.c.h.b16 %v1800
    %v2874 = vunpack.c.l.b16 %v1801
    %v2875 = vunpack.c.h.b16 %v1801
    %v2876 = vunpack.c.l.b16 %v1802
    %v2877 = vunpack.c.h.b16 %v1802
    %v2878 = vunpack.c.l.b16 %v1803
    %v2879 = vunpack.c.h.b16 %v1803
    %v2880 = vunpack.c.l.b16 %v1804
    %v2881 = vunpack.c.h.b16 %v1804
    %v2882 = vunpack.c.l.b16 %v1805
    %v2883 = vunpack.c.h.b16 %v1805
    %v2884 = vunpack.c.l.b16 %v1806
    %v2885 = vunpack.c.h.b16 %v1806
    %v2886 = vunpack.c.l.b16 %v1807
    %v2887 = vunpack.c.h.b16 %v1807
    %v2888 = vunpack.c.l.b16 %v1808
    %v2889 = vunpack.c.h.b16 %v1808
    %v2890 = vunpack.c.l.b16 %v1809
    %v2891 = vunpack.c.h.b16 %v1809
    %v2892 = vunpack.c.l.b16 %v1810
    %v2893 = vunpack.c.h.b16 %v1810
    %v2894 = vunpack.c.l.b16 %v1811
    %v2895 = vunpack.c.h.b16 %v1811
    %v2896 = vunpack.c.l.b16 %v1812
    %v2897 = vunpack.c.h.b16 %v1812
    %v2898 = vunpack.c.l.b16 %v1813
    %v2899 = vunpack.c.h.b16 %v1813
    %v2900 = vunpack.c.l.b16 %v1814
    %v2901 = vunpack.c.h.b16 %v1814
    %v2902 = vunpack.c.l.b16 %v1815
    %v2903 = vunpack.c.h.b16 %v1815
    %v2904 = vunpack.c.l.b16 %v1816
    %v2905 = vunpack.c.h.b16 %v1816
    %v2906 = vunpack.c.l.b16 %v1817
    %v2907 = vunpack.c.h.b16 %v1817
    %v2908 = vunpack.c.l.b16 %v1818
    %v2909 = vunpack.c.h.b16 %v1818
    %v2910 = vunpack.c.l.b16 %v1819
    %v2911 = vunpack.c.h.b16 %v1819
    %v2912 = vunpack.c.l.b16 %v1820
    %v2913 = vunpack.c.h.b16 %v1820
    %v2914 = vunpack.c.l.b16 %v1821
    %v2915 = vunpack.c.h.b16 %v1821
    %v2916 = vunpack.c.l.b16 %v1822
    %v2917 = vunpack.c.h.b16 %v1822
    %v2918 = vunpack.c.l.b16 %v1823
    %v2919 = vunpack.c.h.b16 %v1823
    %v2920 = vunpack.c.l.b16 %v1824
    %v2921 = vunpack.c.h.b16 %v1824
    %v2922 = vunpack.c.l.b16 %v1825
    %v2923 = vunpack.c.h.b16 %v1825
    %v2924 = vunpack.c.l.b16 %v1826
    %v2925 = vunpack.c.h.b16 %v1826
    %v2926 = vunpack.c.l.b16 %v1827
    %v2927 = vunpack.c.h.b16 %v1827
    %v2928 = vunpack.c.l.b16 %v1828
    %v2929 = vunpack.c.h.b16 %v1828
    %v2930 = vunpack.c.l.b16 %v1829
    %v2931 = vunpack.c.h.b16 %v1829
    %v2932 = vunpack.c.l.b16 %v1830
    %v2933 = vunpack.c.h.b16 %v1830
    %v2934 = vunpack.c.l.b16 %v1831
    %v2935 = vunpack.c.h.b16 %v1831
    %v2936 = vunpack.c.l.b16 %v1832
    %v2937 = vunpack.c.h.b16 %v1832
    %v2938 = vunpack.c.l.b16 %v1833
    %v2939 = vunpack.c.h.b16 %v1833
    %v2940 = vunpack.c.l.b16 %v1834
    %v2941 = vunpack.c.h.b16 %v1834
    %v2942 = vunpack.c.l.b16 %v1835
    %v2943 = vunpack.c.h.b16 %v1835
    %v2944 = vunpack.c.l.b16 %v1836
    %v2945 = vunpack.c.h.b16 %v1836
    %v2946 = vunpack.c.l.b16 %v1837
    %v2947 = vunpack.c.h.b16 %v1837
    %v2948 = vunpack.c.l.b16 %v1838
    %v2949 = vunpack.c.h.b16 %v1838
    %v2950 = vunpack.c.l.b16 %v1839
    %v2951 = vunpack.c.h.b16 %v1839
    %v2952 = vunpack.c.l.b16 %v1840
    %v2953 = vunpack.c.h.b16 %v1840
    %v2954 = vunpack.c.l.b16 %v1841
    %v2955 = vunpack.c.h.b16 %v1841
    %v2956 = vunpack.c.l.b16 %v1842
    %v2957 = vunpack.c.h.b16 %v1842
    %v2958 = vunpack.c.l.b16 %v1843
    %v2959 = vunpack.c.h.b16 %v1843
    %v2960 = vunpack.c.l.b16 %v1844
    %v2961 = vunpack.c.h.b16 %v1844
    %v2962 = vunpack.c.l.b16 %v1845
    %v2963 = vunpack.c.h.b16 %v1845
    %v2964 = vunpack.c.l.b16 %v1846
    %v2965 = vunpack.c.h.b16 %v1846
    %v2966 = vunpack.c.l.b16 %v1847
    %v2967 = vunpack.c.h.b16 %v1847
    %v2968 = vunpack.c.l.b16 %v1848
    %v2969 = vunpack.c.h.b16 %v1848
    %v2970 = vunpack.c.l.b16 %v1849
    %v2971 = vunpack.c.h.b16 %v1849
    %v2972 = vunpack.c.l.b16 %v1850
    %v2973 = vunpack.c.h.b16 %v1850
    %v2974 = vunpack.c.l.b16 %v1851
    %v2975 = vunpack.c.h.b16 %v1851
    %v2976 = vunpack.c.l.b16 %v1852
    %v2977 = vunpack.c.h.b16 %v1852
    %v2978 = vunpack.c.l.b16 %v1853
    %v2979 = vunpack.c.h.b16 %v1853
    %v2980 = vunpack.c.l.b16 %v1854
    %v2981 = vunpack.c.h.b16 %v1854
    %v2982 = vunpack.c.l.b16 %v1855
    %v2983 = vunpack.c.h.b16 %v1855
    %v2984 = vunpack.c.l.b16 %v1856
    %v2985 = vunpack.c.h.b16 %v1856
    %v2986 = vunpack.c.l.b16 %v1857
    %v2987 = vunpack.c.h.b16 %v1857
    %v2988 = vunpack.c.l.b16 %v1858
    %v2989 = vunpack.c.h.b16 %v1858
    %v2990 = vunpack.c.l.b16 %v1859
    %v2991 = vunpack.c.h.b16 %v1859
    %v2992 = vunpack.c.l.b16 %v1860
    %v2993 = vunpack.c.h.b16 %v1860
    %v2994 = vunpack.c.l.b16 %v1861
    %v2995 = vunpack.c.h.b16 %v1861
    %v2996 = vunpack.c.l.b16 %v1862
    %v2997 = vunpack.c.h.b16 %v1862
    %v2998 = vunpack.c.l.b16 %v1863
    %v2999 = vunpack.c.h.b16 %v1863
    %v3000 = vunpack.c.l.b16 %v1864
    %v3001 = vunpack.c.h.b16 %v1864
    %v3002 = vunpack.c.l.b16 %v1865
    %v3003 = vunpack.c.h.b16 %v1865
    %v3004 = vunpack.c.l.b16 %v1866
    %v3005 = vunpack.c.h.b16 %v1866
    %v3006 = vunpack.c.l.b16 %v1867
    %v3007 = vunpack.c.h.b16 %v1867
    %v3008 = vunpack.c.l.b16 %v1868
    %v3009 = vunpack.c.h.b16 %v1868
    %v3010 = vunpack.c.l.b16 %v1869
    %v3011 = vunpack.c.h.b16 %v1869
    %v3012 = vunpack.c.l.b16 %v1870
    %v3013 = vunpack.c.h.b16 %v1870
    %v3014 = vunpack.c.l.b16 %v1871
    %v3015 = vunpack.c.h.b16 %v1871
    %v3016 = vunpack.c.l.b16 %v1872
    %v3017 = vunpack.c.h.b16 %v1872
    %v3018 = vunpack.c.l.b16 %v1873
    %v3019 = vunpack.c.h.b16 %v1873
    %v3020 = vunpack.c.l.b16 %v1874
    %v3021 = vunpack.c.h.b16 %v1874
    %v3022 = vunpack.c.l.b16 %v1875
    %v3023 = vunpack.c.h.b16 %v1875
    %v3024 = vunpack.c.l.b16 %v1876
    %v3025 = vunpack.c.h.b16 %v1876
    %v3026 = vunpack.c.l.b16 %v1877
    %v3027 = vunpack.c.h.b16 %v1877
    %v3028 = vunpack.c.l.b16 %v1878
    %v3029 = vunpack.c.h.b16 %v1878
    %v3030 = vunpack.c.l.b16 %v1879
    %v3031 = vunpack.c.h.b16 %v1879
    %v3032 = vunpack.c.l.b16 %v1880
    %v3033 = vunpack.c.h.b16 %v1880
    %v3034 = vunpack.c.l.b16 %v1881
    %v3035 = vunpack.c.h.b16 %v1881
    %v3036 = vunpack.c.l.b16 %v1882
    %v3037 = vunpack.c.h.b16 %v1882
    %v3038 = vunpack.c.l.b16 %v1883
    %v3039 = vunpack.c.h.b16 %v1883
    %v3040 = vunpack.c.l.b16 %v1884
    %v3041 = vunpack.c.h.b16 %v1884
    %v3042 = vunpack.c.l.b16 %v1885
    %v3043 = vunpack.c.h.b16 %v1885
    %v3044 = vunpack.c.l.b16 %v1886
    %v3045 = vunpack.c.h.b16 %v1886
    %v3046 = vunpack.c.l.b16 %v1887
    %v3047 = vunpack.c.h.b16 %v1887
    %v3048 = vunpack.c.l.b16 %v1888
    %v3049 = vunpack.c.h.b16 %v1888
    %v3050 = vunpack.c.l.b16 %v1889
    %v3051 = vunpack.c.h.b16 %v1889
    %v3052 = vunpack.c.l.b16 %v1890
    %v3053 = vunpack.c.h.b16 %v1890
    %v3054 = vunpack.c.l.b16 %v1891
    %v3055 = vunpack.c.h.b16 %v1891
    %v3056 = vunpack.c.l.b16 %v1892
    %v3057 = vunpack.c.h.b16 %v1892
    %v3058 = vunpack.c.l.b16 %v1893
    %v3059 = vunpack.c.h.b16 %v1893
    %v3060 = vunpack.c.l.b16 %v1894
    %v3061 = vunpack.c.h.b16 %v1894
    %v3062 = vunpack.c.l.b16 %v1895
    %v3063 = vunpack.c.h.b16 %v1895
    %v3064 = vunpack.c.l.b16 %v1896
    %v3065 = vunpack.c.h.b16 %v1896
    %v3066 = vunpack.c.l.b16 %v1897
    %v3067 = vunpack.c.h.b16 %v1897
    %v3068 = vunpack.c.l.b16 %v1898
    %v3069 = vunpack.c.h.b16 %v1898
    %v3070 = vunpack.c.l.b16 %v1899
    %v3071 = vunpack.c.h.b16 %v1899
    %v3072 = vunpack.c.l.b16 %v1900
    %v3073 = vunpack.c.h.b16 %v1900
    %v3074 = vunpack.c.l.b16 %v1901
    %v3075 = vunpack.c.h.b16 %v1901
    %v3076 = vunpack.c.l.b16 %v1902
    %v3077 = vunpack.c.h.b16 %v1902
    %v3078 = vunpack.c.l.b16 %v1903
    %v3079 = vunpack.c.h.b16 %v1903
    %v3080 = vunpack.c.l.b16 %v1904
    %v3081 = vunpack.c.h.b16 %v1904
    %v3082 = vunpack.c.l.b16 %v1905
    %v3083 = vunpack.c.h.b16 %v1905
    %v3084 = vunpack.c.l.b16 %v1906
    %v3085 = vunpack.c.h.b16 %v1906
    %v3086 = vunpack.c.l.b16 %v1907
    %v3087 = vunpack.c.h.b16 %v1907
    %v3088 = vunpack.c.l.b16 %v1908
    %v3089 = vunpack.c.h.b16 %v1908
    %v3090 = vunpack.c.l.b16 %v1909
    %v3091 = vunpack.c.h.b16 %v1909
    %v3092 = vunpack.c.l.b16 %v1910
    %v3093 = vunpack.c.h.b16 %v1910
    %v3094 = vunpack.c.l.b16 %v1911
    %v3095 = vunpack.c.h.b16 %v1911
    %v3096 = vunpack.c.l.b16 %v1912
    %v3097 = vunpack.c.h.b16 %v1912
    %v3098 = vunpack.c.l.b16 %v1913
    %v3099 = vunpack.c.h.b16 %v1913
    %v3100 = vunpack.c.l.b16 %v1914
    %v3101 = vunpack.c.h.b16 %v1914
    %v3102 = vunpack.c.l.b16 %v1915
    %v3103 = vunpack.c.h.b16 %v1915
    %v3104 = vunpack.c.l.b16 %v1916
    %v3105 = vunpack.c.h.b16 %v1916
    %v3106 = vunpack.c.l.b16 %v1917
    %v3107 = vunpack.c.h.b16 %v1917
    %v3108 = vunpack.c.l.b16 %v1918
    %v3109 = vunpack.c.h.b16 %v1918
    %v3110 = vunpack.c.l.b16 %v1919
    %v3111 = vunpack.c.h.b16 %v1919
    %v3112 = vunpack.c.l.b16 %v1920
    %v3113 = vunpack.c.h.b16 %v1920
    %v3114 = vunpack.c.l.b16 %v1921
    %v3115 = vunpack.c.h.b16 %v1921
    %v3116 = vunpack.c.l.b16 %v1922
    %v3117 = vunpack.c.h.b16 %v1922
    %v3118 = vunpack.c.l.b16 %v1923
    %v3119 = vunpack.c.h.b16 %v1923
    %v3120 = vunpack.c.l.b16 %v1924
    %v3121 = vunpack.c.h.b16 %v1924
    %v3122 = vunpack.c.l.b16 %v1925
    %v3123 = vunpack.c.h.b16 %v1925
    %v3124 = vunpack.c.l.b16 %v1926
    %v3125 = vunpack.c.h.b16 %v1926
    %v3126 = vunpack.c.l.b16 %v1927
    %v3127 = vunpack.c.h.b16 %v1927
    %v3128 = vunpack.c.l.b16 %v1928
    %v3129 = vunpack.c.h.b16 %v1928
    %v3130 = vunpack.c.l.b16 %v1929
    %v3131 = vunpack.c.h.b16 %v1929
    %v3132 = vunpack.c.l.b16 %v1930
    %v3133 = vunpack.c.h.b16 %v1930
    %v3134 = vunpack.c.l.b16 %v1931
    %v3135 = vunpack.c.h.b16 %v1931
    %v3136 = vunpack.c.l.b16 %v1932
    %v3137 = vunpack.c.h.b16 %v1932
    %v3138 = vunpack.c.l.b16 %v1933
    %v3139 = vunpack.c.h.b16 %v1933
    %v3140 = vunpack.c.l.b16 %v1934
    %v3141 = vunpack.c.h.b16 %v1934
    %v3142 = vunpack.c.l.b16 %v1935
    %v3143 = vunpack.c.h.b16 %v1935
    %v3144 = vunpack.c.l.b16 %v1936
    %v3145 = vunpack.c.h.b16 %v1936
    %v3146 = vunpack.c.l.b16 %v1937
    %v3147 = vunpack.c.h.b16 %v1937
    %v3148 = vunpack.c.l.b16 %v1938
    %v3149 = vunpack.c.h.b16 %v1938
    %v3150 = vunpack.c.l.b16 %v1939
    %v3151 = vunpack.c.h.b16 %v1939
    %v3152 = vunpack.c.l.b16 %v1940
    %v3153 = vunpack.c.h.b16 %v1940
    %v3154 = vunpack.c.l.b16 %v1941
    %v3155 = vunpack.c.h.b16 %v1941
    %v3156 = vunpack.c.l.b16 %v1942
    %v3157 = vunpack.c.h.b16 %v1942
    %v3158 = vunpack.c.l.b16 %v1943
    %v3159 = vunpack.c.h.b16 %v1943
    %v3160 = vunpack.c.l.b16 %v1944
    %v3161 = vunpack.c.h.b16 %v1944
    %v3162 = vunpack.c.l.b16 %v1945
    %v3163 = vunpack.c.h.b16 %v1945
    %v3164 = vunpack.c.l.b16 %v1946
    %v3165 = vunpack.c.h.b16 %v1946
    %v3166 = vunpack.c.l.b16 %v1947
    %v3167 = vunpack.c.h.b16 %v1947
    %v3168 = vunpack.c.l.b16 %v1948
    %v3169 = vunpack.c.h.b16 %v1948
    %v3170 = vunpack.c.l.b16 %v1949
    %v3171 = vunpack.c.h.b16 %v1949
    %v3172 = vunpack.c.l.b16 %v1950
    %v3173 = vunpack.c.h.b16 %v1950
    %v3174 = vunpack.c.l.b16 %v1951
    %v3175 = vunpack.c.h.b16 %v1951
    %v3176 = vunpack.c.l.b16 %v1952
    %v3177 = vunpack.c.h.b16 %v1952
    %v3178 = vunpack.c.l.b16 %v1953
    %v3179 = vunpack.c.h.b16 %v1953
    %v3180 = vunpack.c.l.b16 %v1954
    %v3181 = vunpack.c.h.b16 %v1954
    %v3182 = vunpack.c.l.b16 %v1955
    %v3183 = vunpack.c.h.b16 %v1955
    %v3184 = vunpack.c.l.b16 %v1956
    %v3185 = vunpack.c.h.b16 %v1956
    %v3186 = vunpack.c.l.b16 %v1957
    %v3187 = vunpack.c.h.b16 %v1957
    %v3188 = vunpack.c.l.b16 %v1958
    %v3189 = vunpack.c.h.b16 %v1958
    %v3190 = vunpack.c.l.b16 %v1959
    %v3191 = vunpack.c.h.b16 %v1959
    %v3192 = vunpack.c.l.b16 %v1960
    %v3193 = vunpack.c.h.b16 %v1960
    %v3194 = vunpack.c.l.b16 %v1961
    %v3195 = vunpack.c.h.b16 %v1961
    %v3196 = vunpack.c.l.b16 %v1962
    %v3197 = vunpack.c.h.b16 %v1962
    %v3198 = vunpack.c.l.b16 %v1963
    %v3199 = vunpack.c.h.b16 %v1963
    %v3200 = vunpack.c.l.b16 %v1964
    %v3201 = vunpack.c.h.b16 %v1964
    %v3202 = vunpack.c.l.b16 %v1965
    %v3203 = vunpack.c.h.b16 %v1965
    %v3204 = vunpack.c.l.b16 %v1966
    %v3205 = vunpack.c.h.b16 %v1966
    %v3206 = vunpack.c.l.b16 %v1967
    %v3207 = vunpack.c.h.b16 %v1967
    %v3208 = vunpack.c.l.b16 %v1968
    %v3209 = vunpack.c.h.b16 %v1968
    %v3210 = vunpack.c.l.b16 %v1969
    %v3211 = vunpack.c.h.b16 %v1969
    %v3212 = vunpack.c.l.b16 %v1970
    %v3213 = vunpack.c.h.b16 %v1970
    %v3214 = vunpack.c.l.b16 %v1971
    %v3215 = vunpack.c.h.b16 %v1971
    %v3216 = vunpack.c.l.b16 %v1972
    %v3217 = vunpack.c.h.b16 %v1972
    %v3218 = vunpack.c.l.b16 %v1973
    %v3219 = vunpack.c.h.b16 %v1973
    %v3220 = vunpack.c.l.b16 %v1974
    %v3221 = vunpack.c.h.b16 %v1974
    %v3222 = vunpack.c.l.b16 %v1975
    %v3223 = vunpack.c.h.b16 %v1975
    %v3224 = vunpack.c.l.b16 %v1976
    %v3225 = vunpack.c.h.b16 %v1976
    %v3226 = vunpack.c.l.b16 %v1977
    %v3227 = vunpack.c.h.b16 %v1977
    %v3228 = vunpack.c.l.b16 %v1978
    %v3229 = vunpack.c.h.b16 %v1978
    %v3230 = vunpack.c.l.b16 %v1979
    %v3231 = vunpack.c.h.b16 %v1979
    %v3232 = vunpack.c.l.b16 %v1980
    %v3233 = vunpack.c.h.b16 %v1980
    %v3234 = vunpack.c.l.b16 %v1981
    %v3235 = vunpack.c.h.b16 %v1981
    %v3236 = vunpack.c.l.b16 %v1982
    %v3237 = vunpack.c.h.b16 %v1982
    %v3238 = vunpack.c.l.b16 %v1983
    %v3239 = vunpack.c.h.b16 %v1983
    %v3240 = vunpack.c.l.b16 %v1984
    %v3241 = vunpack.c.h.b16 %v1984
    %v3242 = vunpack.c.l.b16 %v1985
    %v3243 = vunpack.c.h.b16 %v1985
    %v3244 = vunpack.c.l.b16 %v1986
    %v3245 = vunpack.c.h.b16 %v1986
    %v3246 = vunpack.c.l.b16 %v1987
    %v3247 = vunpack.c.h.b16 %v1987
    %v3248 = vunpack.c.l.b16 %v1988
    %v3249 = vunpack.c.h.b16 %v1988
    %v3250 = vunpack.c.l.b16 %v1989
    %v3251 = vunpack.c.h.b16 %v1989
    %v3252 = vunpack.c.l.b16 %v1990
    %v3253 = vunpack.c.h.b16 %v1990
    %v3254 = vunpack.c.l.b16 %v1991
    %v3255 = vunpack.c.h.b16 %v1991
    %v3256 = vunpack.c.l.b16 %v1992
    %v3257 = vunpack.c.h.b16 %v1992
    %v3258 = vunpack.c.l.b16 %v1993
    %v3259 = vunpack.c.h.b16 %v1993
    %v3260 = vunpack.c.l.b16 %v1994
    %v3261 = vunpack.c.h.b16 %v1994
    %v3262 = vunpack.c.l.b16 %v1995
    %v3263 = vunpack.c.h.b16 %v1995
    %v3264 = vunpack.c.l.b16 %v1996
    %v3265 = vunpack.c.h.b16 %v1996
    %v3266 = vunpack.c.l.b16 %v1997
    %v3267 = vunpack.c.h.b16 %v1997
    %v3268 = vunpack.c.l.b16 %v1998
    %v3269 = vunpack.c.h.b16 %v1998
    %v3270 = vunpack.c.l.b16 %v1999
    %v3271 = vunpack.c.h.b16 %v1999
    %v3272 = vunpack.c.l.b16 %v2000
    %v3273 = vunpack.c.h.b16 %v2000
    %v3274 = vunpack.c.l.b16 %v2001
    %v3275 = vunpack.c.h.b16 %v2001
    %v3276 = vunpack.c.l.b16 %v2002
    %v3277 = vunpack.c.h.b16 %v2002
    %v3278 = vunpack.c.l.b16 %v2003
    %v3279 = vunpack.c.h.b16 %v2003
    %v3280 = vunpack.c.l.b16 %v2004
    %v3281 = vunpack.c.h.b16 %v2004
    %v3282 = vunpack.c.l.b16 %v2005
    %v3283 = vunpack.c.h.b16 %v2005
    %v3284 = vunpack.c.l.b16 %v2006
    %v3285 = vunpack.c.h.b16 %v2006
    %v3286 = vunpack.c.l.b16 %v2007
    %v3287 = vunpack.c.h.b16 %v2007
    %v3288 = vunpack.c.l.b16 %v2008
    %v3289 = vunpack.c.h.b16 %v2008
    %v3290 = vunpack.c.l.b16 %v2009
    %v3291 = vunpack.c.h.b16 %v2009
    %v3292 = vunpack.c.l.b16 %v2010
    %v3293 = vunpack.c.h.b16 %v2010
    %v3294 = vunpack.c.l.b16 %v2011
    %v3295 = vunpack.c.h.b16 %v2011
    %v3296 = vunpack.c.l.b16 %v2012
    %v3297 = vunpack.c.h.b16 %v2012
    %v3298 = vunpack.c.l.b16 %v2013
    %v3299 = vunpack.c.h.b16 %v2013
    %v3300 = vunpack.c.l.b16 %v2014
    %v3301 = vunpack.c.h.b16 %v2014
    %v3302 = vunpack.c.l.b16 %v2015
    %v3303 = vunpack.c.h.b16 %v2015
    %v3304 = vunpack.c.l.b16 %v2016
    %v3305 = vunpack.c.h.b16 %v2016
    %v3306 = vunpack.c.l.b16 %v2017
    %v3307 = vunpack.c.h.b16 %v2017
    %v3308 = vunpack.c.l.b16 %v2018
    %v3309 = vunpack.c.h.b16 %v2018
    %v3310 = vunpack.c.l.b16 %v2019
    %v3311 = vunpack.c.h.b16 %v2019
    %v3312 = vunpack.c.l.b16 %v2020
    %v3313 = vunpack.c.h.b16 %v2020
    %v3314 = vunpack.c.l.b16 %v2021
    %v3315 = vunpack.c.h.b16 %v2021
    %v3316 = vunpack.c.l.b16 %v2022
    %v3317 = vunpack.c.h.b16 %v2022
    %v3318 = vunpack.c.l.b16 %v2023
    %v3319 = vunpack.c.h.b16 %v2023
    %v3320 = vunpack.c.l.b16 %v2024
    %v3321 = vunpack.c.h.b16 %v2024
    %v3322 = vunpack.c.l.b16 %v2025
    %v3323 = vunpack.c.h.b16 %v2025
    %v3324 = vunpack.c.l.b16 %v2026
    %v3325 = vunpack.c.h.b16 %v2026
    %v3326 = vunpack.c.l.b16 %v2027
    %v3327 = vunpack.c.h.b16 %v2027
    %v3328 = vunpack.c.l.b16 %v2028
    %v3329 = vunpack.c.h.b16 %v2028
    %v3330 = vunpack.c.l.b16 %v2029
    %v3331 = vunpack.c.h.b16 %v2029
    %v3332 = vunpack.c.l.b16 %v2030
    %v3333 = vunpack.c.h.b16 %v2030
    %v3334 = vunpack.c.l.b16 %v2031
    %v3335 = vunpack.c.h.b16 %v2031
    %v3336 = vunpack.c.l.b16 %v2032
    %v3337 = vunpack.c.h.b16 %v2032
    %v3338 = vunpack.c.l.b16 %v2033
    %v3339 = vunpack.c.h.b16 %v2033
    %v3340 = vunpack.c.l.b16 %v2034
    %v3341 = vunpack.c.h.b16 %v2034
    %v3342 = vunpack.c.l.b16 %v2035
    %v3343 = vunpack.c.h.b16 %v2035
    %v3344 = vunpack.c.l.b16 %v2036
    %v3345 = vunpack.c.h.b16 %v2036
    %v3346 = vunpack.c.l.b16 %v2037
    %v3347 = vunpack.c.h.b16 %v2037
    %v3348 = vunpack.c.l.b16 %v2038
    %v3349 = vunpack.c.h.b16 %v2038
    %v3350 = vunpack.c.l.b16 %v2039
    %v3351 = vunpack.c.h.b16 %v2039
    %v3352 = vunpack.c.l.b16 %v2040
    %v3353 = vunpack.c.h.b16 %v2040
    %v3354 = vunpack.c.l.b16 %v2041
    %v3355 = vunpack.c.h.b16 %v2041
    %v3356 = vunpack.c.l.b16 %v2042
    %v3357 = vunpack.c.h.b16 %v2042
    %v3358 = vunpack.c.l.b16 %v2043
    %v3359 = vunpack.c.h.b16 %v2043
    %v3360 = vunpack.c.l.b16 %v2044
    %v3361 = vunpack.c.h.b16 %v2044
    %v3362 = vunpack.c.l.b16 %v2045
    %v3363 = vunpack.c.h.b16 %v2045
    %v3364 = vunpack.c.l.b16 %v2046
    %v3365 = vunpack.c.h.b16 %v2046
    %v3366 = vunpack.c.l.b16 %v2047
    %v3367 = vunpack.c.h.b16 %v2047
    %v3368 = vunpack.c.l.b16 %v2048
    %v3369 = vunpack.c.h.b16 %v2048
    %v3370 = vunpack.c.l.b16 %v2049
    %v3371 = vunpack.c.h.b16 %v2049
    %v3372 = vunpack.c.l.b16 %v2050
    %v3373 = vunpack.c.h.b16 %v2050
    %v3374 = vunpack.c.l.b16 %v2051
    %v3375 = vunpack.c.h.b16 %v2051
    %v3376 = vunpack.c.l.b16 %v2052
    %v3377 = vunpack.c.h.b16 %v2052
    %v3378 = vunpack.c.l.b16 %v2053
    %v3379 = vunpack.c.h.b16 %v2053
    %v3380 = vunpack.c.l.b16 %v2054
    %v3381 = vunpack.c.h.b16 %v2054
    %v3382 = vunpack.c.l.b16 %v2055
    %v3383 = vunpack.c.h.b16 %v2055
    %v3384 = vunpack.c.l.b16 %v2056
    %v3385 = vunpack.c.h.b16 %v2056
    %v3386 = vunpack.c.l.b16 %v2057
    %v3387 = vunpack.c.h.b16 %v2057
    %v3388 = vunpack.c.l.b16 %v2058
    %v3389 = vunpack.c.h.b16 %v2058
    %v3390 = vunpack.c.l.b16 %v2059
    %v3391 = vunpack.c.h.b16 %v2059
    %v3392 = vunpack.c.l.b16 %v2060
    %v3393 = vunpack.c.h.b16 %v2060
    %v3394 = vunpack.c.l.b16 %v2061
    %v3395 = vunpack.c.h.b16 %v2061
    %v3396 = vunpack.c.l.b16 %v2062
    %v3397 = vunpack.c.h.b16 %v2062
    %v3398 = vunpack.c.l.b16 %v2063
    %v3399 = vunpack.c.h.b16 %v2063
    %v3400 = vunpack.c.l.b16 %v2064
    %v3401 = vunpack.c.h.b16 %v2064
    %v3402 = vunpack.c.l.b16 %v2065
    %v3403 = vunpack.c.h.b16 %v2065
    %v3404 = vunpack.c.l.b16 %v2066
    %v3405 = vunpack.c.h.b16 %v2066
    %v3406 = vunpack.c.l.b16 %v2067
    %v3407 = vunpack.c.h.b16 %v2067
    %v3408 = vunpack.c.l.b16 %v2068
    %v3409 = vunpack.c.h.b16 %v2068
    %v3410 = vunpack.c.l.b16 %v2069
    %v3411 = vunpack.c.h.b16 %v2069
    %v3412 = vunpack.c.l.b16 %v2070
    %v3413 = vunpack.c.h.b16 %v2070
    %v3414 = vunpack.c.l.b16 %v2071
    %v3415 = vunpack.c.h.b16 %v2071
    %v3416 = vunpack.c.l.b16 %v2072
    %v3417 = vunpack.c.h.b16 %v2072
    %v3418 = vunpack.c.l.b16 %v2073
    %v3419 = vunpack.c.h.b16 %v2073
    %v3420 = vunpack.c.l.b16 %v2074
    %v3421 = vunpack.c.h.b16 %v2074
    %v3422 = vunpack.c.l.b16 %v2075
    %v3423 = vunpack.c.h.b16 %v2075
    %v3424 = vunpack.c.l.b16 %v2076
    %v3425 = vunpack.c.h.b16 %v2076
    %v3426 = vunpack.c.l.b16 %v2077
    %v3427 = vunpack.c.h.b16 %v2077
    %v3428 = vunpack.c.l.b16 %v2078
    %v3429 = vunpack.c.h.b16 %v2078
    %v3430 = vunpack.c.l.b16 %v2079
    %v3431 = vunpack.c.h.b16 %v2079
    %v3432 = vunpack.c.l.b16 %v2080
    %v3433 = vunpack.c.h.b16 %v2080
    %v3434 = vunpack.c.l.b16 %v2081
    %v3435 = vunpack.c.h.b16 %v2081
    %v3436 = vunpack.c.l.b16 %v2082
    %v3437 = vunpack.c.h.b16 %v2082
    %v3438 = vunpack.c.l.b16 %v2083
    %v3439 = vunpack.c.h.b16 %v2083
    %v3440 = vunpack.c.l.b16 %v2084
    %v3441 = vunpack.c.h.b16 %v2084
    %v3442 = vunpack.c.l.b16 %v2085
    %v3443 = vunpack.c.h.b16 %v2085
    %v3444 = vunpack.c.l.b16 %v2086
    %v3445 = vunpack.c.h.b16 %v2086
    %v3446 = vunpack.c.l.b16 %v2087
    %v3447 = vunpack.c.h.b16 %v2087
    %v3448 = vunpack.c.l.b16 %v2088
    %v3449 = vunpack.c.h.b16 %v2088
    %v3450 = vunpack.c.l.b16 %v2089
    %v3451 = vunpack.c.h.b16 %v2089
    %v3452 = vunpack.c.l.b16 %v2090
    %v3453 = vunpack.c.h.b16 %v2090
    %v3454 = vunpack.c.l.b16 %v2091
    %v3455 = vunpack.c.h.b16 %v2091
    %v3456 = vunpack.c.l.b16 %v2092
    %v3457 = vunpack.c.h.b16 %v2092
    %v3458 = vunpack.c.l.b16 %v2093
    %v3459 = vunpack.c.h.b16 %v2093
    %v3460 = vunpack.c.l.b16 %v2094
    %v3461 = vunpack.c.h.b16 %v2094
    %v3462 = vunpack.c.l.b16 %v2095
    %v3463 = vunpack.c.h.b16 %v2095
    %v3464 = vunpack.c.l.b16 %v2096
    %v3465 = vunpack.c.h.b16 %v2096
    %v3466 = vunpack.c.l.b16 %v2097
    %v3467 = vunpack.c.h.b16 %v2097
    %v3468 = vunpack.c.l.b16 %v2098
    %v3469 = vunpack.c.h.b16 %v2098
    %v3470 = vunpack.c.l.b16 %v2099
    %v3471 = vunpack.c.h.b16 %v2099
    %v3472 = vunpack.c.l.b16 %v2100
    %v3473 = vunpack.c.h.b16 %v2100
    %v3474 = vunpack.c.l.b16 %v2101
    %v3475 = vunpack.c.h.b16 %v2101
    %v3476 = vunpack.c.l.b16 %v2102
    %v3477 = vunpack.c.h.b16 %v2102
    %v3478 = vunpack.c.l.b16 %v2103
    %v3479 = vunpack.c.h.b16 %v2103
    %v3480 = vunpack.c.l.b16 %v2104
    %v3481 = vunpack.c.h.b16 %v2104
    %v3482 = vunpack.c.l.b16 %v2105
    %v3483 = vunpack.c.h.b16 %v2105
    %v3484 = vunpack.c.l.b16 %v2106
    %v3485 = vunpack.c.h.b16 %v2106
    %v3486 = vunpack.c.l.b16 %v2107
    %v3487 = vunpack.c.h.b16 %v2107
    %v3488 = vunpack.c.l.b16 %v2108
    %v3489 = vunpack.c.h.b16 %v2108
    %v3490 = vunpack.c.l.b16 %v2109
    %v3491 = vunpack.c.h.b16 %v2109
    %v3492 = vunpack.c.l.b16 %v2110
    %v3493 = vunpack.c.h.b16 %v2110
    %v3494 = vunpack.c.l.b16 %v2111
    %v3495 = vunpack.c.h.b16 %v2111
    %v3496 = vunpack.c.l.b16 %v2112
    %v3497 = vunpack.c.h.b16 %v2112
    %v3498 = vunpack.c.l.b16 %v2113
    %v3499 = vunpack.c.h.b16 %v2113
    %v3500 = vunpack.c.l.b16 %v2114
    %v3501 = vunpack.c.h.b16 %v2114
    %v3502 = vunpack.c.l.b16 %v2115
    %v3503 = vunpack.c.h.b16 %v2115
    %v3504 = vunpack.c.l.b16 %v2116
    %v3505 = vunpack.c.h.b16 %v2116
    %v3506 = vunpack.c.l.b16 %v2117
    %v3507 = vunpack.c.h.b16 %v2117
    %v3508 = vunpack.c.l.b16 %v2118
    %v3509 = vunpack.c.h.b16 %v2118
    %v3510 = vunpack.c.l.b16 %v2119
    %v3511 = vunpack.c.h.b16 %v2119
    %v3512 = vunpack.c.l.b16 %v2120
    %v3513 = vunpack.c.h.b16 %v2120
    %v3514 = vunpack.c.l.b16 %v2121
    %v3515 = vunpack.c.h.b16 %v2121
    %v3516 = vunpack.c.l.b16 %v2122
    %v3517 = vunpack.c.h.b16 %v2122
    %v3518 = vunpack.c.l.b16 %v2123
    %v3519 = vunpack.c.h.b16 %v2123
    %v3520 = vunpack.c.l.b16 %v2124
    %v3521 = vunpack.c.h.b16 %v2124
    %v3522 = vunpack.c.l.b16 %v2125
    %v3523 = vunpack.c.h.b16 %v2125
    %v3524 = vunpack.c.l.b16 %v2126
    %v3525 = vunpack.c.h.b16 %v2126
    %v3526 = vunpack.c.l.b16 %v2127
    %v3527 = vunpack.c.h.b16 %v2127
    %v3528 = vunpack.c.l.b16 %v2128
    %v3529 = vunpack.c.h.b16 %v2128
    %v3530 = vunpack.c.l.b16 %v2129
    %v3531 = vunpack.c.h.b16 %v2129
    %v3532 = vunpack.c.l.b16 %v2130
    %v3533 = vunpack.c.h.b16 %v2130
    %v3534 = vunpack.c.l.b16 %v2131
    %v3535 = vunpack.c.h.b16 %v2131
    %v3536 = vunpack.c.l.b16 %v2132
    %v3537 = vunpack.c.h.b16 %v2132
    %v3538 = vunpack.c.l.b16 %v2133
    %v3539 = vunpack.c.h.b16 %v2133
    %v3540 = vunpack.c.l.b16 %v2134
    %v3541 = vunpack.c.h.b16 %v2134
    %v3542 = vunpack.c.l.b16 %v2135
    %v3543 = vunpack.c.h.b16 %v2135
    %v3544 = vunpack.c.l.b16 %v2136
    %v3545 = vunpack.c.h.b16 %v2136
    %v3546 = vunpack.c.l.b16 %v2137
    %v3547 = vunpack.c.h.b16 %v2137
    %v3548 = vunpack.c.l.b16 %v2138
    %v3549 = vunpack.c.h.b16 %v2138
    %v3550 = vunpack.c.l.b16 %v2139
    %v3551 = vunpack.c.h.b16 %v2139
    %v3552 = vunpack.c.l.b16 %v2140
    %v3553 = vunpack.c.h.b16 %v2140
    %v3554 = vunpack.c.l.b16 %v2141
    %v3555 = vunpack.c.h.b16 %v2141
    %v3556 = vunpack.c.l.b16 %v2142
    %v3557 = vunpack.c.h.b16 %v2142
    %v3558 = vunpack.c.l.b16 %v2143
    %v3559 = vunpack.c.h.b16 %v2143
    %v3560 = vunpack.c.l.b16 %v2144
    %v3561 = vunpack.c.h.b16 %v2144
    %v3562 = vunpack.c.l.b16 %v2145
    %v3563 = vunpack.c.h.b16 %v2145
    %v3564 = vunpack.c.l.b16 %v2146
    %v3565 = vunpack.c.h.b16 %v2146
    %v3566 = vunpack.c.l.b16 %v2147
    %v3567 = vunpack.c.h.b16 %v2147
    %v3568 = vunpack.c.l.b16 %v2148
    %v3569 = vunpack.c.h.b16 %v2148
    %v3570 = vunpack.c.l.b16 %v2149
    %v3571 = vunpack.c.h.b16 %v2149
    %v3572 = vunpack.c.l.b16 %v2150
    %v3573 = vunpack.c.h.b16 %v2150
    %v3574 = vunpack.c.l.b16 %v2151
    %v3575 = vunpack.c.h.b16 %v2151
    %v3576 = vunpack.c.l.b16 %v2152
    %v3577 = vunpack.c.h.b16 %v2152
    %v3578 = vunpack.c.l.b16 %v2153
    %v3579 = vunpack.c.h.b16 %v2153
    %v3580 = vunpack.c.l.b16 %v2154
    %v3581 = vunpack.c.h.b16 %v2154
    %v3582 = vunpack.c.l.b16 %v2155
    %v3583 = vunpack.c.h.b16 %v2155
    %v3584 = vunpack.c.l.b16 %v2156
    %v3585 = vunpack.c.h.b16 %v2156
    %v3586 = vunpack.c.l.b16 %v2157
    %v3587 = vunpack.c.h.b16 %v2157
    %v3588 = vunpack.c.l.b16 %v2158
    %v3589 = vunpack.c.h.b16 %v2158
    %v3590 = vunpack.c.l.b16 %v2159
    %v3591 = vunpack.c.h.b16 %v2159
    %v3592 = vunpack.c.l.b16 %v2160
    %v3593 = vunpack.c.h.b16 %v2160
    %v3594 = vunpack.c.l.b16 %v2161
    %v3595 = vunpack.c.h.b16 %v2161
    %v3596 = vunpack.c.l.b16 %v2162
    %v3597 = vunpack.c.h.b16 %v2162
    %v3598 = vunpack.c.l.b16 %v2163
    %v3599 = vunpack.c.h.b16 %v2163
    %v3600 = vunpack.c.l.b16 %v2164
    %v3601 = vunpack.c.h.b16 %v2164
    %v3602 = vunpack.c.l.b16 %v2165
    %v3603 = vunpack.c.h.b16 %v2165
    %v3604 = vunpack.c.l.b16 %v2166
    %v3605 = vunpack.c.h.b16 %v2166
    %v3606 = vunpack.c.l.b16 %v2167
    %v3607 = vunpack.c.h.b16 %v2167
    %v3608 = vunpack.c.l.b16 %v2168
    %v3609 = vunpack.c.h.b16 %v2168
    %v3610 = vunpack.c.l.b16 %v2169
    %v3611 = vunpack.c.h.b16 %v2169
    %v3612 = vunpack.c.l.b16 %v2170
    %v3613 = vunpack.c.h.b16 %v2170
    %v3614 = vunpack.c.l.b16 %v2171
    %v3615 = vunpack.c.h.b16 %v2171
    %v3616 = vunpack.c.l.b16 %v2172
    %v3617 = vunpack.c.h.b16 %v2172
    %v3618 = vunpack.c.l.b16 %v2173
    %v3619 = vunpack.c.h.b16 %v2173
    %v3620 = vunpack.c.l.b16 %v2174
    %v3621 = vunpack.c.h.b16 %v2174
    %v3622 = vunpack.c.l.b16 %v2175
    %v3623 = vunpack.c.h.b16 %v2175
    %v3624 = vunpack.c.l.b16 %v2176
    %v3625 = vunpack.c.h.b16 %v2176
    %v3626 = vunpack.c.l.b16 %v2177
    %v3627 = vunpack.c.h.b16 %v2177
    %v3628 = vunpack.c.l.b16 %v2178
    %v3629 = vunpack.c.h.b16 %v2178
    %v3630 = vunpack.c.l.b16 %v2179
    %v3631 = vunpack.c.h.b16 %v2179
    %v3632 = vunpack.c.l.b16 %v2180
    %v3633 = vunpack.c.h.b16 %v2180
    %v3634 = vunpack.c.l.b16 %v2181
    %v3635 = vunpack.c.h.b16 %v2181
    %v3636 = vunpack.c.l.b16 %v2182
    %v3637 = vunpack.c.h.b16 %v2182
    %v3638 = vunpack.c.l.b16 %v2183
    %v3639 = vunpack.c.h.b16 %v2183
    %v3640 = vunpack.c.l.b16 %v2184
    %v3641 = vunpack.c.h.b16 %v2184
    %v3642 = vunpack.c.l.b16 %v2185
    %v3643 = vunpack.c.h.b16 %v2185
    %v3644 = vunpack.c.l.b16 %v2186
    %v3645 = vunpack.c.h.b16 %v2186
    %v3646 = vunpack.c.l.b16 %v2187
    %v3647 = vunpack.c.h.b16 %v2187
    %v3648 = vunpack.c.l.b16 %v2188
    %v3649 = vunpack.c.h.b16 %v2188
    %v3650 = vunpack.c.l.b16 %v2189
    %v3651 = vunpack.c.h.b16 %v2189
    %v3652 = vunpack.c.l.b16 %v2190
    %v3653 = vunpack.c.h.b16 %v2190
    %v3654 = vunpack.c.l.b16 %v2191
    %v3655 = vunpack.c.h.b16 %v2191
    %v3656 = vunpack.c.l.b16 %v2192
    %v3657 = vunpack.c.h.b16 %v2192
    %v3658 = vunpack.c.l.b16 %v2193
    %v3659 = vunpack.c.h.b16 %v2193
    %v3660 = vunpack.c.l.b16 %v2194
    %v3661 = vunpack.c.h.b16 %v2194
    %v3662 = vunpack.c.l.b16 %v2195
    %v3663 = vunpack.c.h.b16 %v2195
    %v3664 = vunpack.c.l.b16 %v2196
    %v3665 = vunpack.c.h.b16 %v2196
    %v3666 = vunpack.c.l.b16 %v2197
    %v3667 = vunpack.c.h.b16 %v2197
    %v3668 = vunpack.c.l.b16 %v2198
    %v3669 = vunpack.c.h.b16 %v2198
    %v3670 = vunpack.c.l.b16 %v2199
    %v3671 = vunpack.c.h.b16 %v2199
    %v3672 = vunpack.c.l.b16 %v2200
    %v3673 = vunpack.c.h.b16 %v2200
    %v3674 = vunpack.c.l.b16 %v2201
    %v3675 = vunpack.c.h.b16 %v2201
    %v3676 = vunpack.c.l.b16 %v2202
    %v3677 = vunpack.c.h.b16 %v2202
    %v3678 = vunpack.c.l.b16 %v2203
    %v3679 = vunpack.c.h.b16 %v2203
    %v3680 = vunpack.c.l.b16 %v2204
    %v3681 = vunpack.c.h.b16 %v2204
    %v3682 = vunpack.c.l.b16 %v2205
    %v3683 = vunpack.c.h.b16 %v2205
    %v3684 = vunpack.c.l.b16 %v2206
    %v3685 = vunpack.c.h.b16 %v2206
    %v3686 = vunpack.c.l.b16 %v2207
    %v3687 = vunpack.c.h.b16 %v2207
    %v3688 = vunpack.c.l.b16 %v2208
    %v3689 = vunpack.c.h.b16 %v2208
    %v3690 = vunpack.c.l.b16 %v2209
    %v3691 = vunpack.c.h.b16 %v2209
    %v3692 = vunpack.c.l.b16 %v2210
    %v3693 = vunpack.c.h.b16 %v2210
    %v3694 = vunpack.c.l.b16 %v2211
    %v3695 = vunpack.c.h.b16 %v2211
    %v3696 = vunpack.c.l.b16 %v2212
    %v3697 = vunpack.c.h.b16 %v2212
    %v3698 = vunpack.c.l.b16 %v2213
    %v3699 = vunpack.c.h.b16 %v2213
    %v3700 = vunpack.c.l.b16 %v2214
    %v3701 = vunpack.c.h.b16 %v2214
    %v3702 = vunpack.c.l.b16 %v2215
    %v3703 = vunpack.c.h.b16 %v2215
    %v3704 = vunpack.c.l.b16 %v2216
    %v3705 = vunpack.c.h.b16 %v2216
    %v3706 = vunpack.c.l.b16 %v2217
    %v3707 = vunpack.c.h.b16 %v2217
    %v3708 = vunpack.c.l.b16 %v2218
    %v3709 = vunpack.c.h.b16 %v2218
    %v3710 = vunpack.c.l.b16 %v2219
    %v3711 = vunpack.c.h.b16 %v2219
    %v3712 = vunpack.c.l.b16 %v2220
    %v3713 = vunpack.c.h.b16 %v2220
    %v3714 = vunpack.c.l.b16 %v2221
    %v3715 = vunpack.c.h.b16 %v2221
    %v3716 = vunpack.c.l.b16 %v2222
    %v3717 = vunpack.c.h.b16 %v2222
    %v3718 = vunpack.c.l.b16 %v2223
    %v3719 = vunpack.c.h.b16 %v2223
    %v3720 = vunpack.c.l.b16 %v2224
    %v3721 = vunpack.c.h.b16 %v2224
    %v3722 = vunpack.c.l.b16 %v2225
    %v3723 = vunpack.c.h.b16 %v2225
    %v3724 = vunpack.c.l.b16 %v2226
    %v3725 = vunpack.c.h.b16 %v2226
    %v3726 = vunpack.c.l.b16 %v2227
    %v3727 = vunpack.c.h.b16 %v2227
    %v3728 = vunpack.c.l.b16 %v2228
    %v3729 = vunpack.c.h.b16 %v2228
    %v3730 = vunpack.c.l.b16 %v2229
    %v3731 = vunpack.c.h.b16 %v2229
    %v3732 = vunpack.c.l.b16 %v2230
    %v3733 = vunpack.c.h.b16 %v2230
    %v3734 = vunpack.c.l.b16 %v2231
    %v3735 = vunpack.c.h.b16 %v2231
    %v3736 = vpack.c.b16 %v2788, %v2776
    %v3737 = vpack.c.b16 %v2789, %v2777
    %v3738 = vpack.c.b16 %v2790, %v2778
    %v3739 = vpack.c.b16 %v2791, %v2779
    %v3740 = vpack.c.b16 %v2792, %v2780
    %v3741 = vpack.c.b16 %v2793, %v2781
    %v3742 = vpack.c.b16 %v2794, %v2782
    %v3743 = vpack.c.b16 %v2795, %v2783
    %v3744 = vpack.c.b16 %v2796, %v2784
    %v3745 = vpack.c.b16 %v2797, %v2785
    %v3746 = vpack.c.b16 %v2798, %v2786
    %v3747 = vpack.c.b16 %v2799, %v2787
    %v3748 = vpack.c.b16 %v2812, %v2800
    %v3749 = vpack.c.b16 %v2813, %v2801
    %v3750 = vpack.c.b16 %v2814, %v2802
    %v3751 = vpack.c.b16 %v2815, %v2803
    %v3752 = vpack.c.b16 %v2816, %v2804
    %v3753 = vpack.c.b16 %v2817, %v2805
    %v3754 = vpack.c.b16 %v2818, %v2806
    %v3755 = vpack.c.b16 %v2819, %v2807
    %v3756 = vpack.c.b16 %v2820, %v2808
    %v3757 = vpack.c.b16 %v2821, %v2809
    %v3758 = vpack.c.b16 %v2822, %v2810
    %v3759 = vpack.c.b16 %v2823, %v2811
    %v3760 = vpack.c.b16 %v2836, %v2824
    %v3761 = vpack.c.b16 %v2837, %v2825
    %v3762 = vpack.c.b16 %v2838, %v2826
    %v3763 = vpack.c.b16 %v2839, %v2827
    %v3764 = vpack.c.b16 %v2840, %v2828
    %v3765 = vpack.c.b16 %v2841, %v2829
    %v3766 = vpack.c.b16 %v2842, %v2830
    %v3767 = vpack.c.b16 %v2843, %v2831
    %v3768 = vpack.c.b16 %v2844, %v2832
    %v3769 = vpack.c.b16 %v2845, %v2833
    %v3770 = vpack.c.b16 %v2846, %v2834
    %v3771 = vpack.c.b16 %v2847, %v2835
    %v3772 = vpack.c.b16 %v2860, %v2848
    %v3773 = vpack.c.b16 %v2861, %v2849
    %v3774 = vpack.c.b16 %v2862, %v2850
    %v3775 = vpack.c.b16 %v2863, %v2851
    %v3776 = vpack.c.b16 %v2864, %v2852
    %v3777 = vpack.c.b16 %v2865, %v2853
    %v3778 = vpack.c.b16 %v2866, %v2854
    %v3779 = vpack.c.b16 %v2867, %v2855
    %v3780 = vpack.c.b16 %v2868, %v2856
    %v3781 = vpack.c.b16 %v2869, %v2857
    %v3782 = vpack.c.b16 %v2870, %v2858
    %v3783 = vpack.c.b16 %v2871, %v2859
    %v3784 = vpack.c.b16 %v2884, %v2872
    %v3785 = vpack.c.b16 %v2885, %v2873
    %v3786 = vpack.c.b16 %v2886, %v2874
    %v3787 = vpack.c.b16 %v2887, %v2875
    %v3788 = vpack.c.b16 %v2888, %v2876
    %v3789 = vpack.c.b16 %v2889, %v2877
    %v3790 = vpack.c.b16 %v2890, %v2878
    %v3791 = vpack.c.b16 %v2891, %v2879
    %v3792 = vpack.c.b16 %v2892, %v2880
    %v3793 = vpack.c.b16 %v2893, %v2881
    %v3794 = vpack.c.b16 %v2894, %v2882
    %v3795 = vpack.c.b16 %v2895, %v2883
    %v3796 = vpack.c.b16 %v2908, %v2896
    %v3797 = vpack.c.b16 %v2909, %v2897
    %v3798 = vpack.c.b16 %v2910, %v2898
    %v3799 = vpack.c.b16 %v2911, %v2899
    %v3800 = vpack.c.b16 %v2912, %v2900
    %v3801 = vpack.c.b16 %v2913, %v2901
    %v3802 = vpack.c.b16 %v2914, %v2902
    %v3803 = vpack.c.b16 %v2915, %v2903
    %v3804 = vpack.c.b16 %v2916, %v2904
    %v3805 = vpack.c.b16 %v2917, %v2905
    %v3806 = vpack.c.b16 %v2918, %v2906
    %v3807 = vpack.c.b16 %v2919, %v2907
    %v3808 = vpack.c.b16 %v2932, %v2920
    %v3809 = vpack.c.b16 %v2933, %v2921
    %v3810 = vpack.c.b16 %v2934, %v2922
    %v3811 = vpack.c.b16 %v2935, %v2923
    %v3812 = vpack.c.b16 %v2936, %v2924
    %v3813 = vpack.c.b16 %v2937, %v2925
    %v3814 = vpack.c.b16 %v2938, %v2926
    %v3815 = vpack.c.b16 %v2939, %v2927
    %v3816 = vpack.c.b16 %v2940, %v2928
    %v3817 = vpack.c.b16 %v2941, %v2929
    %v3818 = vpack.c.b16 %v2942, %v2930
    %v3819 = vpack.c.b16 %v2943, %v2931
    %v3820 = vpack.c.b16 %v2956, %v2944
    %v3821 = vpack.c.b16 %v2957, %v2945
    %v3822 = vpack.c.b16 %v2958, %v2946
    %v3823 = vpack.c.b16 %v2959, %v2947
    %v3824 = vpack.c.b16 %v2960, %v2948
    %v3825 = vpack.c.b16 %v2961, %v2949
    %v3826 = vpack.c.b16 %v2962, %v2950
    %v3827 = vpack.c.b16 %v2963, %v2951
    %v3828 = vpack.c.b16 %v2964, %v2952
    %v3829 = vpack.c.b16 %v2965, %v2953
    %v3830 = vpack.c.b16 %v2966, %v2954
    %v3831 = vpack.c.b16 %v2967, %v2955
    %v3832 = vpack.c.b16 %v2980, %v2968
    %v3833 = vpack.c.b16 %v2981, %v2969
    %v3834 = vpack.c.b16 %v2982, %v2970
    %v3835 = vpack.c.b16 %v2983, %v2971
    %v3836 = vpack.c.b16 %v2984, %v2972
    %v3837 = vpack.c.b16 %v2985, %v2973
    %v3838 = vpack.c.b16 %v2986, %v2974
    %v3839 = vpack.c.b16 %v2987, %v2975
    %v3840 = vpack.c.b16 %v2988, %v2976
    %v3841 = vpack.c.b16 %v2989, %v2977
    %v3842 = vpack.c.b16 %v2990, %v2978
    %v3843 = vpack.c.b16 %v2991, %v2979
    %v3844 = vpack.c.b16 %v3004, %v2992
    %v3845 = vpack.c.b16 %v3005, %v2993
    %v3846 = vpack.c.b16 %v3006, %v2994
    %v3847 = vpack.c.b16 %v3007, %v2995
    %v3848 = vpack.c.b16 %v3008, %v2996
    %v3849 = vpack.c.b16 %v3009, %v2997
    %v3850 = vpack.c.b16 %v3010, %v2998
    %v3851 = vpack.c.b16 %v3011, %v2999
    %v3852 = vpack.c.b16 %v3012, %v3000
    %v3853 = vpack.c.b16 %v3013, %v3001
    %v3854 = vpack.c.b16 %v3014, %v3002
    %v3855 = vpack.c.b16 %v3015, %v3003
    %v3856 = vpack.c.b16 %v3028, %v3016
    %v3857 = vpack.c.b16 %v3029, %v3017
    %v3858 = vpack.c.b16 %v3030, %v3018
    %v3859 = vpack.c.b16 %v3031, %v3019
    %v3860 = vpack.c.b16 %v3032, %v3020
    %v3861 = vpack.c.b16 %v3033, %v3021
    %v3862 = vpack.c.b16 %v3034, %v3022
    %v3863 = vpack.c.b16 %v3035, %v3023
    %v3864 = vpack.c.b16 %v3036, %v3024
    %v3865 = vpack.c.b16 %v3037, %v3025
    %v3866 = vpack.c.b16 %v3038, %v3026
    %v3867 = vpack.c.b16 %v3039, %v3027
    %v3868 = vpack.c.b16 %v3052, %v3040
    %v3869 = vpack.c.b16 %v3053, %v3041
    %v3870 = vpack.c.b16 %v3054, %v3042
    %v3871 = vpack.c.b16 %v3055, %v3043
    %v3872 = vpack.c.b16 %v3056, %v3044
    %v3873 = vpack.c.b16 %v3057, %v3045
    %v3874 = vpack.c.b16 %v3058, %v3046
    %v3875 = vpack.c.b16 %v3059, %v3047
    %v3876 = vpack.c.b16 %v3060, %v3048
    %v3877 = vpack.c.b16 %v3061, %v3049
    %v3878 = vpack.c.b16 %v3062, %v3050
    %v3879 = vpack.c.b16 %v3063, %v3051
    %v3880 = vpack.c.b16 %v3076, %v3064
    %v3881 = vpack.c.b16 %v3077, %v3065
    %v3882 = vpack.c.b16 %v3078, %v3066
    %v3883 = vpack.c.b16 %v3079, %v3067
    %v3884 = vpack.c.b16 %v3080, %v3068
    %v3885 = vpack.c.b16 %v3081, %v3069
    %v3886 = vpack.c.b16 %v3082, %v3070
    %v3887 = vpack.c.b16 %v3083, %v3071
    %v3888 = vpack.c.b16 %v3084, %v3072
    %v3889 = vpack.c.b16 %v3085, %v3073
    %v3890 = vpack.c.b16 %v3086, %v3074
    %v3891 = vpack.c.b16 %v3087, %v3075
    %v3892 = vpack.c.b16 %v3100, %v3088
    %v3893 = vpack.c.b16 %v3101, %v3089
    %v3894 = vpack.c.b16 %v3102, %v3090
    %v3895 = vpack.c.b16 %v3103, %v3091
    %v3896 = vpack.c.b16 %v3104, %v3092
    %v3897 = vpack.c.b16 %v3105, %v3093
    %v3898 = vpack.c.b16 %v3106, %v3094
    %v3899 = vpack.c.b16 %v3107, %v3095
    %v3900 = vpack.c.b16 %v3108, %v3096
    %v3901 = vpack.c.b16 %v3109, %v3097
    %v3902 = vpack.c.b16 %v3110, %v3098
    %v3903 = vpack.c.b16 %v3111, %v3099
    %v3904 = vpack.c.b16 %v3124, %v3112
    %v3905 = vpack.c.b16 %v3125, %v3113
    %v3906 = vpack.c.b16 %v3126, %v3114
    %v3907 = vpack.c.b16 %v3127, %v3115
    %v3908 = vpack.c.b16 %v3128, %v3116
    %v3909 = vpack.c.b16 %v3129, %v3117
    %v3910 = vpack.c.b16 %v3130, %v3118
    %v3911 = vpack.c.b16 %v3131, %v3119
    %v3912 = vpack.c.b16 %v3132, %v3120
    %v3913 = vpack.c.b16 %v3133, %v3121
    %v3914 = vpack.c.b16 %v3134, %v3122
    %v3915 = vpack.c.b16 %v3135, %v3123
    %v3916 = vpack.c.b16 %v3148, %v3136
    %v3917 = vpack.c.b16 %v3149, %v3137
    %v3918 = vpack.c.b16 %v3150, %v3138
    %v3919 = vpack.c.b16 %v3151, %v3139
    %v3920 = vpack.c.b16 %v3152, %v3140
    %v3921 = vpack.c.b16 %v3153, %v3141
    %v3922 = vpack.c.b16 %v3154, %v3142
    %v3923 = vpack.c.b16 %v3155, %v3143
    %v3924 = vpack.c.b16 %v3156, %v3144
    %v3925 = vpack.c.b16 %v3157, %v3145
    %v3926 = vpack.c.b16 %v3158, %v3146
    %v3927 = vpack.c.b16 %v3159, %v3147
    %v3928 = vpack.c.b16 %v3172, %v3160
    %v3929 = vpack.c.b16 %v3173, %v3161
    %v3930 = vpack.c.b16 %v3174, %v3162
    %v3931 = vpack.c.b16 %v3175, %v3163
    %v3932 = vpack.c.b16 %v3176, %v3164
    %v3933 = vpack.c.b16 %v3177, %v3165
    %v3934 = vpack.c.b16 %v3178, %v3166
    %v3935 = vpack.c.b16 %v3179, %v3167
    %v3936 = vpack.c.b16 %v3180, %v3168
    %v3937 = vpack.c.b16 %v3181, %v3169
    %v3938 = vpack.c.b16 %v3182, %v3170
    %v3939 = vpack.c.b16 %v3183, %v3171
    %v3940 = vpack.c.b16 %v3196, %v3184
    %v3941 = vpack.c.b16 %v3197, %v3185
    %v3942 = vpack.c.b16 %v3198, %v3186
    %v3943 = vpack.c.b16 %v3199, %v3187
    %v3944 = vpack.c.b16 %v3200, %v3188
    %v3945 = vpack.c.b16 %v3201, %v3189
    %v3946 = vpack.c.b16 %v3202, %v3190
    %v3947 = vpack.c.b16 %v3203, %v3191
    %v3948 = vpack.c.b16 %v3204, %v3192
    %v3949 = vpack.c.b16 %v3205, %v3193
    %v3950 = vpack.c.b16 %v3206, %v3194
    %v3951 = vpack.c.b16 %v3207, %v3195
    %v3952 = vpack.c.b16 %v3220, %v3208
    %v3953 = vpack.c.b16 %v3221, %v3209
    %v3954 = vpack.c.b16 %v3222, %v3210
    %v3955 = vpack.c.b16 %v3223, %v3211
    %v3956 = vpack.c.b16 %v3224, %v3212
    %v3957 = vpack.c.b16 %v3225, %v3213
    %v3958 = vpack.c.b16 %v3226, %v3214
    %v3959 = vpack.c.b16 %v3227, %v3215
    %v3960 = vpack.c.b16 %v3228, %v3216
    %v3961 = vpack.c.b16 %v3229, %v3217
    %v3962 = vpack.c.b16 %v3230, %v3218
    %v3963 = vpack.c.b16 %v3231, %v3219
    %v3964 = vpack.c.b16 %v3244, %v3232
    %v3965 = vpack.c.b16 %v3245, %v3233
    %v3966 = vpack.c.b16 %v3246, %v3234
    %v3967 = vpack.c.b16 %v3247, %v3235
    %v3968 = vpack.c.b16 %v3248, %v3236
    %v3969 = vpack.c.b16 %v3249, %v3237
    %v3970 = vpack.c.b16 %v3250, %v3238
    %v3971 = vpack.c.b16 %v3251, %v3239
    %v3972 = vpack.c.b16 %v3252, %v3240
    %v3973 = vpack.c.b16 %v3253, %v3241
    %v3974 = vpack.c.b16 %v3254, %v3242
    %v3975 = vpack.c.b16 %v3255, %v3243
    %v3976 = vpack.c.b16 %v3268, %v3256
    %v3977 = vpack.c.b16 %v3269, %v3257
    %v3978 = vpack.c.b16 %v3270, %v3258
    %v3979 = vpack.c.b16 %v3271, %v3259
    %v3980 = vpack.c.b16 %v3272, %v3260
    %v3981 = vpack.c.b16 %v3273, %v3261
    %v3982 = vpack.c.b16 %v3274, %v3262
    %v3983 = vpack.c.b16 %v3275, %v3263
    %v3984 = vpack.c.b16 %v3276, %v3264
    %v3985 = vpack.c.b16 %v3277, %v3265
    %v3986 = vpack.c.b16 %v3278, %v3266
    %v3987 = vpack.c.b16 %v3279, %v3267
    %v3988 = vpack.c.b16 %v3292, %v3280
    %v3989 = vpack.c.b16 %v3293, %v3281
    %v3990 = vpack.c.b16 %v3294, %v3282
    %v3991 = vpack.c.b16 %v3295, %v3283
    %v3992 = vpack.c.b16 %v3296, %v3284
    %v3993 = vpack.c.b16 %v3297, %v3285
    %v3994 = vpack.c.b16 %v3298, %v3286
    %v3995 = vpack.c.b16 %v3299, %v3287
    %v3996 = vpack.c.b16 %v3300, %v3288
    %v3997 = vpack.c.b16 %v3301, %v3289
    %v3998 = vpack.c.b16 %v3302, %v3290
    %v3999 = vpack.c.b16 %v3303, %v3291
    %v4000 = vpack.c.b16 %v3316, %v3304
    %v4001 = vpack.c.b16 %v3317, %v3305
    %v4002 = vpack.c.b16 %v3318, %v3306
    %v4003 = vpack.c.b16 %v3319, %v3307
    %v4004 = vpack.c.b16 %v3320, %v3308
    %v4005 = vpack.c.b16 %v3321, %v3309
    %v4006 = vpack.c.b16 %v3322, %v3310
    %v4007 = vpack.c.b16 %v3323, %v3311
    %v4008 = vpack.c.b16 %v3324, %v3312
    %v4009 = vpack.c.b16 %v3325, %v3313
    %v4010 = vpack.c.b16 %v3326, %v3314
    %v4011 = vpack.c.b16 %v3327, %v3315
    %v4012 = vpack.c.b16 %v3340, %v3328
    %v4013 = vpack.c.b16 %v3341, %v3329
    %v4014 = vpack.c.b16 %v3342, %v3330
    %v4015 = vpack.c.b16 %v3343, %v3331
    %v4016 = vpack.c.b16 %v3344, %v3332
    %v4017 = vpack.c.b16 %v3345, %v3333
    %v4018 = vpack.c.b16 %v3346, %v3334
    %v4019 = vpack.c.b16 %v3347, %v3335
    %v4020 = vpack.c.b16 %v3348, %v3336
    %v4021 = vpack.c.b16 %v3349, %v3337
    %v4022 = vpack.c.b16 %v3350, %v3338
    %v4023 = vpack.c.b16 %v3351, %v3339
    %v4024 = vpack.c.b16 %v3364, %v3352
    %v4025 = vpack.c.b16 %v3365, %v3353
    %v4026 = vpack.c.b16 %v3366, %v3354
    %v4027 = vpack.c.b16 %v3367, %v3355
    %v4028 = vpack.c.b16 %v3368, %v3356
    %v4029 = vpack.c.b16 %v3369, %v3357
    %v4030 = vpack.c.b16 %v3370, %v3358
    %v4031 = vpack.c.b16 %v3371, %v3359
    %v4032 = vpack.c.b16 %v3372, %v3360
    %v4033 = vpack.c.b16 %v3373, %v3361
    %v4034 = vpack.c.b16 %v3374, %v3362
    %v4035 = vpack.c.b16 %v3375, %v3363
    %v4036 = vpack.c.b16 %v3388, %v3376
    %v4037 = vpack.c.b16 %v3389, %v3377
    %v4038 = vpack.c.b16 %v3390, %v3378
    %v4039 = vpack.c.b16 %v3391, %v3379
    %v4040 = vpack.c.b16 %v3392, %v3380
    %v4041 = vpack.c.b16 %v3393, %v3381
    %v4042 = vpack.c.b16 %v3394, %v3382
    %v4043 = vpack.c.b16 %v3395, %v3383
    %v4044 = vpack.c.b16 %v3396, %v3384
    %v4045 = vpack.c.b16 %v3397, %v3385
    %v4046 = vpack.c.b16 %v3398, %v3386
    %v4047 = vpack.c.b16 %v3399, %v3387
    %v4048 = vpack.c.b16 %v3412, %v3400
    %v4049 = vpack.c.b16 %v3413, %v3401
    %v4050 = vpack.c.b16 %v3414, %v3402
    %v4051 = vpack.c.b16 %v3415, %v3403
    %v4052 = vpack.c.b16 %v3416, %v3404
    %v4053 = vpack.c.b16 %v3417, %v3405
    %v4054 = vpack.c.b16 %v3418, %v3406
    %v4055 = vpack.c.b16 %v3419, %v3407
    %v4056 = vpack.c.b16 %v3420, %v3408
    %v4057 = vpack.c.b16 %v3421, %v3409
    %v4058 = vpack.c.b16 %v3422, %v3410
    %v4059 = vpack.c.b16 %v3423, %v3411
    %v4060 = vpack.c.b16 %v3436, %v3424
    %v4061 = vpack.c.b16 %v3437, %v3425
    %v4062 = vpack.c.b16 %v3438, %v3426
    %v4063 = vpack.c.b16 %v3439, %v3427
    %v4064 = vpack.c.b16 %v3440, %v3428
    %v4065 = vpack.c.b16 %v3441, %v3429
    %v4066 = vpack.c.b16 %v3442, %v3430
    %v4067 = vpack.c.b16 %v3443, %v3431
    %v4068 = vpack.c.b16 %v3444, %v3432
    %v4069 = vpack.c.b16 %v3445, %v3433
    %v4070 = vpack.c.b16 %v3446, %v3434
    %v4071 = vpack.c.b16 %v3447, %v3435
    %v4072 = vpack.c.b16 %v3460, %v3448
    %v4073 = vpack.c.b16 %v3461, %v3449
    %v4074 = vpack.c.b16 %v3462, %v3450
    %v4075 = vpack.c.b16 %v3463, %v3451
    %v4076 = vpack.c.b16 %v3464, %v3452
    %v4077 = vpack.c.b16 %v3465, %v3453
    %v4078 = vpack.c.b16 %v3466, %v3454
    %v4079 = vpack.c.b16 %v3467, %v3455
    %v4080 = vpack.c.b16 %v3468, %v3456
    %v4081 = vpack.c.b16 %v3469, %v3457
    %v4082 = vpack.c.b16 %v3470, %v3458
    %v4083 = vpack.c.b16 %v3471, %v3459
    %v4084 = vpack.c.b16 %v3484, %v3472
    %v4085 = vpack.c.b16 %v3485, %v3473
    %v4086 = vpack.c.b16 %v3486, %v3474
    %v4087 = vpack.c.b16 %v3487, %v3475
    %v4088 = vpack.c.b16 %v3488, %v3476
    %v4089 = vpack.c.b16 %v3489, %v3477
    %v4090 = vpack.c.b16 %v3490, %v3478
    %v4091 = vpack.c.b16 %v3491, %v3479
    %v4092 = vpack.c.b16 %v3492, %v3480
    %v4093 = vpack.c.b16 %v3493, %v3481
    %v4094 = vpack.c.b16 %v3494, %v3482
    %v4095 = vpack.c.b16 %v3495, %v3483
    %v4096 = vpack.c.b16 %v3508, %v3496
    %v4097 = vpack.c.b16 %v3509, %v3497
    %v4098 = vpack.c.b16 %v3510, %v3498
    %v4099 = vpack.c.b16 %v3511, %v3499
    %v4100 = vpack.c.b16 %v3512, %v3500
    %v4101 = vpack.c.b16 %v3513, %v3501
    %v4102 = vpack.c.b16 %v3514, %v3502
    %v4103 = vpack.c.b16 %v3515, %v3503
    %v4104 = vpack.c.b16 %v3516, %v3504
    %v4105 = vpack.c.b16 %v3517, %v3505
    %v4106 = vpack.c.b16 %v3518, %v3506
    %v4107 = vpack.c.b16 %v3519, %v3507
    %v4108 = vpack.c.b16 %v3532, %v3520
    %v4109 = vpack.c.b16 %v3533, %v3521
    %v4110 = vpack.c.b16 %v3534, %v3522
    %v4111 = vpack.c.b16 %v3535, %v3523
    %v4112 = vpack.c.b16 %v3536, %v3524
    %v4113 = vpack.c.b16 %v3537, %v3525
    %v4114 = vpack.c.b16 %v3538, %v3526
    %v4115 = vpack.c.b16 %v3539, %v3527
    %v4116 = vpack.c.b16 %v3540, %v3528
    %v4117 = vpack.c.b16 %v3541, %v3529
    %v4118 = vpack.c.b16 %v3542, %v3530
    %v4119 = vpack.c.b16 %v3543, %v3531
    %v4120 = vpack.c.b16 %v3556, %v3544
    %v4121 = vpack.c.b16 %v3557, %v3545
    %v4122 = vpack.c.b16 %v3558, %v3546
    %v4123 = vpack.c.b16 %v3559, %v3547
    %v4124 = vpack.c.b16 %v3560, %v3548
    %v4125 = vpack.c.b16 %v3561, %v3549
    %v4126 = vpack.c.b16 %v3562, %v3550
    %v4127 = vpack.c.b16 %v3563, %v3551
    %v4128 = vpack.c.b16 %v3564, %v3552
    %v4129 = vpack.c.b16 %v3565, %v3553
    %v4130 = vpack.c.b16 %v3566, %v3554
    %v4131 = vpack.c.b16 %v3567, %v3555
    %v4132 = vpack.c.b16 %v3580, %v3568
    %v4133 = vpack.c.b16 %v3581, %v3569
    %v4134 = vpack.c.b16 %v3582, %v3570
    %v4135 = vpack.c.b16 %v3583, %v3571
    %v4136 = vpack.c.b16 %v3584, %v3572
    %v4137 = vpack.c.b16 %v3585, %v3573
    %v4138 = vpack.c.b16 %v3586, %v3574
    %v4139 = vpack.c.b16 %v3587, %v3575
    %v4140 = vpack.c.b16 %v3588, %v3576
    %v4141 = vpack.c.b16 %v3589, %v3577
    %v4142 = vpack.c.b16 %v3590, %v3578
    %v4143 = vpack.c.b16 %v3591, %v3579
    %v4144 = vpack.c.b16 %v3604, %v3592
    %v4145 = vpack.c.b16 %v3605, %v3593
    %v4146 = vpack.c.b16 %v3606, %v3594
    %v4147 = vpack.c.b16 %v3607, %v3595
    %v4148 = vpack.c.b16 %v3608, %v3596
    %v4149 = vpack.c.b16 %v3609, %v3597
    %v4150 = vpack.c.b16 %v3610, %v3598
    %v4151 = vpack.c.b16 %v3611, %v3599
    %v4152 = vpack.c.b16 %v3612, %v3600
    %v4153 = vpack.c.b16 %v3613, %v3601
    %v4154 = vpack.c.b16 %v3614, %v3602
    %v4155 = vpack.c.b16 %v3615, %v3603
    %v4156 = vpack.c.b16 %v3628, %v3616
    %v4157 = vpack.c.b16 %v3629, %v3617
    %v4158 = vpack.c.b16 %v3630, %v3618
    %v4159 = vpack.c.b16 %v3631, %v3619
    %v4160 = vpack.c.b16 %v3632, %v3620
    %v4161 = vpack.c.b16 %v3633, %v3621
    %v4162 = vpack.c.b16 %v3634, %v3622
    %v4163 = vpack.c.b16 %v3635, %v3623
    %v4164 = vpack.c.b16 %v3636, %v3624
    %v4165 = vpack.c.b16 %v3637, %v3625
    %v4166 = vpack.c.b16 %v3638, %v3626
    %v4167 = vpack.c.b16 %v3639, %v3627
    %v4168 = vpack.c.b16 %v3652, %v3640
    %v4169 = vpack.c.b16 %v3653, %v3641
    %v4170 = vpack.c.b16 %v3654, %v3642
    %v4171 = vpack.c.b16 %v3655, %v3643
    %v4172 = vpack.c.b16 %v3656, %v3644
    %v4173 = vpack.c.b16 %v3657, %v3645
    %v4174 = vpack.c.b16 %v3658, %v3646
    %v4175 = vpack.c.b16 %v3659, %v3647
    %v4176 = vpack.c.b16 %v3660, %v3648
    %v4177 = vpack.c.b16 %v3661, %v3649
    %v4178 = vpack.c.b16 %v3662, %v3650
    %v4179 = vpack.c.b16 %v3663, %v3651
    %v4180 = vpack.c.b16 %v3676, %v3664
    %v4181 = vpack.c.b16 %v3677, %v3665
    %v4182 = vpack.c.b16 %v3678, %v3666
    %v4183 = vpack.c.b16 %v3679, %v3667
    %v4184 = vpack.c.b16 %v3680, %v3668
    %v4185 = vpack.c.b16 %v3681, %v3669
    %v4186 = vpack.c.b16 %v3682, %v3670
    %v4187 = vpack.c.b16 %v3683, %v3671
    %v4188 = vpack.c.b16 %v3684, %v3672
    %v4189 = vpack.c.b16 %v3685, %v3673
    %v4190 = vpack.c.b16 %v3686, %v3674
    %v4191 = vpack.c.b16 %v3687, %v3675
    %v4192 = vpack.c.b16 %v3700, %v3688
    %v4193 = vpack.c.b16 %v3701, %v3689
    %v4194 = vpack.c.b16 %v3702, %v3690
    %v4195 = vpack.c.b16 %v3703, %v3691
    %v4196 = vpack.c.b16 %v3704, %v3692
    %v4197 = vpack.c.b16 %v3705, %v3693
    %v4198 = vpack.c.b16 %v3706, %v3694
    %v4199 = vpack.c.b16 %v3707, %v3695
    %v4200 = vpack.c.b16 %v3708, %v3696
    %v4201 = vpack.c.b16 %v3709, %v3697
    %v4202 = vpack.c.b16 %v3710, %v3698
    %v4203 = vpack.c.b16 %v3711, %v3699
    %v4204 = vpack.c.b16 %v3724, %v3712
    %v4205 = vpack.c.b16 %v3725, %v3713
    %v4206 = vpack.c.b16 %v3726, %v3714
    %v4207 = vpack.c.b16 %v3727, %v3715
    %v4208 = vpack.c.b16 %v3728, %v3716
    %v4209 = vpack.c.b16 %v3729, %v3717
    %v4210 = vpack.c.b16 %v3730, %v3718
    %v4211 = vpack.c.b16 %v3731, %v3719
    %v4212 = vpack.c.b16 %v3732, %v3720
    %v4213 = vpack.c.b16 %v3733, %v3721
    %v4214 = vpack.c.b16 %v3734, %v3722
    %v4215 = vpack.c.b16 %v3735, %v3723
    %4696 = vmatprep.subr.bf16.mxu0 %v3821
    %4697 = vmatpush1.bf16.msra.mxu0 %v3820
    %4698 = vmatprep.subr.bf16.mxu0 %v3809
    %4699 = vmatpush1.bf16.msra.mxu0 %v3808
    %4700 = vmatprep.subr.bf16.mxu0 %v3797
    %4701 = vmatpush1.bf16.msra.mxu0 %v3796
    %4702 = vmatprep.subr.bf16.mxu0 %v3785
    %4703 = vmatpush1.bf16.msra.mxu0 %v3784
    %4704 = vmatprep.subr.bf16.mxu0 %v3773
    %4705 = vmatpush1.bf16.msra.mxu0 %v3772
    %4706 = vmatprep.subr.bf16.mxu0 %v3761
    %4707 = vmatpush1.bf16.msra.mxu0 %v3760
    %4708 = vmatprep.subr.bf16.mxu0 %v3749
    %4709 = vmatpush1.bf16.msra.mxu0 %v3748
    %4710 = vmatprep.subr.bf16.mxu0 %v3737
    %4711 = vmatpush1.bf16.msra.mxu0 %v3736
    %4712 = vmatprep.subr.bf16.mxu0 %v3917
    %4713 = vmatpush2.bf16.msra.mxu0 %v3916
    %4714 = vmatprep.subr.bf16.mxu0 %v3905
    %4715 = vmatpush2.bf16.msra.mxu0 %v3904
    %4716 = vmatprep.subr.bf16.mxu0 %v3893
    %4717 = vmatpush2.bf16.msra.mxu0 %v3892
    %4718 = vmatprep.subr.bf16.mxu0 %v3881
    %4719 = vmatpush2.bf16.msra.mxu0 %v3880
    %4720 = vmatprep.subr.bf16.mxu0 %v3869
    %4721 = vmatpush2.bf16.msra.mxu0 %v3868
    %4722 = vmatprep.subr.bf16.mxu0 %v3857
    %4723 = vmatpush2.bf16.msra.mxu0 %v3856
    %4724 = vmatprep.subr.bf16.mxu0 %v3845
    %4725 = vmatpush2.bf16.msra.mxu0 %v3844
    %4726 = vmatprep.subr.bf16.mxu0 %v3833
    %4727 = vmatpush2.bf16.msra.mxu0 %v3832
    %4728 = vmatprep.mubr.bf16.mxu0 %v1748
    %4729 = vmatmul.mubr.bf16.gmra.mxu0 %v1747
    %v4730 = vpop.f32.mrf.mxu0
    %v4731 = vadd.f32 %v2239, %v4730
    %v4732 = vpop.f32.mrf.mxu0
    %v4733 = vadd.f32 %v2243, %v4732
    %v4734 = vpop.f32.mrf.mxu0
    %v4735 = vpop.f32.mrf.mxu0
    %4736 = vdwg.mxu0
    %4737 = vmatprep.subr.bf16.mxu0 %v4013
    %4738 = vmatpush1.bf16.msra.mxu0 %v4012
    %4739 = vmatprep.subr.bf16.mxu0 %v4001
    %4740 = vmatpush1.bf16.msra.mxu0 %v4000
    %4741 = vmatprep.subr.bf16.mxu0 %v3989
    %4742 = vmatpush1.bf16.msra.mxu0 %v3988
    %4743 = vmatprep.subr.bf16.mxu0 %v3977
    %4744 = vmatpush1.bf16.msra.mxu0 %v3976
    %4745 = vmatprep.subr.bf16.mxu0 %v3965
    %4746 = vmatpush1.bf16.msra.mxu0 %v3964
    %4747 = vmatprep.subr.bf16.mxu0 %v3953
    %4748 = vmatpush1.bf16.msra.mxu0 %v3952
    %4749 = vmatprep.subr.bf16.mxu0 %v3941
    %4750 = vmatpush1.bf16.msra.mxu0 %v3940
    %4751 = vmatprep.subr.bf16.mxu0 %v3929
    %4752 = vmatpush1.bf16.msra.mxu0 %v3928
    %4753 = vmatprep.subr.bf16.mxu0 %v4109
    %4754 = vmatpush2.bf16.msra.mxu0 %v4108
    %4755 = vmatprep.subr.bf16.mxu0 %v4097
    %4756 = vmatpush2.bf16.msra.mxu0 %v4096
    %4757 = vmatprep.subr.bf16.mxu0 %v4085
    %4758 = vmatpush2.bf16.msra.mxu0 %v4084
    %4759 = vmatprep.subr.bf16.mxu0 %v4073
    %4760 = vmatpush2.bf16.msra.mxu0 %v4072
    %4761 = vmatprep.subr.bf16.mxu0 %v4061
    %4762 = vmatpush2.bf16.msra.mxu0 %v4060
    %4763 = vmatprep.subr.bf16.mxu0 %v4049
    %4764 = vmatpush2.bf16.msra.mxu0 %v4048
    %4765 = vmatprep.subr.bf16.mxu0 %v4037
    %4766 = vmatpush2.bf16.msra.mxu0 %v4036
    %4767 = vmatprep.subr.bf16.mxu0 %v4025
    %4768 = vmatpush2.bf16.msra.mxu0 %v4024
    %4769 = vmatprep.mubr.bf16.mxu0 %v1750
    %4770 = vmatmul.mubr.bf16.gmra.mxu0 %v1749
    %v4771 = vpop.f32.mrf.mxu0
    %v4772 = vadd.f32 %v4731, %v4771
    %v4773 = vpop.f32.mrf.mxu0
    %v4774 = vadd.f32 %v4733, %v4773
    %v4775 = vpop.f32.mrf.mxu0
    %v4776 = vpop.f32.mrf.mxu0
    %4777 = vdwg.mxu0
    %4778 = vmatprep.subr.bf16.mxu0 %v4205
    %4779 = vmatpush1.bf16.msra.mxu0 %v4204
    %4780 = vmatprep.subr.bf16.mxu0 %v4193
    %4781 = vmatpush1.bf16.msra.mxu0 %v4192
    %4782 = vmatprep.subr.bf16.mxu0 %v4181
    %4783 = vmatpush1.bf16.msra.mxu0 %v4180
    %4784 = vmatprep.subr.bf16.mxu0 %v4169
    %4785 = vmatpush1.bf16.msra.mxu0 %v4168
    %4786 = vmatprep.subr.bf16.mxu0 %v4157
    %4787 = vmatpush1.bf16.msra.mxu0 %v4156
    %4788 = vmatprep.subr.bf16.mxu0 %v4145
    %4789 = vmatpush1.bf16.msra.mxu0 %v4144
    %4790 = vmatprep.subr.bf16.mxu0 %v4133
    %4791 = vmatpush1.bf16.msra.mxu0 %v4132
    %4792 = vmatprep.subr.bf16.mxu0 %v4121
    %4793 = vmatpush1.bf16.msra.mxu0 %v4120
    %4794 = vmatprep.subr.bf16.mxu0 0
    %4795 = vmatpush2.bf16.msra.mxu0 0
    %4796 = vmatprep.subr.bf16.mxu0 0
    %4797 = vmatpush2.bf16.msra.mxu0 0
    %4798 = vmatprep.subr.bf16.mxu0 0
    %4799 = vmatpush2.bf16.msra.mxu0 0
    %4800 = vmatprep.subr.bf16.mxu0 0
    %4801 = vmatpush2.bf16.msra.mxu0 0
    %4802 = vmatprep.subr.bf16.mxu0 0
    %4803 = vmatpush2.bf16.msra.mxu0 0
    %4804 = vmatprep.subr.bf16.mxu0 0
    %4805 = vmatpush2.bf16.msra.mxu0 0
    %4806 = vmatprep.subr.bf16.mxu0 0
    %4807 = vmatpush2.bf16.msra.mxu0 0
    %4808 = vmatprep.subr.bf16.mxu0 0
    %4809 = vmatpush2.bf16.msra.mxu0 0
    %4810 = vmatprep.mubr.bf16.mxu0 0
    %4811 = vmatmul.mubr.bf16.gmra.mxu0 %v1751
    %v4812 = vpop.f32.mrf.mxu0
    %v4813 = vadd.f32 %v4772, %v4812
    %v4814 = vpop.f32.mrf.mxu0
    %v4815 = vadd.f32 %v4774, %v4814
    %v4816 = vpop.f32.mrf.mxu0
    %v4817 = vpop.f32.mrf.mxu0
    %4818 = vdwg.mxu0
    %4819 = vmatprep.subr.bf16.mxu0 %v3823
    %4820 = vmatpush1.bf16.msra.mxu0 %v3822
    %4821 = vmatprep.subr.bf16.mxu0 %v3811
    %4822 = vmatpush1.bf16.msra.mxu0 %v3810
    %4823 = vmatprep.subr.bf16.mxu0 %v3799
    %4824 = vmatpush1.bf16.msra.mxu0 %v3798
    %4825 = vmatprep.subr.bf16.mxu0 %v3787
    %4826 = vmatpush1.bf16.msra.mxu0 %v3786
    %4827 = vmatprep.subr.bf16.mxu0 %v3775
    %4828 = vmatpush1.bf16.msra.mxu0 %v3774
    %4829 = vmatprep.subr.bf16.mxu0 %v3763
    %4830 = vmatpush1.bf16.msra.mxu0 %v3762
    %4831 = vmatprep.subr.bf16.mxu0 %v3751
    %4832 = vmatpush1.bf16.msra.mxu0 %v3750
    %4833 = vmatprep.subr.bf16.mxu0 %v3739
    %4834 = vmatpush1.bf16.msra.mxu0 %v3738
    %4835 = vmatprep.subr.bf16.mxu0 %v3919
    %4836 = vmatpush2.bf16.msra.mxu0 %v3918
    %4837 = vmatprep.subr.bf16.mxu0 %v3907
    %4838 = vmatpush2.bf16.msra.mxu0 %v3906
    %4839 = vmatprep.subr.bf16.mxu0 %v3895
    %4840 = vmatpush2.bf16.msra.mxu0 %v3894
    %4841 = vmatprep.subr.bf16.mxu0 %v3883
    %4842 = vmatpush2.bf16.msra.mxu0 %v3882
    %4843 = vmatprep.subr.bf16.mxu0 %v3871
    %4844 = vmatpush2.bf16.msra.mxu0 %v3870
    %4845 = vmatprep.subr.bf16.mxu0 %v3859
    %4846 = vmatpush2.bf16.msra.mxu0 %v3858
    %4847 = vmatprep.subr.bf16.mxu0 %v3847
    %4848 = vmatpush2.bf16.msra.mxu0 %v3846
    %4849 = vmatprep.subr.bf16.mxu0 %v3835
    %4850 = vmatpush2.bf16.msra.mxu0 %v3834
    %4851 = vmatprep.mubr.bf16.mxu0 %v1748
    %4852 = vmatmul.mubr.bf16.gmra.mxu0 %v1747
    %v4853 = vpop.f32.mrf.mxu0
    %v4854 = vadd.f32 %v2247, %v4853
    %v4855 = vpop.f32.mrf.mxu0
    %v4856 = vadd.f32 %v2251, %v4855
    %v4857 = vpop.f32.mrf.mxu0
    %v4858 = vpop.f32.mrf.mxu0
    %4859 = vdwg.mxu0
    %4860 = vmatprep.subr.bf16.mxu0 %v4015
    %4861 = vmatpush1.bf16.msra.mxu0 %v4014
    %4862 = vmatprep.subr.bf16.mxu0 %v4003
    %4863 = vmatpush1.bf16.msra.mxu0 %v4002
    %4864 = vmatprep.subr.bf16.mxu0 %v3991
    %4865 = vmatpush1.bf16.msra.mxu0 %v3990
    %4866 = vmatprep.subr.bf16.mxu0 %v3979
    %4867 = vmatpush1.bf16.msra.mxu0 %v3978
    %4868 = vmatprep.subr.bf16.mxu0 %v3967
    %4869 = vmatpush1.bf16.msra.mxu0 %v3966
    %4870 = vmatprep.subr.bf16.mxu0 %v3955
    %4871 = vmatpush1.bf16.msra.mxu0 %v3954
    %4872 = vmatprep.subr.bf16.mxu0 %v3943
    %4873 = vmatpush1.bf16.msra.mxu0 %v3942
    %4874 = vmatprep.subr.bf16.mxu0 %v3931
    %4875 = vmatpush1.bf16.msra.mxu0 %v3930
    %4876 = vmatprep.subr.bf16.mxu0 %v4111
    %4877 = vmatpush2.bf16.msra.mxu0 %v4110
    %4878 = vmatprep.subr.bf16.mxu0 %v4099
    %4879 = vmatpush2.bf16.msra.mxu0 %v4098
    %4880 = vmatprep.subr.bf16.mxu0 %v4087
    %4881 = vmatpush2.bf16.msra.mxu0 %v4086
    %4882 = vmatprep.subr.bf16.mxu0 %v4075
    %4883 = vmatpush2.bf16.msra.mxu0 %v4074
    %4884 = vmatprep.subr.bf16.mxu0 %v4063
    %4885 = vmatpush2.bf16.msra.mxu0 %v4062
    %4886 = vmatprep.subr.bf16.mxu0 %v4051
    %4887 = vmatpush2.bf16.msra.mxu0 %v4050
    %4888 = vmatprep.subr.bf16.mxu0 %v4039
    %4889 = vmatpush2.bf16.msra.mxu0 %v4038
    %4890 = vmatprep.subr.bf16.mxu0 %v4027
    %4891 = vmatpush2.bf16.msra.mxu0 %v4026
    %4892 = vmatprep.mubr.bf16.mxu0 %v1750
    %4893 = vmatmul.mubr.bf16.gmra.mxu0 %v1749
    %v4894 = vpop.f32.mrf.mxu0
    %v4895 = vadd.f32 %v4854, %v4894
    %v4896 = vpop.f32.mrf.mxu0
    %v4897 = vadd.f32 %v4856, %v4896
    %v4898 = vpop.f32.mrf.mxu0
    %v4899 = vpop.f32.mrf.mxu0
    %4900 = vdwg.mxu0
    %4901 = vmatprep.subr.bf16.mxu0 %v4207
    %4902 = vmatpush1.bf16.msra.mxu0 %v4206
    %4903 = vmatprep.subr.bf16.mxu0 %v4195
    %4904 = vmatpush1.bf16.msra.mxu0 %v4194
    %4905 = vmatprep.subr.bf16.mxu0 %v4183
    %4906 = vmatpush1.bf16.msra.mxu0 %v4182
    %4907 = vmatprep.subr.bf16.mxu0 %v4171
    %4908 = vmatpush1.bf16.msra.mxu0 %v4170
    %4909 = vmatprep.subr.bf16.mxu0 %v4159
    %4910 = vmatpush1.bf16.msra.mxu0 %v4158
    %4911 = vmatprep.subr.bf16.mxu0 %v4147
    %4912 = vmatpush1.bf16.msra.mxu0 %v4146
    %4913 = vmatprep.subr.bf16.mxu0 %v4135
    %4914 = vmatpush1.bf16.msra.mxu0 %v4134
    %4915 = vmatprep.subr.bf16.mxu0 %v4123
    %4916 = vmatpush1.bf16.msra.mxu0 %v4122
    %4917 = vmatprep.subr.bf16.mxu0 0
    %4918 = vmatpush2.bf16.msra.mxu0 0
    %4919 = vmatprep.subr.bf16.mxu0 0
    %4920 = vmatpush2.bf16.msra.mxu0 0
    %4921 = vmatprep.subr.bf16.mxu0 0
    %4922 = vmatpush2.bf16.msra.mxu0 0
    %4923 = vmatprep.subr.bf16.mxu0 0
    %4924 = vmatpush2.bf16.msra.mxu0 0
    %4925 = vmatprep.subr.bf16.mxu0 0
    %4926 = vmatpush2.bf16.msra.mxu0 0
    %4927 = vmatprep.subr.bf16.mxu0 0
    %4928 = vmatpush2.bf16.msra.mxu0 0
    %4929 = vmatprep.subr.bf16.mxu0 0
    %4930 = vmatpush2.bf16.msra.mxu0 0
    %4931 = vmatprep.subr.bf16.mxu0 0
    %4932 = vmatpush2.bf16.msra.mxu0 0
    %4933 = vmatprep.mubr.bf16.mxu0 0
    %4934 = vmatmul.mubr.bf16.gmra.mxu0 %v1751
    %v4935 = vpop.f32.mrf.mxu0
    %v4936 = vadd.f32 %v4895, %v4935
    %v4937 = vpop.f32.mrf.mxu0
    %v4938 = vadd.f32 %v4897, %v4937
    %v4939 = vpop.f32.mrf.mxu0
    %v4940 = vpop.f32.mrf.mxu0
    %4941 = vdwg.mxu0
    %4942 = vmatprep.subr.bf16.mxu0 %v3825
    %4943 = vmatpush1.bf16.msra.mxu0 %v3824
    %4944 = vmatprep.subr.bf16.mxu0 %v3813
    %4945 = vmatpush1.bf16.msra.mxu0 %v3812
    %4946 = vmatprep.subr.bf16.mxu0 %v3801
    %4947 = vmatpush1.bf16.msra.mxu0 %v3800
    %4948 = vmatprep.subr.bf16.mxu0 %v3789
    %4949 = vmatpush1.bf16.msra.mxu0 %v3788
    %4950 = vmatprep.subr.bf16.mxu0 %v3777
    %4951 = vmatpush1.bf16.msra.mxu0 %v3776
    %4952 = vmatprep.subr.bf16.mxu0 %v3765
    %4953 = vmatpush1.bf16.msra.mxu0 %v3764
    %4954 = vmatprep.subr.bf16.mxu0 %v3753
    %4955 = vmatpush1.bf16.msra.mxu0 %v3752
    %4956 = vmatprep.subr.bf16.mxu0 %v3741
    %4957 = vmatpush1.bf16.msra.mxu0 %v3740
    %4958 = vmatprep.subr.bf16.mxu0 %v3921
    %4959 = vmatpush2.bf16.msra.mxu0 %v3920
    %4960 = vmatprep.subr.bf16.mxu0 %v3909
    %4961 = vmatpush2.bf16.msra.mxu0 %v3908
    %4962 = vmatprep.subr.bf16.mxu0 %v3897
    %4963 = vmatpush2.bf16.msra.mxu0 %v3896
    %4964 = vmatprep.subr.bf16.mxu0 %v3885
    %4965 = vmatpush2.bf16.msra.mxu0 %v3884
    %4966 = vmatprep.subr.bf16.mxu0 %v3873
    %4967 = vmatpush2.bf16.msra.mxu0 %v3872
    %4968 = vmatprep.subr.bf16.mxu0 %v3861
    %4969 = vmatpush2.bf16.msra.mxu0 %v3860
    %4970 = vmatprep.subr.bf16.mxu0 %v3849
    %4971 = vmatpush2.bf16.msra.mxu0 %v3848
    %4972 = vmatprep.subr.bf16.mxu0 %v3837
    %4973 = vmatpush2.bf16.msra.mxu0 %v3836
    %4974 = vmatprep.mubr.bf16.mxu0 %v1748
    %4975 = vmatmul.mubr.bf16.gmra.mxu0 %v1747
    %v4976 = vpop.f32.mrf.mxu0
    %v4977 = vadd.f32 %v2255, %v4976
    %v4978 = vpop.f32.mrf.mxu0
    %v4979 = vadd.f32 %v2259, %v4978
    %v4980 = vpop.f32.mrf.mxu0
    %v4981 = vpop.f32.mrf.mxu0
    %4982 = vdwg.mxu0
    %4983 = vmatprep.subr.bf16.mxu0 %v4017
    %4984 = vmatpush1.bf16.msra.mxu0 %v4016
    %4985 = vmatprep.subr.bf16.mxu0 %v4005
    %4986 = vmatpush1.bf16.msra.mxu0 %v4004
    %4987 = vmatprep.subr.bf16.mxu0 %v3993
    %4988 = vmatpush1.bf16.msra.mxu0 %v3992
    %4989 = vmatprep.subr.bf16.mxu0 %v3981
    %4990 = vmatpush1.bf16.msra.mxu0 %v3980
    %4991 = vmatprep.subr.bf16.mxu0 %v3969
    %4992 = vmatpush1.bf16.msra.mxu0 %v3968
    %4993 = vmatprep.subr.bf16.mxu0 %v3957
    %4994 = vmatpush1.bf16.msra.mxu0 %v3956
    %4995 = vmatprep.subr.bf16.mxu0 %v3945
    %4996 = vmatpush1.bf16.msra.mxu0 %v3944
    %4997 = vmatprep.subr.bf16.mxu0 %v3933
    %4998 = vmatpush1.bf16.msra.mxu0 %v3932
    %4999 = vmatprep.subr.bf16.mxu0 %v4113
    %5000 = vmatpush2.bf16.msra.mxu0 %v4112
    %5001 = vmatprep.subr.bf16.mxu0 %v4101
    %5002 = vmatpush2.bf16.msra.mxu0 %v4100
    %5003 = vmatprep.subr.bf16.mxu0 %v4089
    %5004 = vmatpush2.bf16.msra.mxu0 %v4088
    %5005 = vmatprep.subr.bf16.mxu0 %v4077
    %5006 = vmatpush2.bf16.msra.mxu0 %v4076
    %5007 = vmatprep.subr.bf16.mxu0 %v4065
    %5008 = vmatpush2.bf16.msra.mxu0 %v4064
    %5009 = vmatprep.subr.bf16.mxu0 %v4053
    %5010 = vmatpush2.bf16.msra.mxu0 %v4052
    %5011 = vmatprep.subr.bf16.mxu0 %v4041
    %5012 = vmatpush2.bf16.msra.mxu0 %v4040
    %5013 = vmatprep.subr.bf16.mxu0 %v4029
    %5014 = vmatpush2.bf16.msra.mxu0 %v4028
    %5015 = vmatprep.mubr.bf16.mxu0 %v1750
    %5016 = vmatmul.mubr.bf16.gmra.mxu0 %v1749
    %v5017 = vpop.f32.mrf.mxu0
    %v5018 = vadd.f32 %v4977, %v5017
    %v5019 = vpop.f32.mrf.mxu0
    %v5020 = vadd.f32 %v4979, %v5019
    %v5021 = vpop.f32.mrf.mxu0
    %v5022 = vpop.f32.mrf.mxu0
    %5023 = vdwg.mxu0
    %5024 = vmatprep.subr.bf16.mxu0 %v4209
    %5025 = vmatpush1.bf16.msra.mxu0 %v4208
    %5026 = vmatprep.subr.bf16.mxu0 %v4197
    %5027 = vmatpush1.bf16.msra.mxu0 %v4196
    %5028 = vmatprep.subr.bf16.mxu0 %v4185
    %5029 = vmatpush1.bf16.msra.mxu0 %v4184
    %5030 = vmatprep.subr.bf16.mxu0 %v4173
    %5031 = vmatpush1.bf16.msra.mxu0 %v4172
    %5032 = vmatprep.subr.bf16.mxu0 %v4161
    %5033 = vmatpush1.bf16.msra.mxu0 %v4160
    %5034 = vmatprep.subr.bf16.mxu0 %v4149
    %5035 = vmatpush1.bf16.msra.mxu0 %v4148
    %5036 = vmatprep.subr.bf16.mxu0 %v4137
    %5037 = vmatpush1.bf16.msra.mxu0 %v4136
    %5038 = vmatprep.subr.bf16.mxu0 %v4125
    %5039 = vmatpush1.bf16.msra.mxu0 %v4124
    %5040 = vmatprep.subr.bf16.mxu0 0
    %5041 = vmatpush2.bf16.msra.mxu0 0
    %5042 = vmatprep.subr.bf16.mxu0 0
    %5043 = vmatpush2.bf16.msra.mxu0 0
    %5044 = vmatprep.subr.bf16.mxu0 0
    %5045 = vmatpush2.bf16.msra.mxu0 0
    %5046 = vmatprep.subr.bf16.mxu0 0
    %5047 = vmatpush2.bf16.msra.mxu0 0
    %5048 = vmatprep.subr.bf16.mxu0 0
    %5049 = vmatpush2.bf16.msra.mxu0 0
    %5050 = vmatprep.subr.bf16.mxu0 0
    %5051 = vmatpush2.bf16.msra.mxu0 0
    %5052 = vmatprep.subr.bf16.mxu0 0
    %5053 = vmatpush2.bf16.msra.mxu0 0
    %5054 = vmatprep.subr.bf16.mxu0 0
    %5055 = vmatpush2.bf16.msra.mxu0 0
    %5056 = vmatprep.mubr.bf16.mxu0 0
    %5057 = vmatmul.mubr.bf16.gmra.mxu0 %v1751
    %v5058 = vpop.f32.mrf.mxu0
    %v5059 = vadd.f32 %v5018, %v5058
    %v5060 = vpop.f32.mrf.mxu0
    %v5061 = vadd.f32 %v5020, %v5060
    %v5062 = vpop.f32.mrf.mxu0
    %v5063 = vpop.f32.mrf.mxu0
    %5064 = vdwg.mxu0
    %5065 = vmatprep.subr.bf16.mxu0 %v3827
    %5066 = vmatpush1.bf16.msra.mxu0 %v3826
    %5067 = vmatprep.subr.bf16.mxu0 %v3815
    %5068 = vmatpush1.bf16.msra.mxu0 %v3814
    %5069 = vmatprep.subr.bf16.mxu0 %v3803
    %5070 = vmatpush1.bf16.msra.mxu0 %v3802
    %5071 = vmatprep.subr.bf16.mxu0 %v3791
    %5072 = vmatpush1.bf16.msra.mxu0 %v3790
    %5073 = vmatprep.subr.bf16.mxu0 %v3779
    %5074 = vmatpush1.bf16.msra.mxu0 %v3778
    %5075 = vmatprep.subr.bf16.mxu0 %v3767
    %5076 = vmatpush1.bf16.msra.mxu0 %v3766
    %5077 = vmatprep.subr.bf16.mxu0 %v3755
    %5078 = vmatpush1.bf16.msra.mxu0 %v3754
    %5079 = vmatprep.subr.bf16.mxu0 %v3743
    %5080 = vmatpush1.bf16.msra.mxu0 %v3742
    %5081 = vmatprep.subr.bf16.mxu0 %v3923
    %5082 = vmatpush2.bf16.msra.mxu0 %v3922
    %5083 = vmatprep.subr.bf16.mxu0 %v3911
    %5084 = vmatpush2.bf16.msra.mxu0 %v3910
    %5085 = vmatprep.subr.bf16.mxu0 %v3899
    %5086 = vmatpush2.bf16.msra.mxu0 %v3898
    %5087 = vmatprep.subr.bf16.mxu0 %v3887
    %5088 = vmatpush2.bf16.msra.mxu0 %v3886
    %5089 = vmatprep.subr.bf16.mxu0 %v3875
    %5090 = vmatpush2.bf16.msra.mxu0 %v3874
    %5091 = vmatprep.subr.bf16.mxu0 %v3863
    %5092 = vmatpush2.bf16.msra.mxu0 %v3862
    %5093 = vmatprep.subr.bf16.mxu0 %v3851
    %5094 = vmatpush2.bf16.msra.mxu0 %v3850
    %5095 = vmatprep.subr.bf16.mxu0 %v3839
    %5096 = vmatpush2.bf16.msra.mxu0 %v3838
    %5097 = vmatprep.mubr.bf16.mxu0 %v1748
    %5098 = vmatmul.mubr.bf16.gmra.mxu0 %v1747
    %v5099 = vpop.f32.mrf.mxu0
    %v5100 = vadd.f32 %v2263, %v5099
    %v5101 = vpop.f32.mrf.mxu0
    %v5102 = vadd.f32 %v2267, %v5101
    %v5103 = vpop.f32.mrf.mxu0
    %v5104 = vpop.f32.mrf.mxu0
    %5105 = vdwg.mxu0
    %5106 = vmatprep.subr.bf16.mxu0 %v4019
    %5107 = vmatpush1.bf16.msra.mxu0 %v4018
    %5108 = vmatprep.subr.bf16.mxu0 %v4007
    %5109 = vmatpush1.bf16.msra.mxu0 %v4006
    %5110 = vmatprep.subr.bf16.mxu0 %v3995
    %5111 = vmatpush1.bf16.msra.mxu0 %v3994
    %5112 = vmatprep.subr.bf16.mxu0 %v3983
    %5113 = vmatpush1.bf16.msra.mxu0 %v3982
    %5114 = vmatprep.subr.bf16.mxu0 %v3971
    %5115 = vmatpush1.bf16.msra.mxu0 %v3970
    %5116 = vmatprep.subr.bf16.mxu0 %v3959
    %5117 = vmatpush1.bf16.msra.mxu0 %v3958
    %5118 = vmatprep.subr.bf16.mxu0 %v3947
    %5119 = vmatpush1.bf16.msra.mxu0 %v3946
    %5120 = vmatprep.subr.bf16.mxu0 %v3935
    %5121 = vmatpush1.bf16.msra.mxu0 %v3934
    %5122 = vmatprep.subr.bf16.mxu0 %v4115
    %5123 = vmatpush2.bf16.msra.mxu0 %v4114
    %5124 = vmatprep.subr.bf16.mxu0 %v4103
    %5125 = vmatpush2.bf16.msra.mxu0 %v4102
    %5126 = vmatprep.subr.bf16.mxu0 %v4091
    %5127 = vmatpush2.bf16.msra.mxu0 %v4090
    %5128 = vmatprep.subr.bf16.mxu0 %v4079
    %5129 = vmatpush2.bf16.msra.mxu0 %v4078
    %5130 = vmatprep.subr.bf16.mxu0 %v4067
    %5131 = vmatpush2.bf16.msra.mxu0 %v4066
    %5132 = vmatprep.subr.bf16.mxu0 %v4055
    %5133 = vmatpush2.bf16.msra.mxu0 %v4054
    %5134 = vmatprep.subr.bf16.mxu0 %v4043
    %5135 = vmatpush2.bf16.msra.mxu0 %v4042
    %5136 = vmatprep.subr.bf16.mxu0 %v4031
    %5137 = vmatpush2.bf16.msra.mxu0 %v4030
    %5138 = vmatprep.mubr.bf16.mxu0 %v1750
    %5139 = vmatmul.mubr.bf16.gmra.mxu0 %v1749
    %v5140 = vpop.f32.mrf.mxu0
    %v5141 = vadd.f32 %v5100, %v5140
    %v5142 = vpop.f32.mrf.mxu0
    %v5143 = vadd.f32 %v5102, %v5142
    %v5144 = vpop.f32.mrf.mxu0
    %v5145 = vpop.f32.mrf.mxu0
    %5146 = vdwg.mxu0
    %5147 = vmatprep.subr.bf16.mxu0 %v4211
    %5148 = vmatpush1.bf16.msra.mxu0 %v4210
    %5149 = vmatprep.subr.bf16.mxu0 %v4199
    %5150 = vmatpush1.bf16.msra.mxu0 %v4198
    %5151 = vmatprep.subr.bf16.mxu0 %v4187
    %5152 = vmatpush1.bf16.msra.mxu0 %v4186
    %5153 = vmatprep.subr.bf16.mxu0 %v4175
    %5154 = vmatpush1.bf16.msra.mxu0 %v4174
    %5155 = vmatprep.subr.bf16.mxu0 %v4163
    %5156 = vmatpush1.bf16.msra.mxu0 %v4162
    %5157 = vmatprep.subr.bf16.mxu0 %v4151
    %5158 = vmatpush1.bf16.msra.mxu0 %v4150
    %5159 = vmatprep.subr.bf16.mxu0 %v4139
    %5160 = vmatpush1.bf16.msra.mxu0 %v4138
    %5161 = vmatprep.subr.bf16.mxu0 %v4127
    %5162 = vmatpush1.bf16.msra.mxu0 %v4126
    %5163 = vmatprep.subr.bf16.mxu0 0
    %5164 = vmatpush2.bf16.msra.mxu0 0
    %5165 = vmatprep.subr.bf16.mxu0 0
    %5166 = vmatpush2.bf16.msra.mxu0 0
    %5167 = vmatprep.subr.bf16.mxu0 0
    %5168 = vmatpush2.bf16.msra.mxu0 0
    %5169 = vmatprep.subr.bf16.mxu0 0
    %5170 = vmatpush2.bf16.msra.mxu0 0
    %5171 = vmatprep.subr.bf16.mxu0 0
    %5172 = vmatpush2.bf16.msra.mxu0 0
    %5173 = vmatprep.subr.bf16.mxu0 0
    %5174 = vmatpush2.bf16.msra.mxu0 0
    %5175 = vmatprep.subr.bf16.mxu0 0
    %5176 = vmatpush2.bf16.msra.mxu0 0
    %5177 = vmatprep.subr.bf16.mxu0 0
    %5178 = vmatpush2.bf16.msra.mxu0 0
    %5179 = vmatprep.mubr.bf16.mxu0 0
    %5180 = vmatmul.mubr.bf16.gmra.mxu0 %v1751
    %v5181 = vpop.f32.mrf.mxu0
    %v5182 = vadd.f32 %v5141, %v5181
    %v5183 = vpop.f32.mrf.mxu0
    %v5184 = vadd.f32 %v5143, %v5183
    %v5185 = vpop.f32.mrf.mxu0
    %v5186 = vpop.f32.mrf.mxu0
    %5187 = vdwg.mxu0
    %5188 = vmatprep.subr.bf16.mxu0 %v3829
    %5189 = vmatpush1.bf16.msra.mxu0 %v3828
    %5190 = vmatprep.subr.bf16.mxu0 %v3817
    %5191 = vmatpush1.bf16.msra.mxu0 %v3816
    %5192 = vmatprep.subr.bf16.mxu0 %v3805
    %5193 = vmatpush1.bf16.msra.mxu0 %v3804
    %5194 = vmatprep.subr.bf16.mxu0 %v3793
    %5195 = vmatpush1.bf16.msra.mxu0 %v3792
    %5196 = vmatprep.subr.bf16.mxu0 %v3781
    %5197 = vmatpush1.bf16.msra.mxu0 %v3780
    %5198 = vmatprep.subr.bf16.mxu0 %v3769
    %5199 = vmatpush1.bf16.msra.mxu0 %v3768
    %5200 = vmatprep.subr.bf16.mxu0 %v3757
    %5201 = vmatpush1.bf16.msra.mxu0 %v3756
    %5202 = vmatprep.subr.bf16.mxu0 %v3745
    %5203 = vmatpush1.bf16.msra.mxu0 %v3744
    %5204 = vmatprep.subr.bf16.mxu0 %v3925
    %5205 = vmatpush2.bf16.msra.mxu0 %v3924
    %5206 = vmatprep.subr.bf16.mxu0 %v3913
    %5207 = vmatpush2.bf16.msra.mxu0 %v3912
    %5208 = vmatprep.subr.bf16.mxu0 %v3901
    %5209 = vmatpush2.bf16.msra.mxu0 %v3900
    %5210 = vmatprep.subr.bf16.mxu0 %v3889
    %5211 = vmatpush2.bf16.msra.mxu0 %v3888
    %5212 = vmatprep.subr.bf16.mxu0 %v3877
    %5213 = vmatpush2.bf16.msra.mxu0 %v3876
    %5214 = vmatprep.subr.bf16.mxu0 %v3865
    %5215 = vmatpush2.bf16.msra.mxu0 %v3864
    %5216 = vmatprep.subr.bf16.mxu0 %v3853
    %5217 = vmatpush2.bf16.msra.mxu0 %v3852
    %5218 = vmatprep.subr.bf16.mxu0 %v3841
    %5219 = vmatpush2.bf16.msra.mxu0 %v3840
    %5220 = vmatprep.mubr.bf16.mxu0 %v1748
    %5221 = vmatmul.mubr.bf16.gmra.mxu0 %v1747
    %v5222 = vpop.f32.mrf.mxu0
    %v5223 = vadd.f32 %v2271, %v5222
    %v5224 = vpop.f32.mrf.mxu0
    %v5225 = vadd.f32 %v2275, %v5224
    %v5226 = vpop.f32.mrf.mxu0
    %v5227 = vpop.f32.mrf.mxu0
    %5228 = vdwg.mxu0
    %5229 = vmatprep.subr.bf16.mxu0 %v4021
    %5230 = vmatpush1.bf16.msra.mxu0 %v4020
    %5231 = vmatprep.subr.bf16.mxu0 %v4009
    %5232 = vmatpush1.bf16.msra.mxu0 %v4008
    %5233 = vmatprep.subr.bf16.mxu0 %v3997
    %5234 = vmatpush1.bf16.msra.mxu0 %v3996
    %5235 = vmatprep.subr.bf16.mxu0 %v3985
    %5236 = vmatpush1.bf16.msra.mxu0 %v3984
    %5237 = vmatprep.subr.bf16.mxu0 %v3973
    %5238 = vmatpush1.bf16.msra.mxu0 %v3972
    %5239 = vmatprep.subr.bf16.mxu0 %v3961
    %5240 = vmatpush1.bf16.msra.mxu0 %v3960
    %5241 = vmatprep.subr.bf16.mxu0 %v3949
    %5242 = vmatpush1.bf16.msra.mxu0 %v3948
    %5243 = vmatprep.subr.bf16.mxu0 %v3937
    %5244 = vmatpush1.bf16.msra.mxu0 %v3936
    %5245 = vmatprep.subr.bf16.mxu0 %v4117
    %5246 = vmatpush2.bf16.msra.mxu0 %v4116
    %5247 = vmatprep.subr.bf16.mxu0 %v4105
    %5248 = vmatpush2.bf16.msra.mxu0 %v4104
    %5249 = vmatprep.subr.bf16.mxu0 %v4093
    %5250 = vmatpush2.bf16.msra.mxu0 %v4092
    %5251 = vmatprep.subr.bf16.mxu0 %v4081
    %5252 = vmatpush2.bf16.msra.mxu0 %v4080
    %5253 = vmatprep.subr.bf16.mxu0 %v4069
    %5254 = vmatpush2.bf16.msra.mxu0 %v4068
    %5255 = vmatprep.subr.bf16.mxu0 %v4057
    %5256 = vmatpush2.bf16.msra.mxu0 %v4056
    %5257 = vmatprep.subr.bf16.mxu0 %v4045
    %5258 = vmatpush2.bf16.msra.mxu0 %v4044
    %5259 = vmatprep.subr.bf16.mxu0 %v4033
    %5260 = vmatpush2.bf16.msra.mxu0 %v4032
    %5261 = vmatprep.mubr.bf16.mxu0 %v1750
    %5262 = vmatmul.mubr.bf16.gmra.mxu0 %v1749
    %v5263 = vpop.f32.mrf.mxu0
    %v5264 = vadd.f32 %v5223, %v5263
    %v5265 = vpop.f32.mrf.mxu0
    %v5266 = vadd.f32 %v5225, %v5265
    %v5267 = vpop.f32.mrf.mxu0
    %v5268 = vpop.f32.mrf.mxu0
    %5269 = vdwg.mxu0
    %5270 = vmatprep.subr.bf16.mxu0 %v4213
    %5271 = vmatpush1.bf16.msra.mxu0 %v4212
    %5272 = vmatprep.subr.bf16.mxu0 %v4201
    %5273 = vmatpush1.bf16.msra.mxu0 %v4200
    %5274 = vmatprep.subr.bf16.mxu0 %v4189
    %5275 = vmatpush1.bf16.msra.mxu0 %v4188
    %5276 = vmatprep.subr.bf16.mxu0 %v4177
    %5277 = vmatpush1.bf16.msra.mxu0 %v4176
    %5278 = vmatprep.subr.bf16.mxu0 %v4165
    %5279 = vmatpush1.bf16.msra.mxu0 %v4164
    %5280 = vmatprep.subr.bf16.mxu0 %v4153
    %5281 = vmatpush1.bf16.msra.mxu0 %v4152
    %5282 = vmatprep.subr.bf16.mxu0 %v4141
    %5283 = vmatpush1.bf16.msra.mxu0 %v4140
    %5284 = vmatprep.subr.bf16.mxu0 %v4129
    %5285 = vmatpush1.bf16.msra.mxu0 %v4128
    %5286 = vmatprep.subr.bf16.mxu0 0
    %5287 = vmatpush2.bf16.msra.mxu0 0
    %5288 = vmatprep.subr.bf16.mxu0 0
    %5289 = vmatpush2.bf16.msra.mxu0 0
    %5290 = vmatprep.subr.bf16.mxu0 0
    %5291 = vmatpush2.bf16.msra.mxu0 0
    %5292 = vmatprep.subr.bf16.mxu0 0
    %5293 = vmatpush2.bf16.msra.mxu0 0
    %5294 = vmatprep.subr.bf16.mxu0 0
    %5295 = vmatpush2.bf16.msra.mxu0 0
    %5296 = vmatprep.subr.bf16.mxu0 0
    %5297 = vmatpush2.bf16.msra.mxu0 0
    %5298 = vmatprep.subr.bf16.mxu0 0
    %5299 = vmatpush2.bf16.msra.mxu0 0
    %5300 = vmatprep.subr.bf16.mxu0 0
    %5301 = vmatpush2.bf16.msra.mxu0 0
    %5302 = vmatprep.mubr.bf16.mxu0 0
    %5303 = vmatmul.mubr.bf16.gmra.mxu0 %v1751
    %v5304 = vpop.f32.mrf.mxu0
    %v5305 = vadd.f32 %v5264, %v5304
    %v5306 = vpop.f32.mrf.mxu0
    %v5307 = vadd.f32 %v5266, %v5306
    %v5308 = vpop.f32.mrf.mxu0
    %v5309 = vpop.f32.mrf.mxu0
    %5310 = vdwg.mxu0
    %5311 = vmatprep.subr.bf16.mxu0 %v3831
    %5312 = vmatpush1.bf16.msra.mxu0 %v3830
    %5313 = vmatprep.subr.bf16.mxu0 %v3819
    %5314 = vmatpush1.bf16.msra.mxu0 %v3818
    %5315 = vmatprep.subr.bf16.mxu0 %v3807
    %5316 = vmatpush1.bf16.msra.mxu0 %v3806
    %5317 = vmatprep.subr.bf16.mxu0 %v3795
    %5318 = vmatpush1.bf16.msra.mxu0 %v3794
    %5319 = vmatprep.subr.bf16.mxu0 %v3783
    %5320 = vmatpush1.bf16.msra.mxu0 %v3782
    %5321 = vmatprep.subr.bf16.mxu0 %v3771
    %5322 = vmatpush1.bf16.msra.mxu0 %v3770
    %5323 = vmatprep.subr.bf16.mxu0 %v3759
    %5324 = vmatpush1.bf16.msra.mxu0 %v3758
    %5325 = vmatprep.subr.bf16.mxu0 %v3747
    %5326 = vmatpush1.bf16.msra.mxu0 %v3746
    %5327 = vmatprep.subr.bf16.mxu0 %v3927
    %5328 = vmatpush2.bf16.msra.mxu0 %v3926
    %5329 = vmatprep.subr.bf16.mxu0 %v3915
    %5330 = vmatpush2.bf16.msra.mxu0 %v3914
    %5331 = vmatprep.subr.bf16.mxu0 %v3903
    %5332 = vmatpush2.bf16.msra.mxu0 %v3902
    %5333 = vmatprep.subr.bf16.mxu0 %v3891
    %5334 = vmatpush2.bf16.msra.mxu0 %v3890
    %5335 = vmatprep.subr.bf16.mxu0 %v3879
    %5336 = vmatpush2.bf16.msra.mxu0 %v3878
    %5337 = vmatprep.subr.bf16.mxu0 %v3867
    %5338 = vmatpush2.bf16.msra.mxu0 %v3866
    %5339 = vmatprep.subr.bf16.mxu0 %v3855
    %5340 = vmatpush2.bf16.msra.mxu0 %v3854
    %5341 = vmatprep.subr.bf16.mxu0 %v3843
    %5342 = vmatpush2.bf16.msra.mxu0 %v3842
    %5343 = vmatprep.mubr.bf16.mxu0 %v1748
    %5344 = vmatmul.mubr.bf16.gmra.mxu0 %v1747
    %v5345 = vpop.f32.mrf.mxu0
    %v5346 = vadd.f32 %v2279, %v5345
    %v5347 = vpop.f32.mrf.mxu0
    %v5348 = vadd.f32 %v2283, %v5347
    %v5349 = vpop.f32.mrf.mxu0
    %v5350 = vpop.f32.mrf.mxu0
    %5351 = vdwg.mxu0
    %5352 = vmatprep.subr.bf16.mxu0 %v4023
    %5353 = vmatpush1.bf16.msra.mxu0 %v4022
    %5354 = vmatprep.subr.bf16.mxu0 %v4011
    %5355 = vmatpush1.bf16.msra.mxu0 %v4010
    %5356 = vmatprep.subr.bf16.mxu0 %v3999
    %5357 = vmatpush1.bf16.msra.mxu0 %v3998
    %5358 = vmatprep.subr.bf16.mxu0 %v3987
    %5359 = vmatpush1.bf16.msra.mxu0 %v3986
    %5360 = vmatprep.subr.bf16.mxu0 %v3975
    %5361 = vmatpush1.bf16.msra.mxu0 %v3974
    %5362 = vmatprep.subr.bf16.mxu0 %v3963
    %5363 = vmatpush1.bf16.msra.mxu0 %v3962
    %5364 = vmatprep.subr.bf16.mxu0 %v3951
    %5365 = vmatpush1.bf16.msra.mxu0 %v3950
    %5366 = vmatprep.subr.bf16.mxu0 %v3939
    %5367 = vmatpush1.bf16.msra.mxu0 %v3938
    %5368 = vmatprep.subr.bf16.mxu0 %v4119
    %5369 = vmatpush2.bf16.msra.mxu0 %v4118
    %5370 = vmatprep.subr.bf16.mxu0 %v4107
    %5371 = vmatpush2.bf16.msra.mxu0 %v4106
    %5372 = vmatprep.subr.bf16.mxu0 %v4095
    %5373 = vmatpush2.bf16.msra.mxu0 %v4094
    %5374 = vmatprep.subr.bf16.mxu0 %v4083
    %5375 = vmatpush2.bf16.msra.mxu0 %v4082
    %5376 = vmatprep.subr.bf16.mxu0 %v4071
    %5377 = vmatpush2.bf16.msra.mxu0 %v4070
    %5378 = vmatprep.subr.bf16.mxu0 %v4059
    %5379 = vmatpush2.bf16.msra.mxu0 %v4058
    %5380 = vmatprep.subr.bf16.mxu0 %v4047
    %5381 = vmatpush2.bf16.msra.mxu0 %v4046
    %5382 = vmatprep.subr.bf16.mxu0 %v4035
    %5383 = vmatpush2.bf16.msra.mxu0 %v4034
    %5384 = vmatprep.mubr.bf16.mxu0 %v1750
    %5385 = vmatmul.mubr.bf16.gmra.mxu0 %v1749
    %v5386 = vpop.f32.mrf.mxu0
    %v5387 = vadd.f32 %v5346, %v5386
    %v5388 = vpop.f32.mrf.mxu0
    %v5389 = vadd.f32 %v5348, %v5388
    %v5390 = vpop.f32.mrf.mxu0
    %v5391 = vpop.f32.mrf.mxu0
    %5392 = vdwg.mxu0
    %5393 = vmatprep.subr.bf16.mxu0 %v4215
    %5394 = vmatpush1.bf16.msra.mxu0 %v4214
    %5395 = vmatprep.subr.bf16.mxu0 %v4203
    %5396 = vmatpush1.bf16.msra.mxu0 %v4202
    %5397 = vmatprep.subr.bf16.mxu0 %v4191
    %5398 = vmatpush1.bf16.msra.mxu0 %v4190
    %5399 = vmatprep.subr.bf16.mxu0 %v4179
    %5400 = vmatpush1.bf16.msra.mxu0 %v4178
    %5401 = vmatprep.subr.bf16.mxu0 %v4167
    %5402 = vmatpush1.bf16.msra.mxu0 %v4166
    %5403 = vmatprep.subr.bf16.mxu0 %v4155
    %5404 = vmatpush1.bf16.msra.mxu0 %v4154
    %5405 = vmatprep.subr.bf16.mxu0 %v4143
    %5406 = vmatpush1.bf16.msra.mxu0 %v4142
    %5407 = vmatprep.subr.bf16.mxu0 %v4131
    %5408 = vmatpush1.bf16.msra.mxu0 %v4130
    %5409 = vmatprep.subr.bf16.mxu0 0
    %5410 = vmatpush2.bf16.msra.mxu0 0
    %5411 = vmatprep.subr.bf16.mxu0 0
    %5412 = vmatpush2.bf16.msra.mxu0 0
    %5413 = vmatprep.subr.bf16.mxu0 0
    %5414 = vmatpush2.bf16.msra.mxu0 0
    %5415 = vmatprep.subr.bf16.mxu0 0
    %5416 = vmatpush2.bf16.msra.mxu0 0
    %5417 = vmatprep.subr.bf16.mxu0 0
    %5418 = vmatpush2.bf16.msra.mxu0 0
    %5419 = vmatprep.subr.bf16.mxu0 0
    %5420 = vmatpush2.bf16.msra.mxu0 0
    %5421 = vmatprep.subr.bf16.mxu0 0
    %5422 = vmatpush2.bf16.msra.mxu0 0
    %5423 = vmatprep.subr.bf16.mxu0 0
    %5424 = vmatpush2.bf16.msra.mxu0 0
    %5425 = vmatprep.mubr.bf16.mxu0 0
    %5426 = vmatmul.mubr.bf16.gmra.mxu0 %v1751
    %v5427 = vpop.f32.mrf.mxu0
    %v5428 = vadd.f32 %v5387, %v5427
    %v5429 = vpop.f32.mrf.mxu0
    %v5430 = vadd.f32 %v5389, %v5429
    %v5431 = vpop.f32.mrf.mxu0
    %v5432 = vpop.f32.mrf.mxu0
    %5433 = vdwg.mxu0
    %v5434 = vmax.f32 %v4813, 0.0
    %v5435 = vmax.f32 %v4815, 0.0
    %v5436 = vmax.f32 %v4936, 0.0
    %v5437 = vmax.f32 %v4938, 0.0
    %v5438 = vmax.f32 %v5059, 0.0
    %v5439 = vmax.f32 %v5061, 0.0
    %v5440 = vmax.f32 %v5182, 0.0
    %v5441 = vmax.f32 %v5184, 0.0
    %v5442 = vmax.f32 %v5305, 0.0
    %v5443 = vmax.f32 %v5307, 0.0
    %v5444 = vmax.f32 %v5428, 0.0
    %v5445 = vmax.f32 %v5430, 0.0
    %v5446 = vmax.f32 %v5434, %v5437
    %v5447 = vmax.f32 %v5435, %v5438
    %v5448 = vmax.f32 %v5436, %v5439
    %v5449 = vmax.f32 %v5440, %v5443
    %v5450 = vmax.f32 %v5441, %v5444
    %v5451 = vmax.f32 %v5442, %v5445
    %v5452 = vmax.f32 %v5446, %v5449
    %v5453 = vmax.f32 %v5447, %v5450
    %v5454 = vmax.f32 %v5448, %v5451
    %5455 = vst [vmem:[%s8] sm:$0xff] %v5452
    %5456 = vst [vmem:[%s8 + $0x8] sm:$0xff] %v5453
    %5457 = vst [vmem:[%s8 + $0x10] sm:$0xff] %v5454
    %v5458 = vpack.c.bf16 %v5452, %v5452
    %v5459 = vpack.c.bf16 %v5453, %v5453
    %v5460 = vpack.c.bf16 %v5454, %v5454
    %v5461 = vld [vmem:[#allocation9] sm:$0xf]
    %v5462 = vld [vmem:[#allocation9 + $0x4] sm:$0xf]
    %v5463 = vld [vmem:[#allocation9 + $0x8] sm:$0xf]
    %v5464 = vld [vmem:[#allocation9 + $0xc] sm:$0xf]
    %v5465 = vld [vmem:[#allocation9 + $0x10] sm:$0xf]
    %v5466 = vld [vmem:[#allocation9 + $0x14] sm:$0xf]
    %v5467 = vld [vmem:[#allocation9 + $0x18] sm:$0xf]
    %v5468 = vld [vmem:[#allocation9 + $0x1c] sm:$0xf]
    %v5469 = vld [vmem:[#allocation9 + $0x20] sm:$0xf]
    %v5470 = vld [vmem:[#allocation9 + $0x24] sm:$0xf]
    %v5471 = vld [vmem:[#allocation9 + $0x28] sm:$0xf]
    %v5472 = vld [vmem:[#allocation9 + $0x2c] sm:$0xf]
    %v5473 = vld [vmem:[#allocation9 + $0x30] sm:$0xf]
    %v5474 = vld [vmem:[#allocation9 + $0x34] sm:$0xf]
    %v5475 = vld [vmem:[#allocation9 + $0x38] sm:$0xf]
    %v5476 = vld [vmem:[#allocation9 + $0x3c] sm:$0xf]
    %v5477 = vld [vmem:[#allocation9 + $0x40] sm:$0xf]
    %v5478 = vld [vmem:[#allocation9 + $0x44] sm:$0xf]
    %v5479 = vld [vmem:[#allocation9 + $0x48] sm:$0xf]
    %v5480 = vld [vmem:[#allocation9 + $0x4c] sm:$0xf]
    %v5481 = vld [vmem:[#allocation9 + $0x50] sm:$0xf]
    %v5482 = vld [vmem:[#allocation9 + $0x54] sm:$0xf]
    %v5483 = vld [vmem:[#allocation9 + $0x58] sm:$0xf]
    %v5484 = vld [vmem:[#allocation9 + $0x5c] sm:$0xf]
    %v5485 = vld [vmem:[#allocation9 + $0x60] sm:$0xf]
    %v5486 = vld [vmem:[#allocation9 + $0x64] sm:$0xf]
    %v5487 = vld [vmem:[#allocation9 + $0x68] sm:$0xf]
    %v5488 = vld [vmem:[#allocation9 + $0x6c] sm:$0xf]
    %v5489 = vld [vmem:[#allocation9 + $0x70] sm:$0xf]
    %v5490 = vld [vmem:[#allocation9 + $0x74] sm:$0xf]
    %v5491 = vld [vmem:[#allocation9 + $0x78] sm:$0xf]
    %v5492 = vld [vmem:[#allocation9 + $0x7c] sm:$0xf]
    %v5493 = vld [vmem:[#allocation9 + $0x80] sm:$0xf]
    %v5494 = vld [vmem:[#allocation9 + $0x84] sm:$0xf]
    %v5495 = vld [vmem:[#allocation9 + $0x88] sm:$0xf]
    %v5496 = vld [vmem:[#allocation9 + $0x8c] sm:$0xf]
    %v5497 = vld [vmem:[#allocation9 + $0x90] sm:$0xf]
    %v5498 = vld [vmem:[#allocation9 + $0x94] sm:$0xf]
    %v5499 = vld [vmem:[#allocation9 + $0x98] sm:$0xf]
    %v5500 = vld [vmem:[#allocation9 + $0x9c] sm:$0xf]
    %v5501 = vld [vmem:[#allocation9 + $0xa0] sm:$0xf]
    %v5502 = vld [vmem:[#allocation9 + $0xa4] sm:$0xf]
    %v5503 = vld [vmem:[#allocation9 + $0xa8] sm:$0xf]
    %v5504 = vld [vmem:[#allocation9 + $0xac] sm:$0xf]
    %v5505 = vld [vmem:[#allocation9 + $0xb0] sm:$0xf]
    %v5506 = vld [vmem:[#allocation9 + $0xb4] sm:$0xf]
    %v5507 = vld [vmem:[#allocation9 + $0xb8] sm:$0xf]
    %v5508 = vld [vmem:[#allocation9 + $0xbc] sm:$0xf]
    %v5509 = vld [vmem:[#allocation10] sm:$0x1]
    %v5511 = vlaneseq
    %v5512 = vshrl.u32 %v5511, 7
    %v5513 = vsub.s32 0, %v5512
    %v5514 = vrot.slane %v5509, %v5513
    %v5564 = vunpack.c.l.b16 %v5461
    %v5565 = vunpack.c.l.b16 %v5462
    %v5566 = vunpack.c.l.b16 %v5463
    %v5567 = vunpack.c.l.b16 %v5464
    %v5568 = vunpack.c.l.b16 %v5465
    %v5569 = vunpack.c.l.b16 %v5466
    %v5570 = vunpack.c.l.b16 %v5467
    %v5571 = vunpack.c.l.b16 %v5468
    %v5572 = vunpack.c.l.b16 %v5469
    %v5573 = vunpack.c.l.b16 %v5470
    %v5574 = vunpack.c.l.b16 %v5471
    %v5575 = vunpack.c.l.b16 %v5472
    %v5576 = vunpack.c.l.b16 %v5473
    %v5577 = vunpack.c.l.b16 %v5474
    %v5578 = vunpack.c.l.b16 %v5475
    %v5579 = vunpack.c.l.b16 %v5476
    %v5580 = vunpack.c.l.b16 %v5477
    %v5581 = vunpack.c.l.b16 %v5478
    %v5582 = vunpack.c.l.b16 %v5479
    %v5583 = vunpack.c.l.b16 %v5480
    %v5584 = vunpack.c.l.b16 %v5481
    %v5585 = vunpack.c.l.b16 %v5482
    %v5586 = vunpack.c.l.b16 %v5483
    %v5587 = vunpack.c.l.b16 %v5484
    %v5588 = vunpack.c.l.b16 %v5485
    %v5589 = vunpack.c.l.b16 %v5486
    %v5590 = vunpack.c.l.b16 %v5487
    %v5591 = vunpack.c.l.b16 %v5488
    %v5592 = vunpack.c.l.b16 %v5489
    %v5593 = vunpack.c.l.b16 %v5490
    %v5594 = vunpack.c.l.b16 %v5491
    %v5595 = vunpack.c.l.b16 %v5492
    %v5596 = vunpack.c.l.b16 %v5493
    %v5597 = vunpack.c.l.b16 %v5494
    %v5598 = vunpack.c.l.b16 %v5495
    %v5599 = vunpack.c.l.b16 %v5496
    %v5600 = vunpack.c.l.b16 %v5497
    %v5601 = vunpack.c.l.b16 %v5498
    %v5602 = vunpack.c.l.b16 %v5499
    %v5603 = vunpack.c.l.b16 %v5500
    %v5604 = vunpack.c.l.b16 %v5501
    %v5605 = vunpack.c.l.b16 %v5502
    %v5606 = vunpack.c.l.b16 %v5503
    %v5607 = vunpack.c.l.b16 %v5504
    %v5608 = vunpack.c.l.b16 %v5505
    %v5609 = vunpack.c.l.b16 %v5506
    %v5610 = vunpack.c.l.b16 %v5507
    %v5611 = vunpack.c.l.b16 %v5508
    %v5612 = vpack.c.b16 %v5565, %v5564
    %v5613 = vpack.c.b16 %v5567, %v5566
    %v5614 = vpack.c.b16 %v5569, %v5568
    %v5615 = vpack.c.b16 %v5571, %v5570
    %v5616 = vpack.c.b16 %v5573, %v5572
    %v5617 = vpack.c.b16 %v5575, %v5574
    %v5618 = vpack.c.b16 %v5577, %v5576
    %v5619 = vpack.c.b16 %v5579, %v5578
    %v5620 = vpack.c.b16 %v5581, %v5580
    %v5621 = vpack.c.b16 %v5583, %v5582
    %v5622 = vpack.c.b16 %v5585, %v5584
    %v5623 = vpack.c.b16 %v5587, %v5586
    %v5624 = vpack.c.b16 %v5589, %v5588
    %v5625 = vpack.c.b16 %v5591, %v5590
    %v5626 = vpack.c.b16 %v5593, %v5592
    %v5627 = vpack.c.b16 %v5595, %v5594
    %v5628 = vpack.c.b16 %v5597, %v5596
    %v5629 = vpack.c.b16 %v5599, %v5598
    %v5630 = vpack.c.b16 %v5601, %v5600
    %v5631 = vpack.c.b16 %v5603, %v5602
    %v5632 = vpack.c.b16 %v5605, %v5604
    %v5633 = vpack.c.b16 %v5607, %v5606
    %v5634 = vpack.c.b16 %v5609, %v5608
    %v5635 = vpack.c.b16 %v5611, %v5610
    %5660 = vmatprep.subr.bf16.mxu0 0
    %5661 = vmatpush1.bf16.msra.mxu0 %v5619
    %5662 = vmatprep.subr.bf16.mxu0 0
    %5663 = vmatpush1.bf16.msra.mxu0 %v5618
    %5664 = vmatprep.subr.bf16.mxu0 0
    %5665 = vmatpush1.bf16.msra.mxu0 %v5617
    %5666 = vmatprep.subr.bf16.mxu0 0
    %5667 = vmatpush1.bf16.msra.mxu0 %v5616
    %5668 = vmatprep.subr.bf16.mxu0 0
    %5669 = vmatpush1.bf16.msra.mxu0 %v5615
    %5670 = vmatprep.subr.bf16.mxu0 0
    %5671 = vmatpush1.bf16.msra.mxu0 %v5614
    %5672 = vmatprep.subr.bf16.mxu0 0
    %5673 = vmatpush1.bf16.msra.mxu0 %v5613
    %5674 = vmatprep.subr.bf16.mxu0 0
    %5675 = vmatpush1.bf16.msra.mxu0 %v5612
    %5676 = vmatprep.subr.bf16.mxu0 0
    %5677 = vmatpush2.bf16.msra.mxu0 %v5627
    %5678 = vmatprep.subr.bf16.mxu0 0
    %5679 = vmatpush2.bf16.msra.mxu0 %v5626
    %5680 = vmatprep.subr.bf16.mxu0 0
    %5681 = vmatpush2.bf16.msra.mxu0 %v5625
    %5682 = vmatprep.subr.bf16.mxu0 0
    %5683 = vmatpush2.bf16.msra.mxu0 %v5624
    %5684 = vmatprep.subr.bf16.mxu0 0
    %5685 = vmatpush2.bf16.msra.mxu0 %v5623
    %5686 = vmatprep.subr.bf16.mxu0 0
    %5687 = vmatpush2.bf16.msra.mxu0 %v5622
    %5688 = vmatprep.subr.bf16.mxu0 0
    %5689 = vmatpush2.bf16.msra.mxu0 %v5621
    %5690 = vmatprep.subr.bf16.mxu0 0
    %5691 = vmatpush2.bf16.msra.mxu0 %v5620
    %5692 = vmatprep.mubr.bf16.mxu0 %v5459
    %5693 = vmatmul.mubr.bf16.gmra.mxu0 %v5458
    %v5694 = vpop.f32.mrf.mxu0
    %v5695 = vadd.f32 %v5514, %v5694
    %v5696 = vpop.f32.mrf.mxu0
    %v5697 = vpop.f32.mrf.mxu0
    %v5698 = vpop.f32.mrf.mxu0
    %5699 = vdwg.mxu0
    %5700 = vmatprep.subr.bf16.mxu0 0
    %5701 = vmatpush1.bf16.msra.mxu0 %v5635
    %5702 = vmatprep.subr.bf16.mxu0 0
    %5703 = vmatpush1.bf16.msra.mxu0 %v5634
    %5704 = vmatprep.subr.bf16.mxu0 0
    %5705 = vmatpush1.bf16.msra.mxu0 %v5633
    %5706 = vmatprep.subr.bf16.mxu0 0
    %5707 = vmatpush1.bf16.msra.mxu0 %v5632
    %5708 = vmatprep.subr.bf16.mxu0 0
    %5709 = vmatpush1.bf16.msra.mxu0 %v5631
    %5710 = vmatprep.subr.bf16.mxu0 0
    %5711 = vmatpush1.bf16.msra.mxu0 %v5630
    %5712 = vmatprep.subr.bf16.mxu0 0
    %5713 = vmatpush1.bf16.msra.mxu0 %v5629
    %5714 = vmatprep.subr.bf16.mxu0 0
    %5715 = vmatpush1.bf16.msra.mxu0 %v5628
    %5716 = vmatprep.subr.bf16.mxu0 0
    %5717 = vmatpush2.bf16.msra.mxu0 0
    %5718 = vmatprep.subr.bf16.mxu0 0
    %5719 = vmatpush2.bf16.msra.mxu0 0
    %5720 = vmatprep.subr.bf16.mxu0 0
    %5721 = vmatpush2.bf16.msra.mxu0 0
    %5722 = vmatprep.subr.bf16.mxu0 0
    %5723 = vmatpush2.bf16.msra.mxu0 0
    %5724 = vmatprep.subr.bf16.mxu0 0
    %5725 = vmatpush2.bf16.msra.mxu0 0
    %5726 = vmatprep.subr.bf16.mxu0 0
    %5727 = vmatpush2.bf16.msra.mxu0 0
    %5728 = vmatprep.subr.bf16.mxu0 0
    %5729 = vmatpush2.bf16.msra.mxu0 0
    %5730 = vmatprep.subr.bf16.mxu0 0
    %5731 = vmatpush2.bf16.msra.mxu0 0
    %5732 = vmatprep.mubr.bf16.mxu0 0
    %5733 = vmatmul.mubr.bf16.gmra.mxu0 %v5460
    %v5734 = vpop.f32.mrf.mxu0
    %v5735 = vadd.f32 %v5695, %v5734
    %v5736 = vpop.f32.mrf.mxu0
    %v5737 = vpop.f32.mrf.mxu0
    %v5738 = vpop.f32.mrf.mxu0
    %5739 = vdwg.mxu0
    %5740 = vmax.xlane.f32.xlu0 %v5735
    %v5741 = vpop.xlane.xlu0 %5740
    %v5742 = vsub.f32 %v5735, %v5741
    %v5743 = vmul.f32 %v5742, 1.442695
    %v5744 = vpow.pop %v5743
    %5745 = vadd.xlane.f32.xlu0 %v5744
    %v5746 = vpop.xlane.xlu0 %5745
    %v5747 = vrcp.pop %v5746
    %v5748 = vmul.f32 %v5744, %v5747
    %5749 = vst [vmem:[%s7] sm:$0xff] %v5748
    // Predicated region
    $region54: #{cnn_forward.1} parent=1 // pred_check
      _
    $region55: #{cnn_forward.1} parent=1 // pred_check_branch
      %5751 = sbr.rel (0) target = $region57
    $region56: #{cnn_forward.1} parent=1 // pred_region
      _
    $region57: #{cnn_forward.1} parent=1 // pred_fallthru
      _
    // Predicated region
    $region58: #{cnn_forward.1} parent=1 // pred_check
      _
    $region59: #{cnn_forward.1} parent=1 // pred_check_branch
      %5753 = sbr.rel (0) target = $region61
    $region60: #{cnn_forward.1} parent=1 // pred_region
      _
    $region61: #{cnn_forward.1} parent=1 // pred_fallthru
      _
    // Predicated region
    $region62: #{cnn_forward.1} parent=1 // pred_check
      _
    $region63: #{cnn_forward.1} parent=1 // pred_check_branch
      %5755 = sbr.rel (0) target = $region65
    $region64: #{cnn_forward.1} parent=1 // pred_region
      _
    $region65: #{cnn_forward.1} parent=1 // pred_fallthru
      _
    // Predicated region
    $region66: #{cnn_forward.1} parent=1 // pred_check
      _
    $region67: #{cnn_forward.1} parent=1 // pred_check_branch
      %5757 = sbr.rel (0) target = $region69
    $region68: #{cnn_forward.1} parent=1 // pred_region
      _
    $region69: #{cnn_forward.1} parent=1 // pred_fallthru
      _
    %5758 = vsyncpa [#allocation3], 1
    %5759 = vsyncpa [#allocation5], 1
    %5760 = vsyncpa [#allocation8], 1
    %5761 = vsyncpa [#allocation11], 1

</llo_original>
